<compile_context>
chip_gen: v5e
topology: v5e:2x2
jax: 0.10.0
libtpu: 0.0.40
codegen_flags: <defaults>
</compile_context>

<pallas_src>
import functools

import jax
import jax.numpy as jnp
from jax.experimental import pallas as pl
from jax.experimental.pallas import tpu as pltpu

LRELU_SLOPE = 0.1

# (Cin, Cout, K, stride, padding, groups) for the 6 convs; conv_post separately.
CONV_CFGS = [
    (1,    16,   15, 1, 7,  1),
    (16,   64,   41, 4, 20, 4),
    (64,   256,  41, 4, 20, 16),
    (256,  1024, 41, 4, 20, 64),
    (1024, 1024, 41, 4, 20, 256),
    (1024, 1024, 5,  1, 2,  1),
]
POST_CFG = (1024, 1, 3, 1, 1, 1)


def _round_up(x, m):
    return (x + m - 1) // m * m


def _choose_tn(Np):
    # N < 128 uses the full-dim BlockSpec exception (no lane padding of the weight).
    if Np < 128:
        return Np
    return 256 if Np % 256 == 0 else 128


def _choose_tk(Kp):
    # Full contraction in one tile when it fits comfortably in VMEM, else 512-wide steps.
    return Kp if Kp <= 1024 else 512


# ---------------------------------------------------------------------------
# Pallas kernel: per-group tiled matmul with fused bias add + (optional) leaky ReLU.
# Grid = (group, M blocks, N blocks, K blocks); K innermost (accumulator pattern).
# ---------------------------------------------------------------------------
def _gmm_bias_act_kernel(x_ref, w_ref, b_ref, o_ref, acc_ref, *, apply_act, slope):
    k = pl.program_id(3)

    @pl.when(k == 0)
    def _():
        acc_ref[...] = jnp.zeros_like(acc_ref)

    acc_ref[...] += jnp.dot(x_ref[...], w_ref[...],
                            preferred_element_type=jnp.float32)

    @pl.when(k == pl.num_programs(3) - 1)
    def _():
        y = acc_ref[...] + b_ref[...]
        if apply_act:
            y = jnp.where(y >= 0, y, slope * y)
        o_ref[...] = y.astype(o_ref.dtype)


def grouped_matmul_bias_act(xg, wg, bg, apply_act):
    """out[g, m, n] = act(sum_k xg[g, m, k] * wg[g, k, n] + bg[g, 0, n]).

    xg: (G, M, Kd)  bf16 im2col patches (per group)
    wg: (G, Kp, Np) bf16 compact per-group weight (pre-padded at prepare time)
    bg: (G, 1, Np)  f32 bias
    Returns (G, M, Np) f32.
    """
    G, M, Kd = xg.shape
    Gw, Kp, Np = wg.shape
    assert G == Gw and Kp >= Kd

    tm = min(128, _round_up(M, 8))
    Mp = _round_up(M, tm)
    tn = _choose_tn(Np)
    tk = _choose_tk(Kp)

    if Mp != M or Kp != Kd:
        xg = jnp.pad(xg, ((0, 0), (0, Mp - M), (0, Kp - Kd)))

    kernel = functools.partial(_gmm_bias_act_kernel,
                               apply_act=apply_act, slope=LRELU_SLOPE)

    out = pl.pallas_call(
        kernel,
        out_shape=jax.ShapeDtypeStruct((G, Mp, Np), jnp.float32),
        grid_spec=pltpu.PrefetchScalarGridSpec(
            num_scalar_prefetch=0,
            grid=(G, Mp // tm, Np // tn, Kp // tk),
            in_specs=[
                pl.BlockSpec((None, tm, tk), lambda g, i, j, k: (g, i, k)),
                pl.BlockSpec((None, tk, tn), lambda g, i, j, k: (g, k, j)),
                pl.BlockSpec((None, 1, tn), lambda g, i, j, k: (g, 0, j)),
            ],
            out_specs=pl.BlockSpec((None, tm, tn), lambda g, i, j, k: (g, i, j)),
            scratch_shapes=[pltpu.VMEM((tm, tn), jnp.float32)],
        ),
        compiler_params=pltpu.CompilerParams(
            dimension_semantics=("parallel", "parallel", "parallel", "arbitrary")),
    )(xg, wg, bg)
    return out[:, :M, :]


# ---------------------------------------------------------------------------
# Pallas kernel: conv_post (Cout == 1) as a fused VPU row-dot + bias.
# ---------------------------------------------------------------------------
def _rowdot_bias_kernel(x_ref, w_ref, b_ref, o_ref):
    x = x_ref[...].astype(jnp.float32)          # (tm, Kd)
    w = w_ref[...].astype(jnp.float32)          # (1, Kd)
    o_ref[...] = jnp.sum(x * w, axis=-1, keepdims=True) + b_ref[...]


def rowdot_bias(x2d, w_row, bias11):
    """out[m, 0] = sum_k x2d[m, k] * w_row[0, k] + bias11[0, 0]."""
    M, Kd = x2d.shape
    tm = min(256, _round_up(M, 8))
    Mp = _round_up(M, tm)
    if Mp != M:
        x2d = jnp.pad(x2d, ((0, Mp - M), (0, 0)))

    out = pl.pallas_call(
        _rowdot_bias_kernel,
        out_shape=jax.ShapeDtypeStruct((Mp, 1), jnp.float32),
        grid_spec=pltpu.PrefetchScalarGridSpec(
            num_scalar_prefetch=0,
            grid=(Mp // tm,),
            in_specs=[
                pl.BlockSpec((tm, Kd), lambda i: (i, 0)),
                pl.BlockSpec((1, Kd), lambda i: (0, 0)),
                pl.BlockSpec((1, 1), lambda i: (0, 0)),
            ],
            out_specs=pl.BlockSpec((tm, 1), lambda i: (i, 0)),
        ),
        compiler_params=pltpu.CompilerParams(dimension_semantics=("parallel",)),
    )(x2d, w_row, bias11)
    return out[:M]


# ---------------------------------------------------------------------------
# Glue: grouped im2col (plain JAX / XLA).
# ---------------------------------------------------------------------------
def _im2col_grouped(x_nlc, K, stride, padding, groups):
    # TODO(synk): fuse the K-tap loop into the Pallas kernel (strided pl.ds reads of the
    # NLC activation) to avoid materializing ~K/stride-times replicated patches in HBM.
    B, T, C = x_nlc.shape
    T_out = (T + 2 * padding - K) // stride + 1
    xp = jnp.pad(x_nlc, ((0, 0), (padding, padding), (0, 0)))
    cols = [xp[:, k: k + stride * (T_out - 1) + 1: stride, :] for k in range(K)]
    patches = jnp.stack(cols, axis=2)                        # (B, T_out, K, C)
    cg = C // groups
    patches = patches.reshape(B, T_out, K, groups, cg)
    patches = patches.transpose(3, 0, 1, 2, 4)               # (G, B, T_out, K, cg)
    return patches.reshape(groups, B * T_out, K * cg), T_out


def _conv1d_layer(x_nlc, wg, bg, cfg, apply_act):
    cin, cout, K, stride, padding, groups = cfg
    B = x_nlc.shape[0]
    cout_g = cout // groups
    patches, T_out = _im2col_grouped(x_nlc, K, stride, padding, groups)
    out = grouped_matmul_bias_act(patches.astype(jnp.bfloat16), wg, bg, apply_act)
    out = out[:, :, :cout_g]                                 # drop lane padding if any
    return out.transpose(1, 0, 2).reshape(B, T_out, cout)


# ---------------------------------------------------------------------------
# Parameter preparation (hoisted out of the jitted forward; runs once).
# ---------------------------------------------------------------------------
def prepare_params(raw_params):
    conv_raw, post_raw = raw_params
    conv_prep = []
    for (w, b), cfg in zip(conv_raw, CONV_CFGS):
        cin, cout, K, _, _, G = cfg
        cg, og = cin // G, cout // G
        Kd = K * cg
        # Compact per-group weight: wg[g, k*cg + c, o] = w[g*og + o, c, k]
        wg = w.reshape(G, og, cg, K).transpose(0, 3, 2, 1).reshape(G, Kd, og)
        bg = b.reshape(G, 1, og).astype(jnp.float32)
        Np = og if og < 128 else _round_up(og, 128)
        Kp = Kd if Kd <= 1024 else _round_up(Kd, 512)
        wg = jnp.pad(wg, ((0, 0), (0, Kp - Kd), (0, Np - og)))
        bg = jnp.pad(bg, ((0, 0), (0, 0), (0, Np - og)))
        conv_prep.append((wg.astype(jnp.bfloat16), bg))
    # conv_post: (1, Cin, K) -> a single dense row over im2col columns (k*Cin + c).
    w, b = post_raw
    cin, cout, K, _, _, _ = POST_CFG
    w_row = w.reshape(cout, cin, K).transpose(0, 2, 1).reshape(cout, K * cin)
    post_prep = (w_row.astype(jnp.bfloat16), b.reshape(1, 1).astype(jnp.float32))
    return conv_prep, post_prep


# ---------------------------------------------------------------------------
# DiscriminatorS forward.
# ---------------------------------------------------------------------------
def discriminator_s_forward(x_ncw, params):
    """x_ncw: (B, 1, T) float32. Returns (x_flat, fmap) matching the torch module."""
    conv_params, post_params = params
    x = jnp.transpose(x_ncw, (0, 2, 1))          # NCW -> NLC
    fmap = []
    for (wg, bg), cfg in zip(conv_params, CONV_CFGS):
        x = _conv1d_layer(x, wg, bg, cfg, apply_act=True)
        fmap.append(jnp.transpose(x, (0, 2, 1)))  # fmap in NCW like torch
    # conv_post (no activation), Cout == 1 -> VPU row-dot kernel
    w_row, b11 = post_params
    _, _, K, stride, padding, _ = POST_CFG
    B = x.shape[0]
    patches, T_out = _im2col_grouped(x, K, stride, padding, 1)   # (1, M, K*Cin)
    out2d = rowdot_bias(patches[0].astype(jnp.bfloat16), w_row, b11)
    x = out2d.reshape(B, T_out, 1)
    x_ncw_out = jnp.transpose(x, (0, 2, 1))
    fmap.append(x_ncw_out)
    x_flat = x_ncw_out.reshape(x_ncw_out.shape[0], -1)           # torch.flatten(x, 1, -1)
    return x_flat, fmap


def init_params(key):
    """Deterministic synthetic init (torch Conv1d-style uniform bounds), raw torch layout."""
    conv_params = []
    for cfg in CONV_CFGS + [POST_CFG]:
        cin, cout, k, _, _, g = cfg
        cin_g = cin // g
        key, kw, kb = jax.random.split(key, 3)
        bound = 1.0 / (cin_g * k) ** 0.5
        w = jax.random.uniform(kw, (cout, cin_g, k), jnp.float32, -bound, bound)
        b = jax.random.uniform(kb, (cout,), jnp.float32, -bound, bound)
        conv_params.append((w, b))
    # TODO(synk): weight_norm reparam (g * v/||v||) is folded into the effective weight;
    # forward semantics are identical to a plain Conv1d.
    return conv_params[:-1], conv_params[-1]


def reference_forward(x_ncw, raw_params):
    """Pure-JAX grouped-conv reference (f32) for validation."""
    conv_raw, post_raw = raw_params
    x = x_ncw
    fmap = []
    layers = list(zip(conv_raw, CONV_CFGS)) + [(post_raw, POST_CFG)]
    for idx, ((w, b), cfg) in enumerate(layers):
        _, _, _, stride, padding, g = cfg
        x = jax.lax.conv_general_dilated(
            x, w, window_strides=(stride,), padding=[(padding, padding)],
            feature_group_count=g,
            dimension_numbers=("NCH", "OIH", "NCH")) + b[None, :, None]
        if idx < len(CONV_CFGS):
            x = jnp.where(x >= 0, x, LRELU_SLOPE * x)
        fmap.append(x)
    return x.reshape(x.shape[0], -1), fmap


if __name__ == "__main__":
    key = jax.random.PRNGKey(0)
    raw_params = init_params(key)
    params = prepare_params(raw_params)          # weight relayout hoisted out of jit

    B, T = 2, 256
    key, kx = jax.random.split(key)
    x = jax.random.normal(kx, (B, 1, T), jnp.float32)   # NCW, like torch

    fwd = jax.jit(discriminator_s_forward)
    x_out, fmap = fwd(x, params)
    jax.block_until_ready((x_out, fmap))

    # Shape sanity checks (T: 256 -> 256 -> 64 -> 16 -> 4 -> 1 -> 1 -> 1)
    assert x_out.shape == (B, 1), x_out.shape
    expected_c = [16, 64, 256, 1024, 1024, 1024, 1]
    expected_t = [256, 64, 16, 4, 1, 1, 1]
    for f, c, t in zip(fmap, expected_c, expected_t):
        assert f.shape == (B, c, t), f.shape

    # Numerical check vs. the pure-JAX f32 reference (bf16 MXU operands + f32
    # accumulation -> relaxed, scale-relative tolerance).
    ref_out, ref_fmap = jax.jit(reference_forward)(x, raw_params)
    jax.block_until_ready((ref_out, ref_fmap))
    for got, ref in list(zip(fmap, ref_fmap)) + [(x_out, ref_out)]:
        scale = float(jnp.max(jnp.abs(ref)))
        err = float(jnp.max(jnp.abs(got - ref)))
        assert err <= 0.1 * scale + 1e-3, (err, scale)

    print("KERNEL_OK")
</pallas_src>

<mosaic_0001>
module attributes {stable_mosaic.version = 11 : i64} {
  func.func @_gmm_bias_act_kernel(%arg0: i32, %arg1: i32, %arg2: i32, %arg3: i32, %arg4: memref<1x128x15xbf16, #tpu.memory_space<vmem>>, %arg5: memref<1x15x16xbf16, #tpu.memory_space<vmem>>, %arg6: memref<1x1x16xf32, #tpu.memory_space<vmem>>, %arg7: memref<1x128x16xf32, #tpu.memory_space<vmem>>, %arg8: memref<128x16xf32, #tpu.memory_space<vmem>>) attributes {dimension_semantics = [#tpu.dimension_semantics<parallel>, #tpu.dimension_semantics<parallel>, #tpu.dimension_semantics<parallel>, #tpu.dimension_semantics<arbitrary>], iteration_bounds = array<i64: 1, 4, 1, 1>, scalar_prefetch = 0 : i64, scratch_operands = 1 : i64, tpu.core_type = #tpu.core_type<tc>, window_params = [{transform_indices = @transform_0, window_bounds = array<i64: 1, 128, 15>}, {transform_indices = @transform_1, window_bounds = array<i64: 1, 15, 16>}, {transform_indices = @transform_2, window_bounds = array<i64: 1, 1, 16>}, {transform_indices = @transform_3, window_bounds = array<i64: 1, 128, 16>}]} {
    %c0_i32 = arith.constant 0 : i32
    %0 = arith.cmpi eq, %arg3, %c0_i32 : i32
    %1 = arith.extui %0 : i1 to i32
    %c0_i32_0 = arith.constant 0 : i32
    %2 = arith.cmpi ne, %1, %c0_i32_0 : i32
    scf.if %2 {
      %cst_12 = arith.constant 0.000000e+00 : f32
      %14 = vector.broadcast %cst_12 : f32 to vector<128x16xf32>
      %c0_13 = arith.constant 0 : index
      %c0_14 = arith.constant 0 : index
      %15 = vector.load %arg8[%c0_13, %c0_14] : memref<128x16xf32, #tpu.memory_space<vmem>>, vector<128x16xf32>
      tpu.vector_store %arg8[%c0_13, %c0_14], %14 {strides = array<i32>} : memref<128x16xf32, #tpu.memory_space<vmem>>, vector<128x16xf32>,
    } else {
    }
    %c0 = arith.constant 0 : index
    %c0_1 = arith.constant 0 : index
    %3 = vector.load %arg8[%c0, %c0_1] : memref<128x16xf32, #tpu.memory_space<vmem>>, vector<128x16xf32>
    %c0_2 = arith.constant 0 : index
    %c0_3 = arith.constant 0 : index
    %c0_4 = arith.constant 0 : index
    %4 = vector.load %arg4[%c0_2, %c0_3, %c0_4] : memref<1x128x15xbf16, #tpu.memory_space<vmem>>, vector<1x128x15xbf16>
    %5 = vector.shape_cast %4 : vector<1x128x15xbf16> to vector<128x15xbf16>
    %c0_5 = arith.constant 0 : index
    %c0_6 = arith.constant 0 : index
    %c0_7 = arith.constant 0 : index
    %6 = vector.load %arg5[%c0_5, %c0_6, %c0_7] : memref<1x15x16xbf16, #tpu.memory_space<vmem>>, vector<1x15x16xbf16>
    %7 = vector.shape_cast %6 : vector<1x15x16xbf16> to vector<15x16xbf16>
    %cst = arith.constant dense<0.000000e+00> : vector<128x16xf32>
    %8 = tpu.matmul %5, %7, %cst {dimension_numbers = #tpu.dot_dimension_numbers<[1], [0], [0], [1], [0, 0, 1, 1], [], []>} : vector<128x15xbf16>, vector<15x16xbf16>, vector<128x16xf32> -> vector<128x16xf32>
    %9 = arith.addf %3, %8 : vector<128x16xf32>
    %c0_8 = arith.constant 0 : index
    %c0_9 = arith.constant 0 : index
    %10 = vector.load %arg8[%c0_8, %c0_9] : memref<128x16xf32, #tpu.memory_space<vmem>>, vector<128x16xf32>
    tpu.vector_store %arg8[%c0_8, %c0_9], %9 {strides = array<i32>} : memref<128x16xf32, #tpu.memory_space<vmem>>, vector<128x16xf32>,
    %c0_i32_10 = arith.constant 0 : i32
    %11 = arith.cmpi eq, %arg3, %c0_i32_10 : i32
    %12 = arith.extui %11 : i1 to i32
    %c0_i32_11 = arith.constant 0 : i32
    %13 = arith.cmpi ne, %12, %c0_i32_11 : i32
    scf.if %13 {
      %c0_12 = arith.constant 0 : index
      %c0_13 = arith.constant 0 : index
      %14 = vector.load %arg8[%c0_12, %c0_13] : memref<128x16xf32, #tpu.memory_space<vmem>>, vector<128x16xf32>
      %c0_14 = arith.constant 0 : index
      %c0_15 = arith.constant 0 : index
      %c0_16 = arith.constant 0 : index
      %15 = vector.load %arg6[%c0_14, %c0_15, %c0_16] : memref<1x1x16xf32, #tpu.memory_space<vmem>>, vector<1x1x16xf32>
      %16 = vector.shape_cast %15 : vector<1x1x16xf32> to vector<1x16xf32>
      %17 = vector.broadcast %16 : vector<1x16xf32> to vector<128x16xf32>
      %18 = arith.addf %14, %17 : vector<128x16xf32>
      %cst_17 = arith.constant 0.000000e+00 : f32
      %19 = vector.broadcast %cst_17 : f32 to vector<128x16xf32>
      %20 = arith.cmpf oge, %18, %19 : vector<128x16xf32>
      %cst_18 = arith.constant 1.000000e-01 : f32
      %21 = vector.broadcast %cst_18 : f32 to vector<128x16xf32>
      %22 = arith.mulf %21, %18 : vector<128x16xf32>
      %23 = arith.select %20, %18, %22 : vector<128x16xi1>, vector<128x16xf32>
      %c0_19 = arith.constant 0 : index
      %c0_20 = arith.constant 0 : index
      %c0_21 = arith.constant 0 : index
      %24 = vector.load %arg7[%c0_19, %c0_20, %c0_21] : memref<1x128x16xf32, #tpu.memory_space<vmem>>, vector<1x128x16xf32>
      %25 = vector.shape_cast %24 : vector<1x128x16xf32> to vector<128x16xf32>
      %26 = vector.shape_cast %23 : vector<128x16xf32> to vector<1x128x16xf32>
      tpu.vector_store %arg7[%c0_19, %c0_20, %c0_21], %26 {strides = array<i32>} : memref<1x128x16xf32, #tpu.memory_space<vmem>>, vector<1x128x16xf32>,
    } else {
    }
    return
  }
  func.func @transform_0(%arg0: i32, %arg1: i32, %arg2: i32, %arg3: i32) -> (i32, i32, i32) {
    %c0_i32 = arith.constant 0 : i32
    return %arg0, %arg1, %arg3 : i32, i32, i32
  }
  func.func @transform_1(%arg0: i32, %arg1: i32, %arg2: i32, %arg3: i32) -> (i32, i32, i32) {
    %c0_i32 = arith.constant 0 : i32
    return %arg0, %arg3, %arg2 : i32, i32, i32
  }
  func.func @transform_2(%arg0: i32, %arg1: i32, %arg2: i32, %arg3: i32) -> (i32, i32, i32) {
    %c0_i32 = arith.constant 0 : i32
    %c0_i32_0 = arith.constant 0 : i32
    return %arg0, %c0_i32, %arg2 : i32, i32, i32
  }
  func.func @transform_3(%arg0: i32, %arg1: i32, %arg2: i32, %arg3: i32) -> (i32, i32, i32) {
    %c0_i32 = arith.constant 0 : i32
    return %arg0, %arg1, %arg2 : i32, i32, i32
  }
}

module attributes {stable_mosaic.version = 11 : i64} {
  func.func @_gmm_bias_act_kernel(%arg0: i32, %arg1: i32, %arg2: i32, %arg3: i32, %arg4: memref<1x128x164xbf16, #tpu.memory_space<vmem>>, %arg5: memref<1x164x16xbf16, #tpu.memory_space<vmem>>, %arg6: memref<1x1x16xf32, #tpu.memory_space<vmem>>, %arg7: memref<1x128x16xf32, #tpu.memory_space<vmem>>, %arg8: memref<128x16xf32, #tpu.memory_space<vmem>>) attributes {dimension_semantics = [#tpu.dimension_semantics<parallel>, #tpu.dimension_semantics<parallel>, #tpu.dimension_semantics<parallel>, #tpu.dimension_semantics<arbitrary>], iteration_bounds = array<i64: 4, 1, 1, 1>, scalar_prefetch = 0 : i64, scratch_operands = 1 : i64, tpu.core_type = #tpu.core_type<tc>, window_params = [{transform_indices = @transform_0, window_bounds = array<i64: 1, 128, 164>}, {transform_indices = @transform_1, window_bounds = array<i64: 1, 164, 16>}, {transform_indices = @transform_2, window_bounds = array<i64: 1, 1, 16>}, {transform_indices = @transform_3, window_bounds = array<i64: 1, 128, 16>}]} {
    %c0_i32 = arith.constant 0 : i32
    %0 = arith.cmpi eq, %arg3, %c0_i32 : i32
    %1 = arith.extui %0 : i1 to i32
    %c0_i32_0 = arith.constant 0 : i32
    %2 = arith.cmpi ne, %1, %c0_i32_0 : i32
    scf.if %2 {
      %cst_12 = arith.constant 0.000000e+00 : f32
      %14 = vector.broadcast %cst_12 : f32 to vector<128x16xf32>
      %c0_13 = arith.constant 0 : index
      %c0_14 = arith.constant 0 : index
      %15 = vector.load %arg8[%c0_13, %c0_14] : memref<128x16xf32, #tpu.memory_space<vmem>>, vector<128x16xf32>
      tpu.vector_store %arg8[%c0_13, %c0_14], %14 {strides = array<i32>} : memref<128x16xf32, #tpu.memory_space<vmem>>, vector<128x16xf32>,
    } else {
    }
    %c0 = arith.constant 0 : index
    %c0_1 = arith.constant 0 : index
    %3 = vector.load %arg8[%c0, %c0_1] : memref<128x16xf32, #tpu.memory_space<vmem>>, vector<128x16xf32>
    %c0_2 = arith.constant 0 : index
    %c0_3 = arith.constant 0 : index
    %c0_4 = arith.constant 0 : index
    %4 = vector.load %arg4[%c0_2, %c0_3, %c0_4] : memref<1x128x164xbf16, #tpu.memory_space<vmem>>, vector<1x128x164xbf16>
    %5 = vector.shape_cast %4 : vector<1x128x164xbf16> to vector<128x164xbf16>
    %c0_5 = arith.constant 0 : index
    %c0_6 = arith.constant 0 : index
    %c0_7 = arith.constant 0 : index
    %6 = vector.load %arg5[%c0_5, %c0_6, %c0_7] : memref<1x164x16xbf16, #tpu.memory_space<vmem>>, vector<1x164x16xbf16>
    %7 = vector.shape_cast %6 : vector<1x164x16xbf16> to vector<164x16xbf16>
    %cst = arith.constant dense<0.000000e+00> : vector<128x16xf32>
    %8 = tpu.matmul %5, %7, %cst {dimension_numbers = #tpu.dot_dimension_numbers<[1], [0], [0], [1], [0, 0, 1, 1], [], []>} : vector<128x164xbf16>, vector<164x16xbf16>, vector<128x16xf32> -> vector<128x16xf32>
    %9 = arith.addf %3, %8 : vector<128x16xf32>
    %c0_8 = arith.constant 0 : index
    %c0_9 = arith.constant 0 : index
    %10 = vector.load %arg8[%c0_8, %c0_9] : memref<128x16xf32, #tpu.memory_space<vmem>>, vector<128x16xf32>
    tpu.vector_store %arg8[%c0_8, %c0_9], %9 {strides = array<i32>} : memref<128x16xf32, #tpu.memory_space<vmem>>, vector<128x16xf32>,
    %c0_i32_10 = arith.constant 0 : i32
    %11 = arith.cmpi eq, %arg3, %c0_i32_10 : i32
    %12 = arith.extui %11 : i1 to i32
    %c0_i32_11 = arith.constant 0 : i32
    %13 = arith.cmpi ne, %12, %c0_i32_11 : i32
    scf.if %13 {
      %c0_12 = arith.constant 0 : index
      %c0_13 = arith.constant 0 : index
      %14 = vector.load %arg8[%c0_12, %c0_13] : memref<128x16xf32, #tpu.memory_space<vmem>>, vector<128x16xf32>
      %c0_14 = arith.constant 0 : index
      %c0_15 = arith.constant 0 : index
      %c0_16 = arith.constant 0 : index
      %15 = vector.load %arg6[%c0_14, %c0_15, %c0_16] : memref<1x1x16xf32, #tpu.memory_space<vmem>>, vector<1x1x16xf32>
      %16 = vector.shape_cast %15 : vector<1x1x16xf32> to vector<1x16xf32>
      %17 = vector.broadcast %16 : vector<1x16xf32> to vector<128x16xf32>
      %18 = arith.addf %14, %17 : vector<128x16xf32>
      %cst_17 = arith.constant 0.000000e+00 : f32
      %19 = vector.broadcast %cst_17 : f32 to vector<128x16xf32>
      %20 = arith.cmpf oge, %18, %19 : vector<128x16xf32>
      %cst_18 = arith.constant 1.000000e-01 : f32
      %21 = vector.broadcast %cst_18 : f32 to vector<128x16xf32>
      %22 = arith.mulf %21, %18 : vector<128x16xf32>
      %23 = arith.select %20, %18, %22 : vector<128x16xi1>, vector<128x16xf32>
      %c0_19 = arith.constant 0 : index
      %c0_20 = arith.constant 0 : index
      %c0_21 = arith.constant 0 : index
      %24 = vector.load %arg7[%c0_19, %c0_20, %c0_21] : memref<1x128x16xf32, #tpu.memory_space<vmem>>, vector<1x128x16xf32>
      %25 = vector.shape_cast %24 : vector<1x128x16xf32> to vector<128x16xf32>
      %26 = vector.shape_cast %23 : vector<128x16xf32> to vector<1x128x16xf32>
      tpu.vector_store %arg7[%c0_19, %c0_20, %c0_21], %26 {strides = array<i32>} : memref<1x128x16xf32, #tpu.memory_space<vmem>>, vector<1x128x16xf32>,
    } else {
    }
    return
  }
  func.func @transform_0(%arg0: i32, %arg1: i32, %arg2: i32, %arg3: i32) -> (i32, i32, i32) {
    %c0_i32 = arith.constant 0 : i32
    return %arg0, %arg1, %arg3 : i32, i32, i32
  }
  func.func @transform_1(%arg0: i32, %arg1: i32, %arg2: i32, %arg3: i32) -> (i32, i32, i32) {
    %c0_i32 = arith.constant 0 : i32
    return %arg0, %arg3, %arg2 : i32, i32, i32
  }
  func.func @transform_2(%arg0: i32, %arg1: i32, %arg2: i32, %arg3: i32) -> (i32, i32, i32) {
    %c0_i32 = arith.constant 0 : i32
    %c0_i32_0 = arith.constant 0 : i32
    return %arg0, %c0_i32, %arg2 : i32, i32, i32
  }
  func.func @transform_3(%arg0: i32, %arg1: i32, %arg2: i32, %arg3: i32) -> (i32, i32, i32) {
    %c0_i32 = arith.constant 0 : i32
    return %arg0, %arg1, %arg2 : i32, i32, i32
  }
}

module attributes {stable_mosaic.version = 11 : i64} {
  func.func @_gmm_bias_act_kernel(%arg0: i32, %arg1: i32, %arg2: i32, %arg3: i32, %arg4: memref<1x32x164xbf16, #tpu.memory_space<vmem>>, %arg5: memref<1x164x16xbf16, #tpu.memory_space<vmem>>, %arg6: memref<1x1x16xf32, #tpu.memory_space<vmem>>, %arg7: memref<1x32x16xf32, #tpu.memory_space<vmem>>, %arg8: memref<32x16xf32, #tpu.memory_space<vmem>>) attributes {dimension_semantics = [#tpu.dimension_semantics<parallel>, #tpu.dimension_semantics<parallel>, #tpu.dimension_semantics<parallel>, #tpu.dimension_semantics<arbitrary>], iteration_bounds = array<i64: 16, 1, 1, 1>, scalar_prefetch = 0 : i64, scratch_operands = 1 : i64, tpu.core_type = #tpu.core_type<tc>, window_params = [{transform_indices = @transform_0, window_bounds = array<i64: 1, 32, 164>}, {transform_indices = @transform_1, window_bounds = array<i64: 1, 164, 16>}, {transform_indices = @transform_2, window_bounds = array<i64: 1, 1, 16>}, {transform_indices = @transform_3, window_bounds = array<i64: 1, 32, 16>}]} {
    %c0_i32 = arith.constant 0 : i32
    %0 = arith.cmpi eq, %arg3, %c0_i32 : i32
    %1 = arith.extui %0 : i1 to i32
    %c0_i32_0 = arith.constant 0 : i32
    %2 = arith.cmpi ne, %1, %c0_i32_0 : i32
    scf.if %2 {
      %cst_12 = arith.constant 0.000000e+00 : f32
      %14 = vector.broadcast %cst_12 : f32 to vector<32x16xf32>
      %c0_13 = arith.constant 0 : index
      %c0_14 = arith.constant 0 : index
      %15 = vector.load %arg8[%c0_13, %c0_14] : memref<32x16xf32, #tpu.memory_space<vmem>>, vector<32x16xf32>
      tpu.vector_store %arg8[%c0_13, %c0_14], %14 {strides = array<i32>} : memref<32x16xf32, #tpu.memory_space<vmem>>, vector<32x16xf32>,
    } else {
    }
    %c0 = arith.constant 0 : index
    %c0_1 = arith.constant 0 : index
    %3 = vector.load %arg8[%c0, %c0_1] : memref<32x16xf32, #tpu.memory_space<vmem>>, vector<32x16xf32>
    %c0_2 = arith.constant 0 : index
    %c0_3 = arith.constant 0 : index
    %c0_4 = arith.constant 0 : index
    %4 = vector.load %arg4[%c0_2, %c0_3, %c0_4] : memref<1x32x164xbf16, #tpu.memory_space<vmem>>, vector<1x32x164xbf16>
    %5 = vector.shape_cast %4 : vector<1x32x164xbf16> to vector<32x164xbf16>
    %c0_5 = arith.constant 0 : index
    %c0_6 = arith.constant 0 : index
    %c0_7 = arith.constant 0 : index
    %6 = vector.load %arg5[%c0_5, %c0_6, %c0_7] : memref<1x164x16xbf16, #tpu.memory_space<vmem>>, vector<1x164x16xbf16>
    %7 = vector.shape_cast %6 : vector<1x164x16xbf16> to vector<164x16xbf16>
    %cst = arith.constant dense<0.000000e+00> : vector<32x16xf32>
    %8 = tpu.matmul %5, %7, %cst {dimension_numbers = #tpu.dot_dimension_numbers<[1], [0], [0], [1], [0, 0, 1, 1], [], []>} : vector<32x164xbf16>, vector<164x16xbf16>, vector<32x16xf32> -> vector<32x16xf32>
    %9 = arith.addf %3, %8 : vector<32x16xf32>
    %c0_8 = arith.constant 0 : index
    %c0_9 = arith.constant 0 : index
    %10 = vector.load %arg8[%c0_8, %c0_9] : memref<32x16xf32, #tpu.memory_space<vmem>>, vector<32x16xf32>
    tpu.vector_store %arg8[%c0_8, %c0_9], %9 {strides = array<i32>} : memref<32x16xf32, #tpu.memory_space<vmem>>, vector<32x16xf32>,
    %c0_i32_10 = arith.constant 0 : i32
    %11 = arith.cmpi eq, %arg3, %c0_i32_10 : i32
    %12 = arith.extui %11 : i1 to i32
    %c0_i32_11 = arith.constant 0 : i32
    %13 = arith.cmpi ne, %12, %c0_i32_11 : i32
    scf.if %13 {
      %c0_12 = arith.constant 0 : index
      %c0_13 = arith.constant 0 : index
      %14 = vector.load %arg8[%c0_12, %c0_13] : memref<32x16xf32, #tpu.memory_space<vmem>>, vector<32x16xf32>
      %c0_14 = arith.constant 0 : index
      %c0_15 = arith.constant 0 : index
      %c0_16 = arith.constant 0 : index
      %15 = vector.load %arg6[%c0_14, %c0_15, %c0_16] : memref<1x1x16xf32, #tpu.memory_space<vmem>>, vector<1x1x16xf32>
      %16 = vector.shape_cast %15 : vector<1x1x16xf32> to vector<1x16xf32>
      %17 = vector.broadcast %16 : vector<1x16xf32> to vector<32x16xf32>
      %18 = arith.addf %14, %17 : vector<32x16xf32>
      %cst_17 = arith.constant 0.000000e+00 : f32
      %19 = vector.broadcast %cst_17 : f32 to vector<32x16xf32>
      %20 = arith.cmpf oge, %18, %19 : vector<32x16xf32>
      %cst_18 = arith.constant 1.000000e-01 : f32
      %21 = vector.broadcast %cst_18 : f32 to vector<32x16xf32>
      %22 = arith.mulf %21, %18 : vector<32x16xf32>
      %23 = arith.select %20, %18, %22 : vector<32x16xi1>, vector<32x16xf32>
      %c0_19 = arith.constant 0 : index
      %c0_20 = arith.constant 0 : index
      %c0_21 = arith.constant 0 : index
      %24 = vector.load %arg7[%c0_19, %c0_20, %c0_21] : memref<1x32x16xf32, #tpu.memory_space<vmem>>, vector<1x32x16xf32>
      %25 = vector.shape_cast %24 : vector<1x32x16xf32> to vector<32x16xf32>
      %26 = vector.shape_cast %23 : vector<32x16xf32> to vector<1x32x16xf32>
      tpu.vector_store %arg7[%c0_19, %c0_20, %c0_21], %26 {strides = array<i32>} : memref<1x32x16xf32, #tpu.memory_space<vmem>>, vector<1x32x16xf32>,
    } else {
    }
    return
  }
  func.func @transform_0(%arg0: i32, %arg1: i32, %arg2: i32, %arg3: i32) -> (i32, i32, i32) {
    %c0_i32 = arith.constant 0 : i32
    return %arg0, %arg1, %arg3 : i32, i32, i32
  }
  func.func @transform_1(%arg0: i32, %arg1: i32, %arg2: i32, %arg3: i32) -> (i32, i32, i32) {
    %c0_i32 = arith.constant 0 : i32
    return %arg0, %arg3, %arg2 : i32, i32, i32
  }
  func.func @transform_2(%arg0: i32, %arg1: i32, %arg2: i32, %arg3: i32) -> (i32, i32, i32) {
    %c0_i32 = arith.constant 0 : i32
    %c0_i32_0 = arith.constant 0 : i32
    return %arg0, %c0_i32, %arg2 : i32, i32, i32
  }
  func.func @transform_3(%arg0: i32, %arg1: i32, %arg2: i32, %arg3: i32) -> (i32, i32, i32) {
    %c0_i32 = arith.constant 0 : i32
    return %arg0, %arg1, %arg2 : i32, i32, i32
  }
}

module attributes {stable_mosaic.version = 11 : i64} {
  func.func @_gmm_bias_act_kernel(%arg0: i32, %arg1: i32, %arg2: i32, %arg3: i32, %arg4: memref<1x8x164xbf16, #tpu.memory_space<vmem>>, %arg5: memref<1x164x16xbf16, #tpu.memory_space<vmem>>, %arg6: memref<1x1x16xf32, #tpu.memory_space<vmem>>, %arg7: memref<1x8x16xf32, #tpu.memory_space<vmem>>, %arg8: memref<8x16xf32, #tpu.memory_space<vmem>>) attributes {dimension_semantics = [#tpu.dimension_semantics<parallel>, #tpu.dimension_semantics<parallel>, #tpu.dimension_semantics<parallel>, #tpu.dimension_semantics<arbitrary>], iteration_bounds = array<i64: 64, 1, 1, 1>, scalar_prefetch = 0 : i64, scratch_operands = 1 : i64, tpu.core_type = #tpu.core_type<tc>, window_params = [{transform_indices = @transform_0, window_bounds = array<i64: 1, 8, 164>}, {transform_indices = @transform_1, window_bounds = array<i64: 1, 164, 16>}, {transform_indices = @transform_2, window_bounds = array<i64: 1, 1, 16>}, {transform_indices = @transform_3, window_bounds = array<i64: 1, 8, 16>}]} {
    %c0_i32 = arith.constant 0 : i32
    %0 = arith.cmpi eq, %arg3, %c0_i32 : i32
    %1 = arith.extui %0 : i1 to i32
    %c0_i32_0 = arith.constant 0 : i32
    %2 = arith.cmpi ne, %1, %c0_i32_0 : i32
    scf.if %2 {
      %cst_12 = arith.constant 0.000000e+00 : f32
      %14 = vector.broadcast %cst_12 : f32 to vector<8x16xf32>
      %c0_13 = arith.constant 0 : index
      %c0_14 = arith.constant 0 : index
      %15 = vector.load %arg8[%c0_13, %c0_14] : memref<8x16xf32, #tpu.memory_space<vmem>>, vector<8x16xf32>
      tpu.vector_store %arg8[%c0_13, %c0_14], %14 {strides = array<i32>} : memref<8x16xf32, #tpu.memory_space<vmem>>, vector<8x16xf32>,
    } else {
    }
    %c0 = arith.constant 0 : index
    %c0_1 = arith.constant 0 : index
    %3 = vector.load %arg8[%c0, %c0_1] : memref<8x16xf32, #tpu.memory_space<vmem>>, vector<8x16xf32>
    %c0_2 = arith.constant 0 : index
    %c0_3 = arith.constant 0 : index
    %c0_4 = arith.constant 0 : index
    %4 = vector.load %arg4[%c0_2, %c0_3, %c0_4] : memref<1x8x164xbf16, #tpu.memory_space<vmem>>, vector<1x8x164xbf16>
    %5 = vector.shape_cast %4 : vector<1x8x164xbf16> to vector<8x164xbf16>
    %c0_5 = arith.constant 0 : index
    %c0_6 = arith.constant 0 : index
    %c0_7 = arith.constant 0 : index
    %6 = vector.load %arg5[%c0_5, %c0_6, %c0_7] : memref<1x164x16xbf16, #tpu.memory_space<vmem>>, vector<1x164x16xbf16>
    %7 = vector.shape_cast %6 : vector<1x164x16xbf16> to vector<164x16xbf16>
    %cst = arith.constant dense<0.000000e+00> : vector<8x16xf32>
    %8 = tpu.matmul %5, %7, %cst {dimension_numbers = #tpu.dot_dimension_numbers<[1], [0], [0], [1], [0, 0, 1, 1], [], []>} : vector<8x164xbf16>, vector<164x16xbf16>, vector<8x16xf32> -> vector<8x16xf32>
    %9 = arith.addf %3, %8 : vector<8x16xf32>
    %c0_8 = arith.constant 0 : index
    %c0_9 = arith.constant 0 : index
    %10 = vector.load %arg8[%c0_8, %c0_9] : memref<8x16xf32, #tpu.memory_space<vmem>>, vector<8x16xf32>
    tpu.vector_store %arg8[%c0_8, %c0_9], %9 {strides = array<i32>} : memref<8x16xf32, #tpu.memory_space<vmem>>, vector<8x16xf32>,
    %c0_i32_10 = arith.constant 0 : i32
    %11 = arith.cmpi eq, %arg3, %c0_i32_10 : i32
    %12 = arith.extui %11 : i1 to i32
    %c0_i32_11 = arith.constant 0 : i32
    %13 = arith.cmpi ne, %12, %c0_i32_11 : i32
    scf.if %13 {
      %c0_12 = arith.constant 0 : index
      %c0_13 = arith.constant 0 : index
      %14 = vector.load %arg8[%c0_12, %c0_13] : memref<8x16xf32, #tpu.memory_space<vmem>>, vector<8x16xf32>
      %c0_14 = arith.constant 0 : index
      %c0_15 = arith.constant 0 : index
      %c0_16 = arith.constant 0 : index
      %15 = vector.load %arg6[%c0_14, %c0_15, %c0_16] : memref<1x1x16xf32, #tpu.memory_space<vmem>>, vector<1x1x16xf32>
      %16 = vector.shape_cast %15 : vector<1x1x16xf32> to vector<1x16xf32>
      %17 = vector.broadcast %16 : vector<1x16xf32> to vector<8x16xf32>
      %18 = arith.addf %14, %17 : vector<8x16xf32>
      %cst_17 = arith.constant 0.000000e+00 : f32
      %19 = vector.broadcast %cst_17 : f32 to vector<8x16xf32>
      %20 = arith.cmpf oge, %18, %19 : vector<8x16xf32>
      %cst_18 = arith.constant 1.000000e-01 : f32
      %21 = vector.broadcast %cst_18 : f32 to vector<8x16xf32>
      %22 = arith.mulf %21, %18 : vector<8x16xf32>
      %23 = arith.select %20, %18, %22 : vector<8x16xi1>, vector<8x16xf32>
      %c0_19 = arith.constant 0 : index
      %c0_20 = arith.constant 0 : index
      %c0_21 = arith.constant 0 : index
      %24 = vector.load %arg7[%c0_19, %c0_20, %c0_21] : memref<1x8x16xf32, #tpu.memory_space<vmem>>, vector<1x8x16xf32>
      %25 = vector.shape_cast %24 : vector<1x8x16xf32> to vector<8x16xf32>
      %26 = vector.shape_cast %23 : vector<8x16xf32> to vector<1x8x16xf32>
      tpu.vector_store %arg7[%c0_19, %c0_20, %c0_21], %26 {strides = array<i32>} : memref<1x8x16xf32, #tpu.memory_space<vmem>>, vector<1x8x16xf32>,
    } else {
    }
    return
  }
  func.func @transform_0(%arg0: i32, %arg1: i32, %arg2: i32, %arg3: i32) -> (i32, i32, i32) {
    %c0_i32 = arith.constant 0 : i32
    return %arg0, %arg1, %arg3 : i32, i32, i32
  }
  func.func @transform_1(%arg0: i32, %arg1: i32, %arg2: i32, %arg3: i32) -> (i32, i32, i32) {
    %c0_i32 = arith.constant 0 : i32
    return %arg0, %arg3, %arg2 : i32, i32, i32
  }
  func.func @transform_2(%arg0: i32, %arg1: i32, %arg2: i32, %arg3: i32) -> (i32, i32, i32) {
    %c0_i32 = arith.constant 0 : i32
    %c0_i32_0 = arith.constant 0 : i32
    return %arg0, %c0_i32, %arg2 : i32, i32, i32
  }
  func.func @transform_3(%arg0: i32, %arg1: i32, %arg2: i32, %arg3: i32) -> (i32, i32, i32) {
    %c0_i32 = arith.constant 0 : i32
    return %arg0, %arg1, %arg2 : i32, i32, i32
  }
}

module attributes {stable_mosaic.version = 11 : i64} {
  func.func @_gmm_bias_act_kernel(%arg0: i32, %arg1: i32, %arg2: i32, %arg3: i32, %arg4: memref<1x8x164xbf16, #tpu.memory_space<vmem>>, %arg5: memref<1x164x4xbf16, #tpu.memory_space<vmem>>, %arg6: memref<1x1x4xf32, #tpu.memory_space<vmem>>, %arg7: memref<1x8x4xf32, #tpu.memory_space<vmem>>, %arg8: memref<8x4xf32, #tpu.memory_space<vmem>>) attributes {dimension_semantics = [#tpu.dimension_semantics<parallel>, #tpu.dimension_semantics<parallel>, #tpu.dimension_semantics<parallel>, #tpu.dimension_semantics<arbitrary>], iteration_bounds = array<i64: 256, 1, 1, 1>, scalar_prefetch = 0 : i64, scratch_operands = 1 : i64, tpu.core_type = #tpu.core_type<tc>, window_params = [{transform_indices = @transform_0, window_bounds = array<i64: 1, 8, 164>}, {transform_indices = @transform_1, window_bounds = array<i64: 1, 164, 4>}, {transform_indices = @transform_2, window_bounds = array<i64: 1, 1, 4>}, {transform_indices = @transform_3, window_bounds = array<i64: 1, 8, 4>}]} {
    %c0_i32 = arith.constant 0 : i32
    %0 = arith.cmpi eq, %arg3, %c0_i32 : i32
    %1 = arith.extui %0 : i1 to i32
    %c0_i32_0 = arith.constant 0 : i32
    %2 = arith.cmpi ne, %1, %c0_i32_0 : i32
    scf.if %2 {
      %cst_12 = arith.constant 0.000000e+00 : f32
      %14 = vector.broadcast %cst_12 : f32 to vector<8x4xf32>
      %c0_13 = arith.constant 0 : index
      %c0_14 = arith.constant 0 : index
      %15 = vector.load %arg8[%c0_13, %c0_14] : memref<8x4xf32, #tpu.memory_space<vmem>>, vector<8x4xf32>
      tpu.vector_store %arg8[%c0_13, %c0_14], %14 {strides = array<i32>} : memref<8x4xf32, #tpu.memory_space<vmem>>, vector<8x4xf32>,
    } else {
    }
    %c0 = arith.constant 0 : index
    %c0_1 = arith.constant 0 : index
    %3 = vector.load %arg8[%c0, %c0_1] : memref<8x4xf32, #tpu.memory_space<vmem>>, vector<8x4xf32>
    %c0_2 = arith.constant 0 : index
    %c0_3 = arith.constant 0 : index
    %c0_4 = arith.constant 0 : index
    %4 = vector.load %arg4[%c0_2, %c0_3, %c0_4] : memref<1x8x164xbf16, #tpu.memory_space<vmem>>, vector<1x8x164xbf16>
    %5 = vector.shape_cast %4 : vector<1x8x164xbf16> to vector<8x164xbf16>
    %c0_5 = arith.constant 0 : index
    %c0_6 = arith.constant 0 : index
    %c0_7 = arith.constant 0 : index
    %6 = vector.load %arg5[%c0_5, %c0_6, %c0_7] : memref<1x164x4xbf16, #tpu.memory_space<vmem>>, vector<1x164x4xbf16>
    %7 = vector.shape_cast %6 : vector<1x164x4xbf16> to vector<164x4xbf16>
    %cst = arith.constant dense<0.000000e+00> : vector<8x4xf32>
    %8 = tpu.matmul %5, %7, %cst {dimension_numbers = #tpu.dot_dimension_numbers<[1], [0], [0], [1], [0, 0, 1, 1], [], []>} : vector<8x164xbf16>, vector<164x4xbf16>, vector<8x4xf32> -> vector<8x4xf32>
    %9 = arith.addf %3, %8 : vector<8x4xf32>
    %c0_8 = arith.constant 0 : index
    %c0_9 = arith.constant 0 : index
    %10 = vector.load %arg8[%c0_8, %c0_9] : memref<8x4xf32, #tpu.memory_space<vmem>>, vector<8x4xf32>
    tpu.vector_store %arg8[%c0_8, %c0_9], %9 {strides = array<i32>} : memref<8x4xf32, #tpu.memory_space<vmem>>, vector<8x4xf32>,
    %c0_i32_10 = arith.constant 0 : i32
    %11 = arith.cmpi eq, %arg3, %c0_i32_10 : i32
    %12 = arith.extui %11 : i1 to i32
    %c0_i32_11 = arith.constant 0 : i32
    %13 = arith.cmpi ne, %12, %c0_i32_11 : i32
    scf.if %13 {
      %c0_12 = arith.constant 0 : index
      %c0_13 = arith.constant 0 : index
      %14 = vector.load %arg8[%c0_12, %c0_13] : memref<8x4xf32, #tpu.memory_space<vmem>>, vector<8x4xf32>
      %c0_14 = arith.constant 0 : index
      %c0_15 = arith.constant 0 : index
      %c0_16 = arith.constant 0 : index
      %15 = vector.load %arg6[%c0_14, %c0_15, %c0_16] : memref<1x1x4xf32, #tpu.memory_space<vmem>>, vector<1x1x4xf32>
      %16 = vector.shape_cast %15 : vector<1x1x4xf32> to vector<1x4xf32>
      %17 = vector.broadcast %16 : vector<1x4xf32> to vector<8x4xf32>
      %18 = arith.addf %14, %17 : vector<8x4xf32>
      %cst_17 = arith.constant 0.000000e+00 : f32
      %19 = vector.broadcast %cst_17 : f32 to vector<8x4xf32>
      %20 = arith.cmpf oge, %18, %19 : vector<8x4xf32>
      %cst_18 = arith.constant 1.000000e-01 : f32
      %21 = vector.broadcast %cst_18 : f32 to vector<8x4xf32>
      %22 = arith.mulf %21, %18 : vector<8x4xf32>
      %23 = arith.select %20, %18, %22 : vector<8x4xi1>, vector<8x4xf32>
      %c0_19 = arith.constant 0 : index
      %c0_20 = arith.constant 0 : index
      %c0_21 = arith.constant 0 : index
      %24 = vector.load %arg7[%c0_19, %c0_20, %c0_21] : memref<1x8x4xf32, #tpu.memory_space<vmem>>, vector<1x8x4xf32>
      %25 = vector.shape_cast %24 : vector<1x8x4xf32> to vector<8x4xf32>
      %26 = vector.shape_cast %23 : vector<8x4xf32> to vector<1x8x4xf32>
      tpu.vector_store %arg7[%c0_19, %c0_20, %c0_21], %26 {strides = array<i32>} : memref<1x8x4xf32, #tpu.memory_space<vmem>>, vector<1x8x4xf32>,
    } else {
    }
    return
  }
  func.func @transform_0(%arg0: i32, %arg1: i32, %arg2: i32, %arg3: i32) -> (i32, i32, i32) {
    %c0_i32 = arith.constant 0 : i32
    return %arg0, %arg1, %arg3 : i32, i32, i32
  }
  func.func @transform_1(%arg0: i32, %arg1: i32, %arg2: i32, %arg3: i32) -> (i32, i32, i32) {
    %c0_i32 = arith.constant 0 : i32
    return %arg0, %arg3, %arg2 : i32, i32, i32
  }
  func.func @transform_2(%arg0: i32, %arg1: i32, %arg2: i32, %arg3: i32) -> (i32, i32, i32) {
    %c0_i32 = arith.constant 0 : i32
    %c0_i32_0 = arith.constant 0 : i32
    return %arg0, %c0_i32, %arg2 : i32, i32, i32
  }
  func.func @transform_3(%arg0: i32, %arg1: i32, %arg2: i32, %arg3: i32) -> (i32, i32, i32) {
    %c0_i32 = arith.constant 0 : i32
    return %arg0, %arg1, %arg2 : i32, i32, i32
  }
}

module attributes {stable_mosaic.version = 11 : i64} {
  func.func @_gmm_bias_act_kernel(%arg0: i32, %arg1: i32, %arg2: i32, %arg3: i32, %arg4: memref<1x8x512xbf16, #tpu.memory_space<vmem>>, %arg5: memref<1x512x256xbf16, #tpu.memory_space<vmem>>, %arg6: memref<1x1x256xf32, #tpu.memory_space<vmem>>, %arg7: memref<1x8x256xf32, #tpu.memory_space<vmem>>, %arg8: memref<8x256xf32, #tpu.memory_space<vmem>>) attributes {dimension_semantics = [#tpu.dimension_semantics<parallel>, #tpu.dimension_semantics<parallel>, #tpu.dimension_semantics<parallel>, #tpu.dimension_semantics<arbitrary>], iteration_bounds = array<i64: 1, 1, 4, 10>, scalar_prefetch = 0 : i64, scratch_operands = 1 : i64, tpu.core_type = #tpu.core_type<tc>, window_params = [{transform_indices = @transform_0, window_bounds = array<i64: 1, 8, 512>}, {transform_indices = @transform_1, window_bounds = array<i64: 1, 512, 256>}, {transform_indices = @transform_2, window_bounds = array<i64: 1, 1, 256>}, {transform_indices = @transform_3, window_bounds = array<i64: 1, 8, 256>}]} {
    %c0_i32 = arith.constant 0 : i32
    %0 = arith.cmpi eq, %arg3, %c0_i32 : i32
    %1 = arith.extui %0 : i1 to i32
    %c0_i32_0 = arith.constant 0 : i32
    %2 = arith.cmpi ne, %1, %c0_i32_0 : i32
    scf.if %2 {
      %cst_11 = arith.constant 0.000000e+00 : f32
      %14 = vector.broadcast %cst_11 : f32 to vector<8x256xf32>
      %c0_12 = arith.constant 0 : index
      %c0_13 = arith.constant 0 : index
      %15 = vector.load %arg8[%c0_12, %c0_13] : memref<8x256xf32, #tpu.memory_space<vmem>>, vector<8x256xf32>
      tpu.vector_store %arg8[%c0_12, %c0_13], %14 {strides = array<i32>} : memref<8x256xf32, #tpu.memory_space<vmem>>, vector<8x256xf32>,
    } else {
    }
    %c0 = arith.constant 0 : index
    %c0_1 = arith.constant 0 : index
    %3 = vector.load %arg8[%c0, %c0_1] : memref<8x256xf32, #tpu.memory_space<vmem>>, vector<8x256xf32>
    %c0_2 = arith.constant 0 : index
    %c0_3 = arith.constant 0 : index
    %c0_4 = arith.constant 0 : index
    %4 = vector.load %arg4[%c0_2, %c0_3, %c0_4] : memref<1x8x512xbf16, #tpu.memory_space<vmem>>, vector<1x8x512xbf16>
    %5 = vector.shape_cast %4 : vector<1x8x512xbf16> to vector<8x512xbf16>
    %c0_5 = arith.constant 0 : index
    %c0_6 = arith.constant 0 : index
    %c0_7 = arith.constant 0 : index
    %6 = vector.load %arg5[%c0_5, %c0_6, %c0_7] : memref<1x512x256xbf16, #tpu.memory_space<vmem>>, vector<1x512x256xbf16>
    %7 = vector.shape_cast %6 : vector<1x512x256xbf16> to vector<512x256xbf16>
    %cst = arith.constant dense<0.000000e+00> : vector<8x256xf32>
    %8 = tpu.matmul %5, %7, %cst {dimension_numbers = #tpu.dot_dimension_numbers<[1], [0], [0], [1], [0, 0, 1, 1], [], []>} : vector<8x512xbf16>, vector<512x256xbf16>, vector<8x256xf32> -> vector<8x256xf32>
    %9 = arith.addf %3, %8 : vector<8x256xf32>
    %c0_8 = arith.constant 0 : index
    %c0_9 = arith.constant 0 : index
    %10 = vector.load %arg8[%c0_8, %c0_9] : memref<8x256xf32, #tpu.memory_space<vmem>>, vector<8x256xf32>
    tpu.vector_store %arg8[%c0_8, %c0_9], %9 {strides = array<i32>} : memref<8x256xf32, #tpu.memory_space<vmem>>, vector<8x256xf32>,
    %c9_i32 = arith.constant 9 : i32
    %11 = arith.cmpi eq, %arg3, %c9_i32 : i32
    %12 = arith.extui %11 : i1 to i32
    %c0_i32_10 = arith.constant 0 : i32
    %13 = arith.cmpi ne, %12, %c0_i32_10 : i32
    scf.if %13 {
      %c0_11 = arith.constant 0 : index
      %c0_12 = arith.constant 0 : index
      %14 = vector.load %arg8[%c0_11, %c0_12] : memref<8x256xf32, #tpu.memory_space<vmem>>, vector<8x256xf32>
      %c0_13 = arith.constant 0 : index
      %c0_14 = arith.constant 0 : index
      %c0_15 = arith.constant 0 : index
      %15 = vector.load %arg6[%c0_13, %c0_14, %c0_15] : memref<1x1x256xf32, #tpu.memory_space<vmem>>, vector<1x1x256xf32>
      %16 = vector.shape_cast %15 : vector<1x1x256xf32> to vector<1x256xf32>
      %17 = vector.broadcast %16 : vector<1x256xf32> to vector<8x256xf32>
      %18 = arith.addf %14, %17 : vector<8x256xf32>
      %cst_16 = arith.constant 0.000000e+00 : f32
      %19 = vector.broadcast %cst_16 : f32 to vector<8x256xf32>
      %20 = arith.cmpf oge, %18, %19 : vector<8x256xf32>
      %cst_17 = arith.constant 1.000000e-01 : f32
      %21 = vector.broadcast %cst_17 : f32 to vector<8x256xf32>
      %22 = arith.mulf %21, %18 : vector<8x256xf32>
      %23 = arith.select %20, %18, %22 : vector<8x256xi1>, vector<8x256xf32>
      %c0_18 = arith.constant 0 : index
      %c0_19 = arith.constant 0 : index
      %c0_20 = arith.constant 0 : index
      %24 = vector.load %arg7[%c0_18, %c0_19, %c0_20] : memref<1x8x256xf32, #tpu.memory_space<vmem>>, vector<1x8x256xf32>
      %25 = vector.shape_cast %24 : vector<1x8x256xf32> to vector<8x256xf32>
      %26 = vector.shape_cast %23 : vector<8x256xf32> to vector<1x8x256xf32>
      tpu.vector_store %arg7[%c0_18, %c0_19, %c0_20], %26 {strides = array<i32>} : memref<1x8x256xf32, #tpu.memory_space<vmem>>, vector<1x8x256xf32>,
    } else {
    }
    return
  }
  func.func @transform_0(%arg0: i32, %arg1: i32, %arg2: i32, %arg3: i32) -> (i32, i32, i32) {
    %c0_i32 = arith.constant 0 : i32
    return %arg0, %arg1, %arg3 : i32, i32, i32
  }
  func.func @transform_1(%arg0: i32, %arg1: i32, %arg2: i32, %arg3: i32) -> (i32, i32, i32) {
    %c0_i32 = arith.constant 0 : i32
    return %arg0, %arg3, %arg2 : i32, i32, i32
  }
  func.func @transform_2(%arg0: i32, %arg1: i32, %arg2: i32, %arg3: i32) -> (i32, i32, i32) {
    %c0_i32 = arith.constant 0 : i32
    %c0_i32_0 = arith.constant 0 : i32
    return %arg0, %c0_i32, %arg2 : i32, i32, i32
  }
  func.func @transform_3(%arg0: i32, %arg1: i32, %arg2: i32, %arg3: i32) -> (i32, i32, i32) {
    %c0_i32 = arith.constant 0 : i32
    return %arg0, %arg1, %arg2 : i32, i32, i32
  }
}

module attributes {stable_mosaic.version = 11 : i64} {
  func.func @_rowdot_bias_kernel(%arg0: i32, %arg1: memref<8x3072xbf16, #tpu.memory_space<vmem>>, %arg2: memref<1x3072xbf16, #tpu.memory_space<vmem>>, %arg3: memref<1x1xf32, #tpu.memory_space<vmem>>, %arg4: memref<8x1xf32, #tpu.memory_space<vmem>>) attributes {dimension_semantics = [#tpu.dimension_semantics<parallel>], iteration_bounds = array<i64: 1>, scalar_prefetch = 0 : i64, scratch_operands = 0 : i64, tpu.core_type = #tpu.core_type<tc>, window_params = [{transform_indices = @transform_0, window_bounds = array<i64: 8, 3072>}, {pipeline_mode = #tpu.pipeline_mode<synchronous>, transform_indices = @transform_1, window_bounds = array<i64: 1, 3072>}, {pipeline_mode = #tpu.pipeline_mode<synchronous>, transform_indices = @transform_2, window_bounds = array<i64: 1, 1>}, {transform_indices = @transform_3, window_bounds = array<i64: 8, 1>}]} {
    %c0 = arith.constant 0 : index
    %c0_0 = arith.constant 0 : index
    %0 = vector.load %arg1[%c0, %c0_0] : memref<8x3072xbf16, #tpu.memory_space<vmem>>, vector<8x3072xbf16>
    %1 = arith.extf %0 : vector<8x3072xbf16> to vector<8x3072xf32>
    %c0_1 = arith.constant 0 : index
    %c0_2 = arith.constant 0 : index
    %2 = vector.load %arg2[%c0_1, %c0_2] : memref<1x3072xbf16, #tpu.memory_space<vmem>>, vector<1x3072xbf16>
    %3 = arith.extf %2 : vector<1x3072xbf16> to vector<1x3072xf32>
    %4 = vector.broadcast %3 : vector<1x3072xf32> to vector<8x3072xf32>
    %5 = arith.mulf %1, %4 : vector<8x3072xf32>
    %cst = arith.constant dense<0.000000e+00> : vector<8xf32>
    %6 = vector.multi_reduction <add>, %5, %cst [1] : vector<8x3072xf32> to vector<8xf32>
    %7 = vector.shape_cast %6 : vector<8xf32> to vector<8x1xf32>
    %c0_3 = arith.constant 0 : index
    %c0_4 = arith.constant 0 : index
    %8 = vector.load %arg3[%c0_3, %c0_4] : memref<1x1xf32, #tpu.memory_space<vmem>>, vector<1x1xf32>
    %9 = vector.broadcast %8 : vector<1x1xf32> to vector<8x1xf32>
    %10 = arith.addf %7, %9 : vector<8x1xf32>
    %c0_5 = arith.constant 0 : index
    %c0_6 = arith.constant 0 : index
    %11 = vector.load %arg4[%c0_5, %c0_6] : memref<8x1xf32, #tpu.memory_space<vmem>>, vector<8x1xf32>
    tpu.vector_store %arg4[%c0_5, %c0_6], %10 {strides = array<i32>} : memref<8x1xf32, #tpu.memory_space<vmem>>, vector<8x1xf32>,
    return
  }
  func.func @transform_0(%arg0: i32) -> (i32, i32) {
    %c0_i32 = arith.constant 0 : i32
    %c0_i32_0 = arith.constant 0 : i32
    return %arg0, %c0_i32 : i32, i32
  }
  func.func @transform_1(%arg0: i32) -> (i32, i32) {
    %c0_i32 = arith.constant 0 : i32
    %c0_i32_0 = arith.constant 0 : i32
    %c0_i32_1 = arith.constant 0 : i32
    return %c0_i32, %c0_i32_0 : i32, i32
  }
  func.func @transform_2(%arg0: i32) -> (i32, i32) {
    %c0_i32 = arith.constant 0 : i32
    %c0_i32_0 = arith.constant 0 : i32
    %c0_i32_1 = arith.constant 0 : i32
    return %c0_i32, %c0_i32_0 : i32, i32
  }
  func.func @transform_3(%arg0: i32) -> (i32, i32) {
    %c0_i32 = arith.constant 0 : i32
    %c0_i32_0 = arith.constant 0 : i32
    return %arg0, %c0_i32 : i32, i32
  }
}

</mosaic_0001>

<llo_original>
// kernel: discriminator_s_forward.7
$region0: #{discriminator_s_forward.7}
  #allocation0 [shape = 'u32[]', space=smem, size = 0x4, offset = 0x4, fixed_abs, tag = 'smem constant byte address 0x4 - core index']
  #allocation1 [shape = 'u32[72,128]{1,0:T(1,128)}', space=vmem, size = 0x9000, scoped, tag = 'internal scratch']
  #allocation2 [shape = 'f32[128,16]{1,0:T(8,128)}', space=vmem, size = 0x10000, scoped, tag = 'scratch operand']
  %s0 = inlined_call_operand.vmem [shape: bf16[1,512,15], index: 0, kind: input, shape index: {}]
  %s1 = inlined_call_operand.hbm [shape: bf16[1,15,16], index: 1, kind: input, shape index: {}]
  %s2 = inlined_call_operand.hbm [shape: f32[1,1,16], index: 2, kind: input, shape index: {}]
  %s3 = inlined_call_operand.vmem [shape: f32[1,512,16], index: 3, kind: output, shape index: {}]
  %s4 = sld [smem:[#allocation0]]
  $region61: #{discriminator_s_forward.7} parent=0
    _
  %s6 = ssub.s32 1, %s4
  %s7 = scalar_select 0, %s6, %s4
  $region1: #{discriminator_s_forward.7} parent=0
    #allocation3 [shape = 'u8[4096]{0}', space=vmem, size = 0x1000, scoped, tag = 'input window, operand 1, single buffered']
    #allocation4 [shape = 's32[2]{0}', space=sflag, size = 0x8, scoped, tag = 'scoped memory for discriminator_s_forward.7']
    #allocation5 [shape = 'u8[512]{0}', space=vmem, size = 0x400, scoped, tag = 'input window, operand 2, single buffered']
    #allocation6 [shape = 's32[1]{0}', space=sflag, size = 0x4, scoped, tag = 'scoped memory for discriminator_s_forward.7']
    %8 = vsyncpa [#allocation4], 0
    %9 = vsyncpa [#allocation6], 0
    loop: start=0, step=1, limit=6
    $region2: #{discriminator_s_forward.7} parent=1 // loop_pre_header
      _
    $region3: #{discriminator_s_forward.7} parent=1 // loop_header
      %s11 = sphi 0, %s15
      %p12 = scmp.ge.s32.totalorder %s11, 6
      %s18 = sphi 0, %s44
      %s19 = sphi 0, %s40
      %s20 = sphi 0, %s36
      %s21 = sphi 0, %s32
      %s22 = sphi 0, %s18
      %s23 = sphi 0, %s19
      %s24 = sphi 0, %s20
      %s25 = sphi 0, %s21
      %s26 = sphi 0, %s22
      %s27 = sphi 0, %s23
      %s28 = sphi 0, %s24
      %s29 = sphi 0, %s25
      %s51 = sphi 0, %s53
      %s54 = sphi 0, %s51
      %s55 = sphi 0, %s54
      %s71 = sphi 0, %s55
      %s81 = sphi 0, %s83
      %s84 = sphi 0, %s81
      %s85 = sphi 0, %s84
      %s101 = sphi 0, %s85
      %s109 = sphi 0, %s111
      %s112 = sphi 0, %s109
      %s113 = sphi 0, %s112
      %s129 = sphi 0, %s113
      %s139 = sphi 0, %s141
      %s142 = sphi 0, %s139
      %s143 = sphi 0, %s142
      %s159 = sphi 0, %s143
    $region4: #{discriminator_s_forward.7} parent=1 // loop_header_branch
      %14 = sbr.rel (%p12) target = $region8
    $region5: #{discriminator_s_forward.7} parent=1 // loop_body
      %s16 = ssub.s32 %s11, 1
      %s17 = ssub.s32 %s11, 2
      %s30 = sadd.s32 1, %s21
      %p31 = scmp.ge.s32.totalorder %s30, 1
      %s32 = scalar_select %p31, 0, %s30
      %s33 = sadd.s32 1, %s20
      %s34 = scalar_select %p31, %s33, %s20
      %p35 = scmp.ge.s32.totalorder %s34, 1
      %s36 = scalar_select %p35, 0, %s34
      %s37 = sadd.s32 1, %s19
      %s38 = scalar_select %p35, %s37, %s19
      %p39 = scmp.ge.s32.totalorder %s38, 4
      %s40 = scalar_select %p39, 0, %s38
      %s41 = sadd.s32 1, %s18
      %s42 = scalar_select %p39, %s41, %s18
      %p43 = scmp.ge.s32.totalorder %s42, 1
      %s44 = scalar_select %p43, 0, %s42
      %s45 = ssub.s32 %s18, %s44
      %s46 = ssub.s32 %s19, %s40
      %s47 = sor.u32 %s45, %s46
      %s48 = ssub.s32 %s21, %s32
      %s49 = sor.u32 %s47, %s48
      %p50 = scmp.eq.s32.totalorder %s49, 0
      %s52 = sadd.s32 %s51, 1
      %s53 = scalar_select %p50, %s51, %s52
      %p56 = pneg %p50
      %p57 = scmp.eq.s32.totalorder %s11, 3
      %p58 = por %p56, %p57
      %p59 = scmp.ne.s32.totalorder %s51, %s54
      %p60 = scmp.eq.s32.totalorder %s11, 0
      %p61 = por %p59, %p60
      %p62 = scmp.ne.s32.totalorder %s51, %s54
      %p63 = scmp.eq.s32.totalorder %s16, 3
      %p64 = por %p62, %p63
      %p65 = scmp.ne.s32.totalorder %s54, %s55
      %p66 = scmp.eq.s32.totalorder %s16, 0
      %p67 = por %p65, %p66
      %p68 = scmp.ne.s32.totalorder %s54, %s55
      %p69 = scmp.eq.s32.totalorder %s17, 3
      %p70 = por %p68, %p69
      %p72 = scmp.ne.s32.totalorder %s55, %s71
      %p73 = scmp.eq.s32.totalorder %s17, 0
      %p74 = por %p72, %p73
      %s75 = ssub.s32 %s18, %s44
      %s76 = ssub.s32 %s21, %s32
      %s77 = sor.u32 %s75, %s76
      %s78 = ssub.s32 %s20, %s36
      %s79 = sor.u32 %s77, %s78
      %p80 = scmp.eq.s32.totalorder %s79, 0
      %s82 = sadd.s32 %s81, 1
      %s83 = scalar_select %p80, %s81, %s82
      %p86 = pneg %p80
      %p87 = scmp.eq.s32.totalorder %s11, 3
      %p88 = por %p86, %p87
      %p89 = scmp.ne.s32.totalorder %s81, %s84
      %p90 = scmp.eq.s32.totalorder %s11, 0
      %p91 = por %p89, %p90
      %p92 = scmp.ne.s32.totalorder %s81, %s84
      %p93 = scmp.eq.s32.totalorder %s16, 3
      %p94 = por %p92, %p93
      %p95 = scmp.ne.s32.totalorder %s84, %s85
      %p96 = scmp.eq.s32.totalorder %s16, 0
      %p97 = por %p95, %p96
      %p98 = scmp.ne.s32.totalorder %s84, %s85
      %p99 = scmp.eq.s32.totalorder %s17, 3
      %p100 = por %p98, %p99
      %p102 = scmp.ne.s32.totalorder %s85, %s101
      %p103 = scmp.eq.s32.totalorder %s17, 0
      %p104 = por %p102, %p103
      %s105 = ssub.s32 %s18, %s44
      %s106 = ssub.s32 %s20, %s36
      %s107 = sor.u32 %s105, %s106
      %p108 = scmp.eq.s32.totalorder %s107, 0
      %s110 = sadd.s32 %s109, 1
      %s111 = scalar_select %p108, %s109, %s110
      %p114 = pneg %p108
      %p115 = scmp.eq.s32.totalorder %s11, 3
      %p116 = por %p114, %p115
      %p117 = scmp.ne.s32.totalorder %s109, %s112
      %p118 = scmp.eq.s32.totalorder %s11, 0
      %p119 = por %p117, %p118
      %p120 = scmp.ne.s32.totalorder %s109, %s112
      %p121 = scmp.eq.s32.totalorder %s16, 3
      %p122 = por %p120, %p121
      %p123 = scmp.ne.s32.totalorder %s112, %s113
      %p124 = scmp.eq.s32.totalorder %s16, 0
      %p125 = por %p123, %p124
      %p126 = scmp.ne.s32.totalorder %s112, %s113
      %p127 = scmp.eq.s32.totalorder %s17, 3
      %p128 = por %p126, %p127
      %p130 = scmp.ne.s32.totalorder %s113, %s129
      %p131 = scmp.eq.s32.totalorder %s17, 0
      %p132 = por %p130, %p131
      %s133 = ssub.s32 %s18, %s44
      %s134 = ssub.s32 %s19, %s40
      %s135 = sor.u32 %s133, %s134
      %s136 = ssub.s32 %s20, %s36
      %s137 = sor.u32 %s135, %s136
      %p138 = scmp.eq.s32.totalorder %s137, 0
      %s140 = sadd.s32 %s139, 1
      %s141 = scalar_select %p138, %s139, %s140
      %p144 = pneg %p138
      %p145 = scmp.eq.s32.totalorder %s11, 3
      %p146 = por %p144, %p145
      %p147 = scmp.ne.s32.totalorder %s139, %s142
      %p148 = scmp.eq.s32.totalorder %s11, 0
      %p149 = por %p147, %p148
      %p150 = scmp.ne.s32.totalorder %s139, %s142
      %p151 = scmp.eq.s32.totalorder %s16, 3
      %p152 = por %p150, %p151
      %p153 = scmp.ne.s32.totalorder %s142, %s143
      %p154 = scmp.eq.s32.totalorder %s16, 0
      %p155 = por %p153, %p154
      %p156 = scmp.ne.s32.totalorder %s142, %s143
      %p157 = scmp.eq.s32.totalorder %s17, 3
      %p158 = por %p156, %p157
      %p160 = scmp.ne.s32.totalorder %s143, %s159
      %p161 = scmp.eq.s32.totalorder %s17, 0
      %p162 = por %p160, %p161
      %p163 = scmp.le.s32.totalorder 1, %s11
      %p164 = scmp.lt.s32.totalorder %s11, 5
      %p165 = pnand %p163, %p164
      %p166 = pneg %p165
      // Predicated region
      $region9: #{discriminator_s_forward.7} parent=5 // pred_check
        _
      $region10: #{discriminator_s_forward.7} parent=5 // pred_check_branch
        %168 = sbr.rel (%p165) target = $region12
      $region11: #{discriminator_s_forward.7} parent=5 // pred_region
        %s169 = ssub.s32 %s11, 1
        // Predicated region
        $region13: #{discriminator_s_forward.7} parent=11 // pred_check
          %p170 = pneg %p97
        $region14: #{discriminator_s_forward.7} parent=11 // pred_check_branch
          %172 = sbr.rel (%p170) target = $region16
        $region15: #{discriminator_s_forward.7} parent=11 // pred_region
          %s173 = smul.u32 2, %s25
          %175 = vsyncadd [#allocation4], 0
          %s176 = sadd.s32 %s24, %s173
          %s177 = smul.addr %s22, 2
          %s178 = sadd.s32 %s176, %s177
          %s179 = smul.addr %s178, 4
          %s180 = scalar_lea.hbm %s1, %s179
          %s181 = sshll.u32 %s180, 4
          %s182 = int_to_ptr.hbm [resolvable:$true] %s181
          %s183 = sshll.u32 [#allocation3], 4
          %s184 = int_to_ptr.vmem [resolvable:$true] %s183
          %189 = dma.hbm_to_vmem [thread:$0]  %s182, 128, %s184, [#allocation4], 64, 64, 4
        $region16: #{discriminator_s_forward.7} parent=11 // pred_fallthru
          _
        // Predicated region
        $region17: #{discriminator_s_forward.7} parent=11 // pred_check
          %p190 = pneg %p125
        $region18: #{discriminator_s_forward.7} parent=11 // pred_check_branch
          %192 = sbr.rel (%p190) target = $region20
        $region19: #{discriminator_s_forward.7} parent=11 // pred_region
          %194 = vsyncadd [#allocation6], 0
          %s195 = sadd.s32 %s24, %s22
          %s196 = scalar_lea.hbm %s2, %s195
          %s198 = sshll.u32 %s196, 4
          %s199 = int_to_ptr.hbm [resolvable:$true] %s198
          %s200 = sshll.u32 [#allocation5], 4
          %s201 = int_to_ptr.vmem [resolvable:$true] %s200
          %203 = dma.hbm_to_vmem [thread:$0]  %s199, 16, %s201, [#allocation6]
        $region20: #{discriminator_s_forward.7} parent=11 // pred_fallthru
          _
      $region12: #{discriminator_s_forward.7} parent=5 // pred_fallthru
        _
      %p204 = scmp.lt.s32.totalorder %s11, 4
      // Predicated region
      $region21: #{discriminator_s_forward.7} parent=5 // pred_check
        %p205 = pneg %p204
      $region22: #{discriminator_s_forward.7} parent=5 // pred_check_branch
        %207 = sbr.rel (%p205) target = $region24
      $region23: #{discriminator_s_forward.7} parent=5 // pred_region
        // Predicated region
        $region25: #{discriminator_s_forward.7} parent=23 // pred_check
          %p208 = pneg %p61
        $region26: #{discriminator_s_forward.7} parent=23 // pred_check_branch
          %210 = sbr.rel (%p208) target = $region28
        $region27: #{discriminator_s_forward.7} parent=23 // pred_region
          %s211 = smul.u32 16, %s19
          %p212 = scmp.lt.s32.totalorder %s18, 0
          %s213 = scalar_select %p212, %s18, 0
          %p214 = scmp.lt.s32.totalorder %s211, 63
          %s215 = scalar_select %p214, %s211, 63
          %p216 = scmp.lt.s32.totalorder %s21, 0
          %s217 = scalar_select %p216, %s21, 0
          %s218 = sadd.s32 %s217, %s215
          %s219 = smul.addr %s213, 64
          %s220 = sadd.s32 %s218, %s219
          %s221 = smul.addr %s220, 4
          %s222 = scalar_lea.vmem %s0, %s221
          %s223 = smul.u32 16, %s19
        $region28: #{discriminator_s_forward.7} parent=23 // pred_fallthru
          _
      $region24: #{discriminator_s_forward.7} parent=5 // pred_fallthru
        _
      %p224 = scmp.le.s32.totalorder 1, %s11
      %p225 = scmp.lt.s32.totalorder %s11, 5
      %p226 = pnand %p224, %p225
      %p227 = pneg %p226
      // Predicated region
      $region29: #{discriminator_s_forward.7} parent=5 // pred_check
        _
      $region30: #{discriminator_s_forward.7} parent=5 // pred_check_branch
        %229 = sbr.rel (%p226) target = $region32
      $region31: #{discriminator_s_forward.7} parent=5 // pred_region
        %s230 = ssub.s32 %s11, 1
        // Predicated region
        $region33: #{discriminator_s_forward.7} parent=31 // pred_check
          %p231 = pneg %p97
        $region34: #{discriminator_s_forward.7} parent=31 // pred_check_branch
          %233 = sbr.rel (%p231) target = $region36
        $region35: #{discriminator_s_forward.7} parent=31 // pred_region
          %235 = dma.done [#allocation4], 128
        $region36: #{discriminator_s_forward.7} parent=31 // pred_fallthru
          _
        // Predicated region
        $region37: #{discriminator_s_forward.7} parent=31 // pred_check
          %p236 = pneg %p125
        $region38: #{discriminator_s_forward.7} parent=31 // pred_check_branch
          %238 = sbr.rel (%p236) target = $region40
        $region39: #{discriminator_s_forward.7} parent=31 // pred_region
          %240 = dma.done [#allocation6], 16
        $region40: #{discriminator_s_forward.7} parent=31 // pred_fallthru
          _
        %s241 = smul.u32 16, %s23
        %p242 = scmp.lt.s32.totalorder %s22, 0
        %s243 = scalar_select %p242, %s22, 0
        %p244 = scmp.lt.s32.totalorder %s241, 63
        %s245 = scalar_select %p244, %s241, 63
        %p246 = scmp.lt.s32.totalorder %s25, 0
        %s247 = scalar_select %p246, %s25, 0
        %s248 = sadd.s32 %s247, %s245
        %s249 = smul.addr %s243, 64
        %s250 = sadd.s32 %s248, %s249
        %s251 = smul.addr %s250, 4
        %s252 = scalar_lea.vmem %s0, %s251
        %p253 = pneg %p67
        %p254 = pneg %p64
        %p255 = pneg %p97
        %p256 = pneg %p94
        %p257 = pneg %p125
        %p258 = pneg %p122
        %p259 = pneg %p155
        %p260 = pneg %p152
        %s261 = smul.u32 16, %s23
        %p262 = scmp.lt.s32.totalorder %s22, 0
        %s263 = scalar_select %p262, %s22, 0
        %p264 = scmp.lt.s32.totalorder %s261, 63
        %s265 = scalar_select %p264, %s261, 63
        %p266 = scmp.lt.s32.totalorder %s24, 0
        %s267 = scalar_select %p266, %s24, 0
        %s268 = sadd.s32 %s267, %s265
        %s269 = smul.addr %s263, 64
        %s270 = sadd.s32 %s268, %s269
        %s271 = smul.addr %s270, 8
        %s272 = scalar_lea.vmem %s3, %s271
        %s273 = smul.u32 16, %s23
        %p274 = scmp.lt.s32.totalorder %s22, 0
        %s275 = scalar_select %p274, %s22, 0
        %p276 = scmp.lt.s32.totalorder %s273, 63
        %s277 = scalar_select %p276, %s273, 63
        %p278 = scmp.lt.s32.totalorder %s25, 0
        %s279 = scalar_select %p278, %s25, 0
        %s280 = sadd.s32 %s279, %s277
        %s281 = smul.addr %s275, 64
        %s282 = sadd.s32 %s280, %s281
        %s283 = smul.addr %s282, 4
        %s284 = scalar_lea.vmem %s0, %s283
        %s285 = smul.u32 16, %s23
        %s286 = smul.u32 2, %s25
        %s287 = smul.u32 16, %s23
        %p288 = scmp.lt.s32.totalorder %s22, 0
        %s289 = scalar_select %p288, %s22, 0
        %p290 = scmp.lt.s32.totalorder %s287, 63
        %s291 = scalar_select %p290, %s287, 63
        %p292 = scmp.lt.s32.totalorder %s24, 0
        %s293 = scalar_select %p292, %s24, 0
        %s294 = sadd.s32 %s293, %s291
        %s295 = smul.addr %s289, 64
        %s296 = sadd.s32 %s294, %s295
        %s297 = smul.addr %s296, 8
        %s298 = scalar_lea.vmem %s3, %s297
        %s299 = smul.u32 16, %s23
        %p301 = scmp.eq.s32.totalorder %s25, 0
        // Predicated region
        $region41: #{discriminator_s_forward.7} parent=31 // pred_check
          %p302 = pneg %p301
        $region42: #{discriminator_s_forward.7} parent=31 // pred_check_branch
          %304 = sbr.rel (%p302) target = $region44
        $region43: #{discriminator_s_forward.7} parent=31 // pred_region
          %vm305 = vcmask 130048
          %306 = vst.msk [vmem:[#allocation2] sm:$0xff] %vm305, 0.0
          %307 = vst.msk [vmem:[#allocation2 + $0x8] sm:$0xff] %vm305, 0.0
          %308 = vst.msk [vmem:[#allocation2 + $0x10] sm:$0xff] %vm305, 0.0
          %309 = vst.msk [vmem:[#allocation2 + $0x18] sm:$0xff] %vm305, 0.0
          %310 = vst.msk [vmem:[#allocation2 + $0x20] sm:$0xff] %vm305, 0.0
          %311 = vst.msk [vmem:[#allocation2 + $0x28] sm:$0xff] %vm305, 0.0
          %312 = vst.msk [vmem:[#allocation2 + $0x30] sm:$0xff] %vm305, 0.0
          %313 = vst.msk [vmem:[#allocation2 + $0x38] sm:$0xff] %vm305, 0.0
          %314 = vst.msk [vmem:[#allocation2 + $0x40] sm:$0xff] %vm305, 0.0
          %315 = vst.msk [vmem:[#allocation2 + $0x48] sm:$0xff] %vm305, 0.0
          %316 = vst.msk [vmem:[#allocation2 + $0x50] sm:$0xff] %vm305, 0.0
          %317 = vst.msk [vmem:[#allocation2 + $0x58] sm:$0xff] %vm305, 0.0
          %318 = vst.msk [vmem:[#allocation2 + $0x60] sm:$0xff] %vm305, 0.0
          %319 = vst.msk [vmem:[#allocation2 + $0x68] sm:$0xff] %vm305, 0.0
          %320 = vst.msk [vmem:[#allocation2 + $0x70] sm:$0xff] %vm305, 0.0
          %321 = vst.msk [vmem:[#allocation2 + $0x78] sm:$0xff] %vm305, 0.0
        $region44: #{discriminator_s_forward.7} parent=31 // pred_fallthru
          _
        %v322 = vld [vmem:[#allocation2] sm:$0xff]
        %v323 = vld [vmem:[#allocation2 + $0x8] sm:$0xff]
        %v324 = vld [vmem:[#allocation2 + $0x10] sm:$0xff]
        %v325 = vld [vmem:[#allocation2 + $0x18] sm:$0xff]
        %v326 = vld [vmem:[#allocation2 + $0x20] sm:$0xff]
        %v327 = vld [vmem:[#allocation2 + $0x28] sm:$0xff]
        %v328 = vld [vmem:[#allocation2 + $0x30] sm:$0xff]
        %v329 = vld [vmem:[#allocation2 + $0x38] sm:$0xff]
        %v330 = vld [vmem:[#allocation2 + $0x40] sm:$0xff]
        %v331 = vld [vmem:[#allocation2 + $0x48] sm:$0xff]
        %v332 = vld [vmem:[#allocation2 + $0x50] sm:$0xff]
        %v333 = vld [vmem:[#allocation2 + $0x58] sm:$0xff]
        %v334 = vld [vmem:[#allocation2 + $0x60] sm:$0xff]
        %v335 = vld [vmem:[#allocation2 + $0x68] sm:$0xff]
        %v336 = vld [vmem:[#allocation2 + $0x70] sm:$0xff]
        %v337 = vld [vmem:[#allocation2 + $0x78] sm:$0xff]
        %v338 = vld [vmem:[%s284] sm:$0xf]
        %v339 = vld [vmem:[%s284 + $0x4] sm:$0xf]
        %v340 = vld [vmem:[%s284 + $0x8] sm:$0xf]
        %v341 = vld [vmem:[%s284 + $0xc] sm:$0xf]
        %v342 = vld [vmem:[%s284 + $0x10] sm:$0xf]
        %v343 = vld [vmem:[%s284 + $0x14] sm:$0xf]
        %v344 = vld [vmem:[%s284 + $0x18] sm:$0xf]
        %v345 = vld [vmem:[%s284 + $0x1c] sm:$0xf]
        %v346 = vld [vmem:[%s284 + $0x20] sm:$0xf]
        %v347 = vld [vmem:[%s284 + $0x24] sm:$0xf]
        %v348 = vld [vmem:[%s284 + $0x28] sm:$0xf]
        %v349 = vld [vmem:[%s284 + $0x2c] sm:$0xf]
        %v350 = vld [vmem:[%s284 + $0x30] sm:$0xf]
        %v351 = vld [vmem:[%s284 + $0x34] sm:$0xf]
        %v352 = vld [vmem:[%s284 + $0x38] sm:$0xf]
        %v353 = vld [vmem:[%s284 + $0x3c] sm:$0xf]
        %v354 = vld [vmem:[#allocation3] sm:$0xf]
        %v355 = vld [vmem:[#allocation3 + $0x4] sm:$0xf]
        %v372 = vunpack.c.l.b16 %v338
        %v373 = vunpack.c.l.b16 %v339
        %v374 = vunpack.c.l.b16 %v340
        %v375 = vunpack.c.l.b16 %v341
        %v376 = vunpack.c.l.b16 %v342
        %v377 = vunpack.c.l.b16 %v343
        %v378 = vunpack.c.l.b16 %v344
        %v379 = vunpack.c.l.b16 %v345
        %v380 = vunpack.c.l.b16 %v346
        %v381 = vunpack.c.l.b16 %v347
        %v382 = vunpack.c.l.b16 %v348
        %v383 = vunpack.c.l.b16 %v349
        %v384 = vunpack.c.l.b16 %v350
        %v385 = vunpack.c.l.b16 %v351
        %v386 = vunpack.c.l.b16 %v352
        %v387 = vunpack.c.l.b16 %v353
        %v388 = vpack.c.b16 %v373, %v372
        %v389 = vpack.c.b16 %v375, %v374
        %v390 = vpack.c.b16 %v377, %v376
        %v391 = vpack.c.b16 %v379, %v378
        %v392 = vpack.c.b16 %v381, %v380
        %v393 = vpack.c.b16 %v383, %v382
        %v394 = vpack.c.b16 %v385, %v384
        %v395 = vpack.c.b16 %v387, %v386
        %v398 = vunpack.c.l.b16 %v354
        %v399 = vunpack.c.l.b16 %v355
        %v400 = vpack.c.b16 %v399, %v398
        %vm401 = vcmask 121856
        %v403 = vsel %vm401, %v388, 0
        %v406 = vsel %vm401, %v389, 0
        %v409 = vsel %vm401, %v390, 0
        %v412 = vsel %vm401, %v391, 0
        %v415 = vsel %vm401, %v392, 0
        %v418 = vsel %vm401, %v393, 0
        %v421 = vsel %vm401, %v394, 0
        %v424 = vsel %vm401, %v395, 0
        %vm426 = vcmask 1046528
        %vm427 = vcmask 1047552
        %v428 = vsel %vm426, 4294967295, 65535
        %v429 = vsel %vm427, %v428, 0
        %v431 = vand.u32 %v400, %v429
        %433 = vmatpush.bf16.msra.mxu0 0
        %434 = vmatpush.bf16.msra.mxu0 0
        %435 = vmatpush.bf16.msra.mxu0 0
        %436 = vmatpush.bf16.msra.mxu0 0
        %437 = vmatpush.bf16.msra.mxu0 0
        %438 = vmatpush.bf16.msra.mxu0 0
        %439 = vmatpush.bf16.msra.mxu0 0
        %440 = vmatpush.bf16.msra.mxu0 %v431
        %441 = vmatmul.bf16.gmra.mxu0 %v403
        %v442 = vpop.f32.mrf.mxu0
        %v443 = vadd.f32 0.0, %v442
        %v444 = vpop.f32.mrf.mxu0
        %v445 = vadd.f32 0.0, %v444
        %446 = vmatmul.bf16.gmra.mxu0 %v406
        %v447 = vpop.f32.mrf.mxu0
        %v448 = vadd.f32 0.0, %v447
        %v449 = vpop.f32.mrf.mxu0
        %v450 = vadd.f32 0.0, %v449
        %451 = vmatmul.bf16.gmra.mxu0 %v409
        %v452 = vpop.f32.mrf.mxu0
        %v453 = vadd.f32 0.0, %v452
        %v454 = vpop.f32.mrf.mxu0
        %v455 = vadd.f32 0.0, %v454
        %456 = vmatmul.bf16.gmra.mxu0 %v412
        %v457 = vpop.f32.mrf.mxu0
        %v458 = vadd.f32 0.0, %v457
        %v459 = vpop.f32.mrf.mxu0
        %v460 = vadd.f32 0.0, %v459
        %461 = vmatmul.bf16.gmra.mxu0 %v415
        %v462 = vpop.f32.mrf.mxu0
        %v463 = vadd.f32 0.0, %v462
        %v464 = vpop.f32.mrf.mxu0
        %v465 = vadd.f32 0.0, %v464
        %466 = vmatmul.bf16.gmra.mxu0 %v418
        %v467 = vpop.f32.mrf.mxu0
        %v468 = vadd.f32 0.0, %v467
        %v469 = vpop.f32.mrf.mxu0
        %v470 = vadd.f32 0.0, %v469
        %471 = vmatmul.bf16.gmra.mxu0 %v421
        %v472 = vpop.f32.mrf.mxu0
        %v473 = vadd.f32 0.0, %v472
        %v474 = vpop.f32.mrf.mxu0
        %v475 = vadd.f32 0.0, %v474
        %476 = vmatmul.bf16.gmra.mxu0 %v424
        %v477 = vpop.f32.mrf.mxu0
        %v478 = vadd.f32 0.0, %v477
        %v479 = vpop.f32.mrf.mxu0
        %v480 = vadd.f32 0.0, %v479
        %481 = vdwg.mxu0
        %v482 = vadd.f32 %v322, %v443
        %v483 = vadd.f32 %v323, %v445
        %v484 = vadd.f32 %v324, %v448
        %v485 = vadd.f32 %v325, %v450
        %v486 = vadd.f32 %v326, %v453
        %v487 = vadd.f32 %v327, %v455
        %v488 = vadd.f32 %v328, %v458
        %v489 = vadd.f32 %v329, %v460
        %v490 = vadd.f32 %v330, %v463
        %v491 = vadd.f32 %v331, %v465
        %v492 = vadd.f32 %v332, %v468
        %v493 = vadd.f32 %v333, %v470
        %v494 = vadd.f32 %v334, %v473
        %v495 = vadd.f32 %v335, %v475
        %v496 = vadd.f32 %v336, %v478
        %v497 = vadd.f32 %v337, %v480
        %vm498 = vcmask 130048
        %499 = vst.msk [vmem:[#allocation2] sm:$0xff] %vm498, %v482
        %500 = vst.msk [vmem:[#allocation2 + $0x8] sm:$0xff] %vm498, %v483
        %501 = vst.msk [vmem:[#allocation2 + $0x10] sm:$0xff] %vm498, %v484
        %502 = vst.msk [vmem:[#allocation2 + $0x18] sm:$0xff] %vm498, %v485
        %503 = vst.msk [vmem:[#allocation2 + $0x20] sm:$0xff] %vm498, %v486
        %504 = vst.msk [vmem:[#allocation2 + $0x28] sm:$0xff] %vm498, %v487
        %505 = vst.msk [vmem:[#allocation2 + $0x30] sm:$0xff] %vm498, %v488
        %506 = vst.msk [vmem:[#allocation2 + $0x38] sm:$0xff] %vm498, %v489
        %507 = vst.msk [vmem:[#allocation2 + $0x40] sm:$0xff] %vm498, %v490
        %508 = vst.msk [vmem:[#allocation2 + $0x48] sm:$0xff] %vm498, %v491
        %509 = vst.msk [vmem:[#allocation2 + $0x50] sm:$0xff] %vm498, %v492
        %510 = vst.msk [vmem:[#allocation2 + $0x58] sm:$0xff] %vm498, %v493
        %511 = vst.msk [vmem:[#allocation2 + $0x60] sm:$0xff] %vm498, %v494
        %512 = vst.msk [vmem:[#allocation2 + $0x68] sm:$0xff] %vm498, %v495
        %513 = vst.msk [vmem:[#allocation2 + $0x70] sm:$0xff] %vm498, %v496
        %514 = vst.msk [vmem:[#allocation2 + $0x78] sm:$0xff] %vm498, %v497
        // Predicated region
        $region45: #{discriminator_s_forward.7} parent=31 // pred_check
          %p515 = pneg %p301
        $region46: #{discriminator_s_forward.7} parent=31 // pred_check_branch
          %517 = sbr.rel (%p515) target = $region48
        $region47: #{discriminator_s_forward.7} parent=31 // pred_region
          %v518 = vld [vmem:[#allocation2] sm:$0xff]
          %v519 = vld [vmem:[#allocation2 + $0x8] sm:$0xff]
          %v520 = vld [vmem:[#allocation2 + $0x10] sm:$0xff]
          %v521 = vld [vmem:[#allocation2 + $0x18] sm:$0xff]
          %v522 = vld [vmem:[#allocation2 + $0x20] sm:$0xff]
          %v523 = vld [vmem:[#allocation2 + $0x28] sm:$0xff]
          %v524 = vld [vmem:[#allocation2 + $0x30] sm:$0xff]
          %v525 = vld [vmem:[#allocation2 + $0x38] sm:$0xff]
          %v526 = vld [vmem:[#allocation2 + $0x40] sm:$0xff]
          %v527 = vld [vmem:[#allocation2 + $0x48] sm:$0xff]
          %v528 = vld [vmem:[#allocation2 + $0x50] sm:$0xff]
          %v529 = vld [vmem:[#allocation2 + $0x58] sm:$0xff]
          %v530 = vld [vmem:[#allocation2 + $0x60] sm:$0xff]
          %v531 = vld [vmem:[#allocation2 + $0x68] sm:$0xff]
          %v532 = vld [vmem:[#allocation2 + $0x70] sm:$0xff]
          %v533 = vld [vmem:[#allocation2 + $0x78] sm:$0xff]
          %v534 = vld [vmem:[#allocation5] sm:$0x1]
          %v536 = vperm.slane %v534, 0
          %v538 = vadd.f32 %v518, %v536
          %v539 = vadd.f32 %v519, %v536
          %v540 = vadd.f32 %v520, %v536
          %v541 = vadd.f32 %v521, %v536
          %v542 = vadd.f32 %v522, %v536
          %v543 = vadd.f32 %v523, %v536
          %v544 = vadd.f32 %v524, %v536
          %v545 = vadd.f32 %v525, %v536
          %v546 = vadd.f32 %v526, %v536
          %v547 = vadd.f32 %v527, %v536
          %v548 = vadd.f32 %v528, %v536
          %v549 = vadd.f32 %v529, %v536
          %v550 = vadd.f32 %v530, %v536
          %v551 = vadd.f32 %v531, %v536
          %v552 = vadd.f32 %v532, %v536
          %v553 = vadd.f32 %v533, %v536
          %vm554 = vcmp.ge.f32.partialorder %v538, 0.0
          %vm555 = vcmp.ge.f32.partialorder %v539, 0.0
          %vm556 = vcmp.ge.f32.partialorder %v540, 0.0
          %vm557 = vcmp.ge.f32.partialorder %v541, 0.0
          %vm558 = vcmp.ge.f32.partialorder %v542, 0.0
          %vm559 = vcmp.ge.f32.partialorder %v543, 0.0
          %vm560 = vcmp.ge.f32.partialorder %v544, 0.0
          %vm561 = vcmp.ge.f32.partialorder %v545, 0.0
          %vm562 = vcmp.ge.f32.partialorder %v546, 0.0
          %vm563 = vcmp.ge.f32.partialorder %v547, 0.0
          %vm564 = vcmp.ge.f32.partialorder %v548, 0.0
          %vm565 = vcmp.ge.f32.partialorder %v549, 0.0
          %vm566 = vcmp.ge.f32.partialorder %v550, 0.0
          %vm567 = vcmp.ge.f32.partialorder %v551, 0.0
          %vm568 = vcmp.ge.f32.partialorder %v552, 0.0
          %vm569 = vcmp.ge.f32.partialorder %v553, 0.0
          %v570 = vmul.f32 %v538, 0.1
          %v571 = vmul.f32 %v539, 0.1
          %v572 = vmul.f32 %v540, 0.1
          %v573 = vmul.f32 %v541, 0.1
          %v574 = vmul.f32 %v542, 0.1
          %v575 = vmul.f32 %v543, 0.1
          %v576 = vmul.f32 %v544, 0.1
          %v577 = vmul.f32 %v545, 0.1
          %v578 = vmul.f32 %v546, 0.1
          %v579 = vmul.f32 %v547, 0.1
          %v580 = vmul.f32 %v548, 0.1
          %v581 = vmul.f32 %v549, 0.1
          %v582 = vmul.f32 %v550, 0.1
          %v583 = vmul.f32 %v551, 0.1
          %v584 = vmul.f32 %v552, 0.1
          %v585 = vmul.f32 %v553, 0.1
          %v586 = vsel %vm554, %v538, %v570
          %v587 = vsel %vm555, %v539, %v571
          %v588 = vsel %vm556, %v540, %v572
          %v589 = vsel %vm557, %v541, %v573
          %v590 = vsel %vm558, %v542, %v574
          %v591 = vsel %vm559, %v543, %v575
          %v592 = vsel %vm560, %v544, %v576
          %v593 = vsel %vm561, %v545, %v577
          %v594 = vsel %vm562, %v546, %v578
          %v595 = vsel %vm563, %v547, %v579
          %v596 = vsel %vm564, %v548, %v580
          %v597 = vsel %vm565, %v549, %v581
          %v598 = vsel %vm566, %v550, %v582
          %v599 = vsel %vm567, %v551, %v583
          %v600 = vsel %vm568, %v552, %v584
          %v601 = vsel %vm569, %v553, %v585
          %602 = vst.msk [vmem:[%s298] sm:$0xff] %vm498, %v586
          %603 = vst.msk [vmem:[%s298 + $0x8] sm:$0xff] %vm498, %v587
          %604 = vst.msk [vmem:[%s298 + $0x10] sm:$0xff] %vm498, %v588
          %605 = vst.msk [vmem:[%s298 + $0x18] sm:$0xff] %vm498, %v589
          %606 = vst.msk [vmem:[%s298 + $0x20] sm:$0xff] %vm498, %v590
          %607 = vst.msk [vmem:[%s298 + $0x28] sm:$0xff] %vm498, %v591
          %608 = vst.msk [vmem:[%s298 + $0x30] sm:$0xff] %vm498, %v592
          %609 = vst.msk [vmem:[%s298 + $0x38] sm:$0xff] %vm498, %v593
          %610 = vst.msk [vmem:[%s298 + $0x40] sm:$0xff] %vm498, %v594
          %611 = vst.msk [vmem:[%s298 + $0x48] sm:$0xff] %vm498, %v595
          %612 = vst.msk [vmem:[%s298 + $0x50] sm:$0xff] %vm498, %v596
          %613 = vst.msk [vmem:[%s298 + $0x58] sm:$0xff] %vm498, %v597
          %614 = vst.msk [vmem:[%s298 + $0x60] sm:$0xff] %vm498, %v598
          %615 = vst.msk [vmem:[%s298 + $0x68] sm:$0xff] %vm498, %v599
          %616 = vst.msk [vmem:[%s298 + $0x70] sm:$0xff] %vm498, %v600
          %617 = vst.msk [vmem:[%s298 + $0x78] sm:$0xff] %vm498, %v601
        $region48: #{discriminator_s_forward.7} parent=31 // pred_fallthru
          _
        %s618 = smul.u32 16, %s23
        %p619 = scmp.lt.s32.totalorder %s22, 0
        %s620 = scalar_select %p619, %s22, 0
        %p621 = scmp.lt.s32.totalorder %s618, 63
        %s622 = scalar_select %p621, %s618, 63
        %p623 = scmp.lt.s32.totalorder %s24, 0
        %s624 = scalar_select %p623, %s24, 0
        %s625 = sadd.s32 %s624, %s622
        %s626 = smul.addr %s620, 64
        %s627 = sadd.s32 %s625, %s626
        %s628 = smul.addr %s627, 8
        %s629 = scalar_lea.vmem %s3, %s628
        // Predicated region
        $region49: #{discriminator_s_forward.7} parent=31 // pred_check
          %p630 = pneg %p152
        $region50: #{discriminator_s_forward.7} parent=31 // pred_check_branch
          %632 = sbr.rel (%p630) target = $region52
        $region51: #{discriminator_s_forward.7} parent=31 // pred_region
          %s633 = smul.u32 16, %s23
        $region52: #{discriminator_s_forward.7} parent=31 // pred_fallthru
          _
      $region32: #{discriminator_s_forward.7} parent=5 // pred_fallthru
        _
      %p634 = scmp.le.s32.totalorder 2, %s11
      // Predicated region
      $region53: #{discriminator_s_forward.7} parent=5 // pred_check
        %p635 = pneg %p634
      $region54: #{discriminator_s_forward.7} parent=5 // pred_check_branch
        %637 = sbr.rel (%p635) target = $region56
      $region55: #{discriminator_s_forward.7} parent=5 // pred_region
        %s638 = ssub.s32 %s11, 2
        // Predicated region
        $region57: #{discriminator_s_forward.7} parent=55 // pred_check
          %p639 = pneg %p158
        $region58: #{discriminator_s_forward.7} parent=55 // pred_check_branch
          %641 = sbr.rel (%p639) target = $region60
        $region59: #{discriminator_s_forward.7} parent=55 // pred_region
          %s642 = smul.u32 16, %s27
          %p643 = scmp.lt.s32.totalorder %s26, 0
          %s644 = scalar_select %p643, %s26, 0
          %p645 = scmp.lt.s32.totalorder %s642, 63
          %s646 = scalar_select %p645, %s642, 63
          %p647 = scmp.lt.s32.totalorder %s28, 0
          %s648 = scalar_select %p647, %s28, 0
          %s649 = sadd.s32 %s648, %s646
          %s650 = smul.addr %s644, 64
          %s651 = sadd.s32 %s649, %s650
          %s652 = smul.addr %s651, 8
          %s653 = scalar_lea.vmem %s3, %s652
        $region60: #{discriminator_s_forward.7} parent=55 // pred_fallthru
          _
      $region56: #{discriminator_s_forward.7} parent=5 // pred_fallthru
        _
    $region6: #{discriminator_s_forward.7} parent=1 // loop_footer
      %s15 = sadd.s32 1, %s11
    $region7: #{discriminator_s_forward.7} parent=1 // loop_footer_branch
      %10 = sbr.rel target = $region3
    $region8: #{discriminator_s_forward.7} parent=1 // loop_exit
      _
    %654 = vsyncpa [#allocation4], 1
    %s655 = scalar_lea.sflag [#allocation4], 1
    %656 = vsyncpa %s655, 1
    %657 = vsyncpa [#allocation6], 1

// kernel: discriminator_s_forward.8
$region0: #{discriminator_s_forward.8}
  #allocation0 [shape = 'u32[]', space=smem, size = 0x4, offset = 0x4, fixed_abs, tag = 'smem constant byte address 0x4 - core index']
  #allocation1 [shape = 'u32[72,128]{1,0:T(1,128)}', space=vmem, size = 0x9000, scoped, tag = 'internal scratch']
  #allocation2 [shape = 'f32[128,16]{1,0:T(8,128)}', space=vmem, size = 0x10000, scoped, tag = 'scratch operand']
  %s0 = inlined_call_operand.vmem [shape: bf16[4,128,164], index: 0, kind: input, shape index: {}]
  %s1 = inlined_call_operand.vmem [shape: bf16[4,164,16], index: 1, kind: input, shape index: {}]
  %s2 = inlined_call_operand.hbm [shape: f32[4,1,16], index: 2, kind: input, shape index: {}]
  %s3 = inlined_call_operand.vmem [shape: f32[4,128,16], index: 3, kind: output, shape index: {}]
  %s4 = sld [smem:[#allocation0]]
  $region57: #{discriminator_s_forward.8} parent=0
    _
  %s6 = ssub.s32 1, %s4
  %s7 = scalar_select 0, %s6, %s4
  $region1: #{discriminator_s_forward.8} parent=0
    #allocation3 [shape = 'u8[1024]{0}', space=vmem, size = 0x400, scoped, tag = 'input window, operand 2']
    #allocation4 [shape = 's32[2]{0}', space=sflag, size = 0x8, scoped, tag = 'scoped memory for discriminator_s_forward.8']
    %8 = vsyncpa [#allocation4], 0
    %s9 = scalar_lea.sflag [#allocation4], 1
    %10 = vsyncpa %s9, 0
    loop: start=0, step=1, limit=6
    $region2: #{discriminator_s_forward.8} parent=1 // loop_pre_header
      _
    $region3: #{discriminator_s_forward.8} parent=1 // loop_header
      %s12 = sphi 0, %s16
      %p13 = scmp.ge.s32.totalorder %s12, 6
      %s19 = sphi 0, %s45
      %s20 = sphi 0, %s41
      %s21 = sphi 0, %s37
      %s22 = sphi 0, %s33
      %s23 = sphi 0, %s19
      %s24 = sphi 0, %s20
      %s25 = sphi 0, %s21
      %s26 = sphi 0, %s22
      %s27 = sphi 0, %s23
      %s28 = sphi 0, %s24
      %s29 = sphi 0, %s25
      %s30 = sphi 0, %s26
      %s52 = sphi 0, %s54
      %s55 = sphi 0, %s52
      %s56 = sphi 0, %s55
      %s72 = sphi 0, %s56
      %s82 = sphi 0, %s84
      %s85 = sphi 0, %s82
      %s86 = sphi 0, %s85
      %s102 = sphi 0, %s86
      %s110 = sphi 0, %s112
      %s113 = sphi 0, %s110
      %s114 = sphi 0, %s113
      %s130 = sphi 0, %s114
      %s140 = sphi 0, %s142
      %s143 = sphi 0, %s140
      %s144 = sphi 0, %s143
      %s160 = sphi 0, %s144
    $region4: #{discriminator_s_forward.8} parent=1 // loop_header_branch
      %15 = sbr.rel (%p13) target = $region8
    $region5: #{discriminator_s_forward.8} parent=1 // loop_body
      %s17 = ssub.s32 %s12, 1
      %s18 = ssub.s32 %s12, 2
      %s31 = sadd.s32 1, %s22
      %p32 = scmp.ge.s32.totalorder %s31, 1
      %s33 = scalar_select %p32, 0, %s31
      %s34 = sadd.s32 1, %s21
      %s35 = scalar_select %p32, %s34, %s21
      %p36 = scmp.ge.s32.totalorder %s35, 1
      %s37 = scalar_select %p36, 0, %s35
      %s38 = sadd.s32 1, %s20
      %s39 = scalar_select %p36, %s38, %s20
      %p40 = scmp.ge.s32.totalorder %s39, 1
      %s41 = scalar_select %p40, 0, %s39
      %s42 = sadd.s32 1, %s19
      %s43 = scalar_select %p40, %s42, %s19
      %p44 = scmp.ge.s32.totalorder %s43, 4
      %s45 = scalar_select %p44, 0, %s43
      %s46 = ssub.s32 %s19, %s45
      %s47 = ssub.s32 %s20, %s41
      %s48 = sor.u32 %s46, %s47
      %s49 = ssub.s32 %s22, %s33
      %s50 = sor.u32 %s48, %s49
      %p51 = scmp.eq.s32.totalorder %s50, 0
      %s53 = sadd.s32 %s52, 1
      %s54 = scalar_select %p51, %s52, %s53
      %p57 = pneg %p51
      %p58 = scmp.eq.s32.totalorder %s12, 3
      %p59 = por %p57, %p58
      %p60 = scmp.ne.s32.totalorder %s52, %s55
      %p61 = scmp.eq.s32.totalorder %s12, 0
      %p62 = por %p60, %p61
      %p63 = scmp.ne.s32.totalorder %s52, %s55
      %p64 = scmp.eq.s32.totalorder %s17, 3
      %p65 = por %p63, %p64
      %p66 = scmp.ne.s32.totalorder %s55, %s56
      %p67 = scmp.eq.s32.totalorder %s17, 0
      %p68 = por %p66, %p67
      %p69 = scmp.ne.s32.totalorder %s55, %s56
      %p70 = scmp.eq.s32.totalorder %s18, 3
      %p71 = por %p69, %p70
      %p73 = scmp.ne.s32.totalorder %s56, %s72
      %p74 = scmp.eq.s32.totalorder %s18, 0
      %p75 = por %p73, %p74
      %s76 = ssub.s32 %s19, %s45
      %s77 = ssub.s32 %s22, %s33
      %s78 = sor.u32 %s76, %s77
      %s79 = ssub.s32 %s21, %s37
      %s80 = sor.u32 %s78, %s79
      %p81 = scmp.eq.s32.totalorder %s80, 0
      %s83 = sadd.s32 %s82, 1
      %s84 = scalar_select %p81, %s82, %s83
      %p87 = pneg %p81
      %p88 = scmp.eq.s32.totalorder %s12, 3
      %p89 = por %p87, %p88
      %p90 = scmp.ne.s32.totalorder %s82, %s85
      %p91 = scmp.eq.s32.totalorder %s12, 0
      %p92 = por %p90, %p91
      %p93 = scmp.ne.s32.totalorder %s82, %s85
      %p94 = scmp.eq.s32.totalorder %s17, 3
      %p95 = por %p93, %p94
      %p96 = scmp.ne.s32.totalorder %s85, %s86
      %p97 = scmp.eq.s32.totalorder %s17, 0
      %p98 = por %p96, %p97
      %p99 = scmp.ne.s32.totalorder %s85, %s86
      %p100 = scmp.eq.s32.totalorder %s18, 3
      %p101 = por %p99, %p100
      %p103 = scmp.ne.s32.totalorder %s86, %s102
      %p104 = scmp.eq.s32.totalorder %s18, 0
      %p105 = por %p103, %p104
      %s106 = ssub.s32 %s19, %s45
      %s107 = ssub.s32 %s21, %s37
      %s108 = sor.u32 %s106, %s107
      %p109 = scmp.eq.s32.totalorder %s108, 0
      %s111 = sadd.s32 %s110, 1
      %s112 = scalar_select %p109, %s110, %s111
      %p115 = pneg %p109
      %p116 = scmp.eq.s32.totalorder %s12, 3
      %p117 = por %p115, %p116
      %p118 = scmp.ne.s32.totalorder %s110, %s113
      %p119 = scmp.eq.s32.totalorder %s12, 0
      %p120 = por %p118, %p119
      %p121 = scmp.ne.s32.totalorder %s110, %s113
      %p122 = scmp.eq.s32.totalorder %s17, 3
      %p123 = por %p121, %p122
      %p124 = scmp.ne.s32.totalorder %s113, %s114
      %p125 = scmp.eq.s32.totalorder %s17, 0
      %p126 = por %p124, %p125
      %p127 = scmp.ne.s32.totalorder %s113, %s114
      %p128 = scmp.eq.s32.totalorder %s18, 3
      %p129 = por %p127, %p128
      %p131 = scmp.ne.s32.totalorder %s114, %s130
      %p132 = scmp.eq.s32.totalorder %s18, 0
      %p133 = por %p131, %p132
      %s134 = ssub.s32 %s19, %s45
      %s135 = ssub.s32 %s20, %s41
      %s136 = sor.u32 %s134, %s135
      %s137 = ssub.s32 %s21, %s37
      %s138 = sor.u32 %s136, %s137
      %p139 = scmp.eq.s32.totalorder %s138, 0
      %s141 = sadd.s32 %s140, 1
      %s142 = scalar_select %p139, %s140, %s141
      %p145 = pneg %p139
      %p146 = scmp.eq.s32.totalorder %s12, 3
      %p147 = por %p145, %p146
      %p148 = scmp.ne.s32.totalorder %s140, %s143
      %p149 = scmp.eq.s32.totalorder %s12, 0
      %p150 = por %p148, %p149
      %p151 = scmp.ne.s32.totalorder %s140, %s143
      %p152 = scmp.eq.s32.totalorder %s17, 3
      %p153 = por %p151, %p152
      %p154 = scmp.ne.s32.totalorder %s143, %s144
      %p155 = scmp.eq.s32.totalorder %s17, 0
      %p156 = por %p154, %p155
      %p157 = scmp.ne.s32.totalorder %s143, %s144
      %p158 = scmp.eq.s32.totalorder %s18, 3
      %p159 = por %p157, %p158
      %p161 = scmp.ne.s32.totalorder %s144, %s160
      %p162 = scmp.eq.s32.totalorder %s18, 0
      %p163 = por %p161, %p162
      %p164 = scmp.le.s32.totalorder 1, %s12
      %p165 = scmp.lt.s32.totalorder %s12, 5
      %p166 = pnand %p164, %p165
      %p167 = pneg %p166
      // Predicated region
      $region9: #{discriminator_s_forward.8} parent=5 // pred_check
        _
      $region10: #{discriminator_s_forward.8} parent=5 // pred_check_branch
        %169 = sbr.rel (%p166) target = $region12
      $region11: #{discriminator_s_forward.8} parent=5 // pred_region
        %s170 = ssub.s32 %s12, 1
      $region12: #{discriminator_s_forward.8} parent=5 // pred_fallthru
        _
      %p171 = scmp.lt.s32.totalorder %s12, 4
      // Predicated region
      $region13: #{discriminator_s_forward.8} parent=5 // pred_check
        %p172 = pneg %p171
      $region14: #{discriminator_s_forward.8} parent=5 // pred_check_branch
        %174 = sbr.rel (%p172) target = $region16
      $region15: #{discriminator_s_forward.8} parent=5 // pred_region
        // Predicated region
        $region17: #{discriminator_s_forward.8} parent=15 // pred_check
          %p175 = pneg %p62
        $region18: #{discriminator_s_forward.8} parent=15 // pred_check_branch
          %177 = sbr.rel (%p175) target = $region20
        $region19: #{discriminator_s_forward.8} parent=15 // pred_region
          %s178 = smul.u32 16, %s20
          %s179 = smul.u32 2, %s22
          %p180 = scmp.lt.s32.totalorder %s19, 3
          %s181 = scalar_select %p180, %s19, 3
          %p182 = scmp.lt.s32.totalorder %s178, 15
          %s183 = scalar_select %p182, %s178, 15
          %p184 = scmp.lt.s32.totalorder %s179, 1
          %s185 = scalar_select %p184, %s179, 1
          %s186 = smul.addr %s183, 2
          %s187 = sadd.s32 %s185, %s186
          %s188 = smul.addr %s181, 32
          %s189 = sadd.s32 %s187, %s188
          %s190 = smul.addr %s189, 4
          %s191 = scalar_lea.vmem %s0, %s190
          %s192 = smul.u32 16, %s20
          %s193 = smul.u32 2, %s22
        $region20: #{discriminator_s_forward.8} parent=15 // pred_fallthru
          _
        // Predicated region
        $region21: #{discriminator_s_forward.8} parent=15 // pred_check
          %p194 = pneg %p92
        $region22: #{discriminator_s_forward.8} parent=15 // pred_check_branch
          %196 = sbr.rel (%p194) target = $region24
        $region23: #{discriminator_s_forward.8} parent=15 // pred_region
          %s197 = smul.u32 21, %s22
          %p198 = scmp.lt.s32.totalorder %s19, 3
          %s199 = scalar_select %p198, %s19, 3
          %p200 = scmp.lt.s32.totalorder %s197, 20
          %s201 = scalar_select %p200, %s197, 20
          %p202 = scmp.lt.s32.totalorder %s21, 0
          %s203 = scalar_select %p202, %s21, 0
          %s204 = sadd.s32 %s203, %s201
          %s205 = smul.addr %s199, 21
          %s206 = sadd.s32 %s204, %s205
          %s207 = smul.addr %s206, 4
          %s208 = scalar_lea.vmem %s1, %s207
          %s209 = smul.u32 21, %s22
        $region24: #{discriminator_s_forward.8} parent=15 // pred_fallthru
          _
        // Predicated region
        $region25: #{discriminator_s_forward.8} parent=15 // pred_check
          %p210 = pneg %p120
        $region26: #{discriminator_s_forward.8} parent=15 // pred_check_branch
          %212 = sbr.rel (%p210) target = $region28
        $region27: #{discriminator_s_forward.8} parent=15 // pred_region
          %s213 = sand.u32 %s110, 1
          %s214 = scalar_lea.sflag [#allocation4], %s213
          %s215 = sand.u32 %s110, 1
          %s216 = scalar_lea.vmem [#allocation3], %s215
          %218 = vsyncadd %s214, 0
          %s219 = sadd.s32 %s21, %s19
          %s220 = scalar_lea.hbm %s2, %s219
          %s222 = sshll.u32 %s220, 4
          %s223 = int_to_ptr.hbm [resolvable:$true] %s222
          %s224 = sshll.u32 %s216, 4
          %s225 = int_to_ptr.vmem [resolvable:$true] %s224
          %227 = dma.hbm_to_vmem [thread:$0]  %s223, 16, %s225, %s214
        $region28: #{discriminator_s_forward.8} parent=15 // pred_fallthru
          _
      $region16: #{discriminator_s_forward.8} parent=5 // pred_fallthru
        _
      %p228 = scmp.le.s32.totalorder 1, %s12
      %p229 = scmp.lt.s32.totalorder %s12, 5
      %p230 = pnand %p228, %p229
      %p231 = pneg %p230
      // Predicated region
      $region29: #{discriminator_s_forward.8} parent=5 // pred_check
        _
      $region30: #{discriminator_s_forward.8} parent=5 // pred_check_branch
        %233 = sbr.rel (%p230) target = $region32
      $region31: #{discriminator_s_forward.8} parent=5 // pred_region
        %s234 = ssub.s32 %s12, 1
        %s235 = sand.u32 %s113, 1
        %s236 = scalar_lea.sflag [#allocation4], %s235
        %s237 = sand.u32 %s113, 1
        %s238 = scalar_lea.vmem [#allocation3], %s237
        // Predicated region
        $region33: #{discriminator_s_forward.8} parent=31 // pred_check
          %p239 = pneg %p126
        $region34: #{discriminator_s_forward.8} parent=31 // pred_check_branch
          %241 = sbr.rel (%p239) target = $region36
        $region35: #{discriminator_s_forward.8} parent=31 // pred_region
          %243 = dma.done %s236, 16
        $region36: #{discriminator_s_forward.8} parent=31 // pred_fallthru
          _
        %s244 = smul.u32 16, %s24
        %s245 = smul.u32 2, %s26
        %p246 = scmp.lt.s32.totalorder %s23, 3
        %s247 = scalar_select %p246, %s23, 3
        %p248 = scmp.lt.s32.totalorder %s244, 15
        %s249 = scalar_select %p248, %s244, 15
        %p250 = scmp.lt.s32.totalorder %s245, 1
        %s251 = scalar_select %p250, %s245, 1
        %s252 = smul.addr %s249, 2
        %s253 = sadd.s32 %s251, %s252
        %s254 = smul.addr %s247, 32
        %s255 = sadd.s32 %s253, %s254
        %s256 = smul.addr %s255, 4
        %s257 = scalar_lea.vmem %s0, %s256
        %p258 = pneg %p68
        %p259 = pneg %p65
        %s260 = smul.u32 21, %s26
        %p261 = scmp.lt.s32.totalorder %s23, 3
        %s262 = scalar_select %p261, %s23, 3
        %p263 = scmp.lt.s32.totalorder %s260, 20
        %s264 = scalar_select %p263, %s260, 20
        %p265 = scmp.lt.s32.totalorder %s25, 0
        %s266 = scalar_select %p265, %s25, 0
        %s267 = sadd.s32 %s266, %s264
        %s268 = smul.addr %s262, 21
        %s269 = sadd.s32 %s267, %s268
        %s270 = smul.addr %s269, 4
        %s271 = scalar_lea.vmem %s1, %s270
        %p272 = pneg %p98
        %p273 = pneg %p95
        %s274 = sand.u32 %s113, 1
        %s275 = scalar_lea.sflag [#allocation4], %s274
        %s276 = sand.u32 %s113, 1
        %s277 = scalar_lea.vmem [#allocation3], %s276
        %p278 = pneg %p126
        %p279 = pneg %p123
        %p280 = pneg %p156
        %p281 = pneg %p153
        %s282 = smul.u32 16, %s24
        %p283 = scmp.lt.s32.totalorder %s23, 3
        %s284 = scalar_select %p283, %s23, 3
        %p285 = scmp.lt.s32.totalorder %s282, 15
        %s286 = scalar_select %p285, %s282, 15
        %p287 = scmp.lt.s32.totalorder %s25, 0
        %s288 = scalar_select %p287, %s25, 0
        %s289 = sadd.s32 %s288, %s286
        %s290 = smul.addr %s284, 16
        %s291 = sadd.s32 %s289, %s290
        %s292 = smul.addr %s291, 8
        %s293 = scalar_lea.vmem %s3, %s292
        %s294 = smul.u32 16, %s24
        %s295 = smul.u32 2, %s26
        %p296 = scmp.lt.s32.totalorder %s23, 3
        %s297 = scalar_select %p296, %s23, 3
        %p298 = scmp.lt.s32.totalorder %s294, 15
        %s299 = scalar_select %p298, %s294, 15
        %p300 = scmp.lt.s32.totalorder %s295, 1
        %s301 = scalar_select %p300, %s295, 1
        %s302 = smul.addr %s299, 2
        %s303 = sadd.s32 %s301, %s302
        %s304 = smul.addr %s297, 32
        %s305 = sadd.s32 %s303, %s304
        %s306 = smul.addr %s305, 4
        %s307 = scalar_lea.vmem %s0, %s306
        %s308 = smul.u32 16, %s24
        %s309 = smul.u32 2, %s26
        %s310 = smul.u32 21, %s26
        %p311 = scmp.lt.s32.totalorder %s23, 3
        %s312 = scalar_select %p311, %s23, 3
        %p313 = scmp.lt.s32.totalorder %s310, 20
        %s314 = scalar_select %p313, %s310, 20
        %p315 = scmp.lt.s32.totalorder %s25, 0
        %s316 = scalar_select %p315, %s25, 0
        %s317 = sadd.s32 %s316, %s314
        %s318 = smul.addr %s312, 21
        %s319 = sadd.s32 %s317, %s318
        %s320 = smul.addr %s319, 4
        %s321 = scalar_lea.vmem %s1, %s320
        %s322 = smul.u32 21, %s26
        %s323 = smul.u32 16, %s24
        %p324 = scmp.lt.s32.totalorder %s23, 3
        %s325 = scalar_select %p324, %s23, 3
        %p326 = scmp.lt.s32.totalorder %s323, 15
        %s327 = scalar_select %p326, %s323, 15
        %p328 = scmp.lt.s32.totalorder %s25, 0
        %s329 = scalar_select %p328, %s25, 0
        %s330 = sadd.s32 %s329, %s327
        %s331 = smul.addr %s325, 16
        %s332 = sadd.s32 %s330, %s331
        %s333 = smul.addr %s332, 8
        %s334 = scalar_lea.vmem %s3, %s333
        %s335 = smul.u32 16, %s24
        %p337 = scmp.eq.s32.totalorder %s26, 0
        // Predicated region
        $region37: #{discriminator_s_forward.8} parent=31 // pred_check
          %p338 = pneg %p337
        $region38: #{discriminator_s_forward.8} parent=31 // pred_check_branch
          %340 = sbr.rel (%p338) target = $region40
        $region39: #{discriminator_s_forward.8} parent=31 // pred_region
          %vm341 = vcmask 130048
          %342 = vst.msk [vmem:[#allocation2] sm:$0xff] %vm341, 0.0
          %343 = vst.msk [vmem:[#allocation2 + $0x8] sm:$0xff] %vm341, 0.0
          %344 = vst.msk [vmem:[#allocation2 + $0x10] sm:$0xff] %vm341, 0.0
          %345 = vst.msk [vmem:[#allocation2 + $0x18] sm:$0xff] %vm341, 0.0
          %346 = vst.msk [vmem:[#allocation2 + $0x20] sm:$0xff] %vm341, 0.0
          %347 = vst.msk [vmem:[#allocation2 + $0x28] sm:$0xff] %vm341, 0.0
          %348 = vst.msk [vmem:[#allocation2 + $0x30] sm:$0xff] %vm341, 0.0
          %349 = vst.msk [vmem:[#allocation2 + $0x38] sm:$0xff] %vm341, 0.0
          %350 = vst.msk [vmem:[#allocation2 + $0x40] sm:$0xff] %vm341, 0.0
          %351 = vst.msk [vmem:[#allocation2 + $0x48] sm:$0xff] %vm341, 0.0
          %352 = vst.msk [vmem:[#allocation2 + $0x50] sm:$0xff] %vm341, 0.0
          %353 = vst.msk [vmem:[#allocation2 + $0x58] sm:$0xff] %vm341, 0.0
          %354 = vst.msk [vmem:[#allocation2 + $0x60] sm:$0xff] %vm341, 0.0
          %355 = vst.msk [vmem:[#allocation2 + $0x68] sm:$0xff] %vm341, 0.0
          %356 = vst.msk [vmem:[#allocation2 + $0x70] sm:$0xff] %vm341, 0.0
          %357 = vst.msk [vmem:[#allocation2 + $0x78] sm:$0xff] %vm341, 0.0
        $region40: #{discriminator_s_forward.8} parent=31 // pred_fallthru
          _
        %v358 = vld [vmem:[#allocation2] sm:$0xff]
        %v359 = vld [vmem:[#allocation2 + $0x8] sm:$0xff]
        %v360 = vld [vmem:[#allocation2 + $0x10] sm:$0xff]
        %v361 = vld [vmem:[#allocation2 + $0x18] sm:$0xff]
        %v362 = vld [vmem:[#allocation2 + $0x20] sm:$0xff]
        %v363 = vld [vmem:[#allocation2 + $0x28] sm:$0xff]
        %v364 = vld [vmem:[#allocation2 + $0x30] sm:$0xff]
        %v365 = vld [vmem:[#allocation2 + $0x38] sm:$0xff]
        %v366 = vld [vmem:[#allocation2 + $0x40] sm:$0xff]
        %v367 = vld [vmem:[#allocation2 + $0x48] sm:$0xff]
        %v368 = vld [vmem:[#allocation2 + $0x50] sm:$0xff]
        %v369 = vld [vmem:[#allocation2 + $0x58] sm:$0xff]
        %v370 = vld [vmem:[#allocation2 + $0x60] sm:$0xff]
        %v371 = vld [vmem:[#allocation2 + $0x68] sm:$0xff]
        %v372 = vld [vmem:[#allocation2 + $0x70] sm:$0xff]
        %v373 = vld [vmem:[#allocation2 + $0x78] sm:$0xff]
        %v374 = vld [vmem:[%s307] sm:$0xff]
        %v375 = vld [vmem:[%s307 + $0x8] sm:$0xff]
        %v376 = vld [vmem:[%s307 + $0x10] sm:$0xff]
        %v377 = vld [vmem:[%s307 + $0x18] sm:$0xff]
        %v378 = vld [vmem:[%s307 + $0x20] sm:$0xff]
        %v379 = vld [vmem:[%s307 + $0x28] sm:$0xff]
        %v380 = vld [vmem:[%s307 + $0x30] sm:$0xff]
        %v381 = vld [vmem:[%s307 + $0x38] sm:$0xff]
        %v382 = vld [vmem:[%s307 + $0x40] sm:$0xff]
        %v383 = vld [vmem:[%s307 + $0x48] sm:$0xff]
        %v384 = vld [vmem:[%s307 + $0x50] sm:$0xff]
        %v385 = vld [vmem:[%s307 + $0x58] sm:$0xff]
        %v386 = vld [vmem:[%s307 + $0x60] sm:$0xff]
        %v387 = vld [vmem:[%s307 + $0x68] sm:$0xff]
        %v388 = vld [vmem:[%s307 + $0x70] sm:$0xff]
        %v389 = vld [vmem:[%s307 + $0x78] sm:$0xff]
        %v390 = vld [vmem:[%s321] sm:$0xf]
        %v391 = vld [vmem:[%s321 + $0x4] sm:$0xf]
        %v392 = vld [vmem:[%s321 + $0x8] sm:$0xf]
        %v393 = vld [vmem:[%s321 + $0xc] sm:$0xf]
        %v394 = vld [vmem:[%s321 + $0x10] sm:$0xf]
        %v395 = vld [vmem:[%s321 + $0x14] sm:$0xf]
        %v396 = vld [vmem:[%s321 + $0x18] sm:$0xf]
        %v397 = vld [vmem:[%s321 + $0x1c] sm:$0xf]
        %v398 = vld [vmem:[%s321 + $0x20] sm:$0xf]
        %v399 = vld [vmem:[%s321 + $0x24] sm:$0xf]
        %v400 = vld [vmem:[%s321 + $0x28] sm:$0xf]
        %v401 = vld [vmem:[%s321 + $0x2c] sm:$0xf]
        %v402 = vld [vmem:[%s321 + $0x30] sm:$0xf]
        %v403 = vld [vmem:[%s321 + $0x34] sm:$0xf]
        %v404 = vld [vmem:[%s321 + $0x38] sm:$0xf]
        %v405 = vld [vmem:[%s321 + $0x3c] sm:$0xf]
        %v406 = vld [vmem:[%s321 + $0x40] sm:$0xf]
        %v407 = vld [vmem:[%s321 + $0x44] sm:$0xf]
        %v408 = vld [vmem:[%s321 + $0x48] sm:$0xf]
        %v409 = vld [vmem:[%s321 + $0x4c] sm:$0xf]
        %v410 = vld [vmem:[%s321 + $0x50] sm:$0x3]
        %v427 = vunpack.c.l.b16 %v374
        %v428 = vunpack.c.h.b16 %v374
        %v429 = vunpack.c.l.b16 %v375
        %v430 = vunpack.c.h.b16 %v375
        %v431 = vunpack.c.l.b16 %v376
        %v432 = vunpack.c.h.b16 %v376
        %v433 = vunpack.c.l.b16 %v377
        %v434 = vunpack.c.h.b16 %v377
        %v435 = vunpack.c.l.b16 %v378
        %v436 = vunpack.c.h.b16 %v378
        %v437 = vunpack.c.l.b16 %v379
        %v438 = vunpack.c.h.b16 %v379
        %v439 = vunpack.c.l.b16 %v380
        %v440 = vunpack.c.h.b16 %v380
        %v441 = vunpack.c.l.b16 %v381
        %v442 = vunpack.c.h.b16 %v381
        %v443 = vunpack.c.l.b16 %v382
        %v444 = vunpack.c.h.b16 %v382
        %v445 = vunpack.c.l.b16 %v383
        %v446 = vunpack.c.h.b16 %v383
        %v447 = vunpack.c.l.b16 %v384
        %v448 = vunpack.c.h.b16 %v384
        %v449 = vunpack.c.l.b16 %v385
        %v450 = vunpack.c.h.b16 %v385
        %v451 = vunpack.c.l.b16 %v386
        %v452 = vunpack.c.h.b16 %v386
        %v453 = vunpack.c.l.b16 %v387
        %v454 = vunpack.c.h.b16 %v387
        %v455 = vunpack.c.l.b16 %v388
        %v456 = vunpack.c.h.b16 %v388
        %v457 = vunpack.c.l.b16 %v389
        %v458 = vunpack.c.h.b16 %v389
        %v459 = vpack.c.b16 %v429, %v427
        %v460 = vpack.c.b16 %v430, %v428
        %v461 = vpack.c.b16 %v433, %v431
        %v462 = vpack.c.b16 %v434, %v432
        %v463 = vpack.c.b16 %v437, %v435
        %v464 = vpack.c.b16 %v438, %v436
        %v465 = vpack.c.b16 %v441, %v439
        %v466 = vpack.c.b16 %v442, %v440
        %v467 = vpack.c.b16 %v445, %v443
        %v468 = vpack.c.b16 %v446, %v444
        %v469 = vpack.c.b16 %v449, %v447
        %v470 = vpack.c.b16 %v450, %v448
        %v471 = vpack.c.b16 %v453, %v451
        %v472 = vpack.c.b16 %v454, %v452
        %v473 = vpack.c.b16 %v457, %v455
        %v474 = vpack.c.b16 %v458, %v456
        %v504 = vunpack.c.l.b16 %v390
        %v505 = vunpack.c.l.b16 %v391
        %v506 = vunpack.c.l.b16 %v392
        %v507 = vunpack.c.l.b16 %v393
        %v508 = vunpack.c.l.b16 %v394
        %v509 = vunpack.c.l.b16 %v395
        %v510 = vunpack.c.l.b16 %v396
        %v511 = vunpack.c.l.b16 %v397
        %v512 = vunpack.c.l.b16 %v398
        %v513 = vunpack.c.l.b16 %v399
        %v514 = vunpack.c.l.b16 %v400
        %v515 = vunpack.c.l.b16 %v401
        %v516 = vunpack.c.l.b16 %v402
        %v517 = vunpack.c.l.b16 %v403
        %v518 = vunpack.c.l.b16 %v404
        %v519 = vunpack.c.l.b16 %v405
        %v520 = vunpack.c.l.b16 %v406
        %v521 = vunpack.c.l.b16 %v407
        %v522 = vunpack.c.l.b16 %v408
        %v523 = vunpack.c.l.b16 %v409
        %v524 = vunpack.c.l.b16 %v410
        %v525 = vpack.c.b16 %v505, %v504
        %v526 = vpack.c.b16 %v507, %v506
        %v527 = vpack.c.b16 %v509, %v508
        %v528 = vpack.c.b16 %v511, %v510
        %v529 = vpack.c.b16 %v513, %v512
        %v530 = vpack.c.b16 %v515, %v514
        %v531 = vpack.c.b16 %v517, %v516
        %v532 = vpack.c.b16 %v519, %v518
        %v533 = vpack.c.b16 %v521, %v520
        %v534 = vpack.c.b16 %v523, %v522
        %v535 = vpack.c.b16 %v524, %v524
        %vm546 = vcmask 293888
        %v548 = vsel %vm546, %v460, 0
        %v551 = vsel %vm546, %v462, 0
        %v554 = vsel %vm546, %v464, 0
        %v557 = vsel %vm546, %v466, 0
        %v560 = vsel %vm546, %v468, 0
        %v563 = vsel %vm546, %v470, 0
        %v566 = vsel %vm546, %v472, 0
        %v569 = vsel %vm546, %v474, 0
        %vm571 = vcmask 1041408
        %v573 = vsel %vm571, %v535, 0
        %575 = vmatpush.bf16.msra.mxu0 %v532
        %576 = vmatpush.bf16.msra.mxu0 %v531
        %577 = vmatpush.bf16.msra.mxu0 %v530
        %578 = vmatpush.bf16.msra.mxu0 %v529
        %579 = vmatpush.bf16.msra.mxu0 %v528
        %580 = vmatpush.bf16.msra.mxu0 %v527
        %581 = vmatpush.bf16.msra.mxu0 %v526
        %582 = vmatpush.bf16.msra.mxu0 %v525
        %583 = vmatmul.bf16.gmra.mxu0 %v459
        %v584 = vpop.f32.mrf.mxu0
        %v585 = vadd.f32 0.0, %v584
        %v586 = vpop.f32.mrf.mxu0
        %v587 = vadd.f32 0.0, %v586
        %588 = vmatmul.bf16.gmra.mxu0 %v461
        %v589 = vpop.f32.mrf.mxu0
        %v590 = vadd.f32 0.0, %v589
        %v591 = vpop.f32.mrf.mxu0
        %v592 = vadd.f32 0.0, %v591
        %593 = vmatmul.bf16.gmra.mxu0 %v463
        %v594 = vpop.f32.mrf.mxu0
        %v595 = vadd.f32 0.0, %v594
        %v596 = vpop.f32.mrf.mxu0
        %v597 = vadd.f32 0.0, %v596
        %598 = vmatmul.bf16.gmra.mxu0 %v465
        %v599 = vpop.f32.mrf.mxu0
        %v600 = vadd.f32 0.0, %v599
        %v601 = vpop.f32.mrf.mxu0
        %v602 = vadd.f32 0.0, %v601
        %603 = vmatmul.bf16.gmra.mxu0 %v467
        %v604 = vpop.f32.mrf.mxu0
        %v605 = vadd.f32 0.0, %v604
        %v606 = vpop.f32.mrf.mxu0
        %v607 = vadd.f32 0.0, %v606
        %608 = vmatmul.bf16.gmra.mxu0 %v469
        %v609 = vpop.f32.mrf.mxu0
        %v610 = vadd.f32 0.0, %v609
        %v611 = vpop.f32.mrf.mxu0
        %v612 = vadd.f32 0.0, %v611
        %613 = vmatmul.bf16.gmra.mxu0 %v471
        %v614 = vpop.f32.mrf.mxu0
        %v615 = vadd.f32 0.0, %v614
        %v616 = vpop.f32.mrf.mxu0
        %v617 = vadd.f32 0.0, %v616
        %618 = vmatmul.bf16.gmra.mxu0 %v473
        %v619 = vpop.f32.mrf.mxu0
        %v620 = vadd.f32 0.0, %v619
        %v621 = vpop.f32.mrf.mxu0
        %v622 = vadd.f32 0.0, %v621
        %623 = vdwg.mxu0
        %624 = vmatpush.bf16.msra.mxu0 0
        %625 = vmatpush.bf16.msra.mxu0 0
        %626 = vmatpush.bf16.msra.mxu0 0
        %627 = vmatpush.bf16.msra.mxu0 0
        %628 = vmatpush.bf16.msra.mxu0 0
        %629 = vmatpush.bf16.msra.mxu0 %v573
        %630 = vmatpush.bf16.msra.mxu0 %v534
        %631 = vmatpush.bf16.msra.mxu0 %v533
        %632 = vmatmul.bf16.gmra.mxu0 %v548
        %v633 = vpop.f32.mrf.mxu0
        %v634 = vadd.f32 %v585, %v633
        %v635 = vpop.f32.mrf.mxu0
        %v636 = vadd.f32 %v587, %v635
        %637 = vmatmul.bf16.gmra.mxu0 %v551
        %v638 = vpop.f32.mrf.mxu0
        %v639 = vadd.f32 %v590, %v638
        %v640 = vpop.f32.mrf.mxu0
        %v641 = vadd.f32 %v592, %v640
        %642 = vmatmul.bf16.gmra.mxu0 %v554
        %v643 = vpop.f32.mrf.mxu0
        %v644 = vadd.f32 %v595, %v643
        %v645 = vpop.f32.mrf.mxu0
        %v646 = vadd.f32 %v597, %v645
        %647 = vmatmul.bf16.gmra.mxu0 %v557
        %v648 = vpop.f32.mrf.mxu0
        %v649 = vadd.f32 %v600, %v648
        %v650 = vpop.f32.mrf.mxu0
        %v651 = vadd.f32 %v602, %v650
        %652 = vmatmul.bf16.gmra.mxu0 %v560
        %v653 = vpop.f32.mrf.mxu0
        %v654 = vadd.f32 %v605, %v653
        %v655 = vpop.f32.mrf.mxu0
        %v656 = vadd.f32 %v607, %v655
        %657 = vmatmul.bf16.gmra.mxu0 %v563
        %v658 = vpop.f32.mrf.mxu0
        %v659 = vadd.f32 %v610, %v658
        %v660 = vpop.f32.mrf.mxu0
        %v661 = vadd.f32 %v612, %v660
        %662 = vmatmul.bf16.gmra.mxu0 %v566
        %v663 = vpop.f32.mrf.mxu0
        %v664 = vadd.f32 %v615, %v663
        %v665 = vpop.f32.mrf.mxu0
        %v666 = vadd.f32 %v617, %v665
        %667 = vmatmul.bf16.gmra.mxu0 %v569
        %v668 = vpop.f32.mrf.mxu0
        %v669 = vadd.f32 %v620, %v668
        %v670 = vpop.f32.mrf.mxu0
        %v671 = vadd.f32 %v622, %v670
        %672 = vdwg.mxu0
        %v673 = vadd.f32 %v358, %v634
        %v674 = vadd.f32 %v359, %v636
        %v675 = vadd.f32 %v360, %v639
        %v676 = vadd.f32 %v361, %v641
        %v677 = vadd.f32 %v362, %v644
        %v678 = vadd.f32 %v363, %v646
        %v679 = vadd.f32 %v364, %v649
        %v680 = vadd.f32 %v365, %v651
        %v681 = vadd.f32 %v366, %v654
        %v682 = vadd.f32 %v367, %v656
        %v683 = vadd.f32 %v368, %v659
        %v684 = vadd.f32 %v369, %v661
        %v685 = vadd.f32 %v370, %v664
        %v686 = vadd.f32 %v371, %v666
        %v687 = vadd.f32 %v372, %v669
        %v688 = vadd.f32 %v373, %v671
        %vm689 = vcmask 130048
        %690 = vst.msk [vmem:[#allocation2] sm:$0xff] %vm689, %v673
        %691 = vst.msk [vmem:[#allocation2 + $0x8] sm:$0xff] %vm689, %v674
        %692 = vst.msk [vmem:[#allocation2 + $0x10] sm:$0xff] %vm689, %v675
        %693 = vst.msk [vmem:[#allocation2 + $0x18] sm:$0xff] %vm689, %v676
        %694 = vst.msk [vmem:[#allocation2 + $0x20] sm:$0xff] %vm689, %v677
        %695 = vst.msk [vmem:[#allocation2 + $0x28] sm:$0xff] %vm689, %v678
        %696 = vst.msk [vmem:[#allocation2 + $0x30] sm:$0xff] %vm689, %v679
        %697 = vst.msk [vmem:[#allocation2 + $0x38] sm:$0xff] %vm689, %v680
        %698 = vst.msk [vmem:[#allocation2 + $0x40] sm:$0xff] %vm689, %v681
        %699 = vst.msk [vmem:[#allocation2 + $0x48] sm:$0xff] %vm689, %v682
        %700 = vst.msk [vmem:[#allocation2 + $0x50] sm:$0xff] %vm689, %v683
        %701 = vst.msk [vmem:[#allocation2 + $0x58] sm:$0xff] %vm689, %v684
        %702 = vst.msk [vmem:[#allocation2 + $0x60] sm:$0xff] %vm689, %v685
        %703 = vst.msk [vmem:[#allocation2 + $0x68] sm:$0xff] %vm689, %v686
        %704 = vst.msk [vmem:[#allocation2 + $0x70] sm:$0xff] %vm689, %v687
        %705 = vst.msk [vmem:[#allocation2 + $0x78] sm:$0xff] %vm689, %v688
        // Predicated region
        $region41: #{discriminator_s_forward.8} parent=31 // pred_check
          %p706 = pneg %p337
        $region42: #{discriminator_s_forward.8} parent=31 // pred_check_branch
          %708 = sbr.rel (%p706) target = $region44
        $region43: #{discriminator_s_forward.8} parent=31 // pred_region
          %v709 = vld [vmem:[#allocation2] sm:$0xff]
          %v710 = vld [vmem:[#allocation2 + $0x8] sm:$0xff]
          %v711 = vld [vmem:[#allocation2 + $0x10] sm:$0xff]
          %v712 = vld [vmem:[#allocation2 + $0x18] sm:$0xff]
          %v713 = vld [vmem:[#allocation2 + $0x20] sm:$0xff]
          %v714 = vld [vmem:[#allocation2 + $0x28] sm:$0xff]
          %v715 = vld [vmem:[#allocation2 + $0x30] sm:$0xff]
          %v716 = vld [vmem:[#allocation2 + $0x38] sm:$0xff]
          %v717 = vld [vmem:[#allocation2 + $0x40] sm:$0xff]
          %v718 = vld [vmem:[#allocation2 + $0x48] sm:$0xff]
          %v719 = vld [vmem:[#allocation2 + $0x50] sm:$0xff]
          %v720 = vld [vmem:[#allocation2 + $0x58] sm:$0xff]
          %v721 = vld [vmem:[#allocation2 + $0x60] sm:$0xff]
          %v722 = vld [vmem:[#allocation2 + $0x68] sm:$0xff]
          %v723 = vld [vmem:[#allocation2 + $0x70] sm:$0xff]
          %v724 = vld [vmem:[#allocation2 + $0x78] sm:$0xff]
          %v725 = vld [vmem:[%s238] sm:$0x1]
          %v727 = vperm.slane %v725, 0
          %v729 = vadd.f32 %v709, %v727
          %v730 = vadd.f32 %v710, %v727
          %v731 = vadd.f32 %v711, %v727
          %v732 = vadd.f32 %v712, %v727
          %v733 = vadd.f32 %v713, %v727
          %v734 = vadd.f32 %v714, %v727
          %v735 = vadd.f32 %v715, %v727
          %v736 = vadd.f32 %v716, %v727
          %v737 = vadd.f32 %v717, %v727
          %v738 = vadd.f32 %v718, %v727
          %v739 = vadd.f32 %v719, %v727
          %v740 = vadd.f32 %v720, %v727
          %v741 = vadd.f32 %v721, %v727
          %v742 = vadd.f32 %v722, %v727
          %v743 = vadd.f32 %v723, %v727
          %v744 = vadd.f32 %v724, %v727
          %vm745 = vcmp.ge.f32.partialorder %v729, 0.0
          %vm746 = vcmp.ge.f32.partialorder %v730, 0.0
          %vm747 = vcmp.ge.f32.partialorder %v731, 0.0
          %vm748 = vcmp.ge.f32.partialorder %v732, 0.0
          %vm749 = vcmp.ge.f32.partialorder %v733, 0.0
          %vm750 = vcmp.ge.f32.partialorder %v734, 0.0
          %vm751 = vcmp.ge.f32.partialorder %v735, 0.0
          %vm752 = vcmp.ge.f32.partialorder %v736, 0.0
          %vm753 = vcmp.ge.f32.partialorder %v737, 0.0
          %vm754 = vcmp.ge.f32.partialorder %v738, 0.0
          %vm755 = vcmp.ge.f32.partialorder %v739, 0.0
          %vm756 = vcmp.ge.f32.partialorder %v740, 0.0
          %vm757 = vcmp.ge.f32.partialorder %v741, 0.0
          %vm758 = vcmp.ge.f32.partialorder %v742, 0.0
          %vm759 = vcmp.ge.f32.partialorder %v743, 0.0
          %vm760 = vcmp.ge.f32.partialorder %v744, 0.0
          %v761 = vmul.f32 %v729, 0.1
          %v762 = vmul.f32 %v730, 0.1
          %v763 = vmul.f32 %v731, 0.1
          %v764 = vmul.f32 %v732, 0.1
          %v765 = vmul.f32 %v733, 0.1
          %v766 = vmul.f32 %v734, 0.1
          %v767 = vmul.f32 %v735, 0.1
          %v768 = vmul.f32 %v736, 0.1
          %v769 = vmul.f32 %v737, 0.1
          %v770 = vmul.f32 %v738, 0.1
          %v771 = vmul.f32 %v739, 0.1
          %v772 = vmul.f32 %v740, 0.1
          %v773 = vmul.f32 %v741, 0.1
          %v774 = vmul.f32 %v742, 0.1
          %v775 = vmul.f32 %v743, 0.1
          %v776 = vmul.f32 %v744, 0.1
          %v777 = vsel %vm745, %v729, %v761
          %v778 = vsel %vm746, %v730, %v762
          %v779 = vsel %vm747, %v731, %v763
          %v780 = vsel %vm748, %v732, %v764
          %v781 = vsel %vm749, %v733, %v765
          %v782 = vsel %vm750, %v734, %v766
          %v783 = vsel %vm751, %v735, %v767
          %v784 = vsel %vm752, %v736, %v768
          %v785 = vsel %vm753, %v737, %v769
          %v786 = vsel %vm754, %v738, %v770
          %v787 = vsel %vm755, %v739, %v771
          %v788 = vsel %vm756, %v740, %v772
          %v789 = vsel %vm757, %v741, %v773
          %v790 = vsel %vm758, %v742, %v774
          %v791 = vsel %vm759, %v743, %v775
          %v792 = vsel %vm760, %v744, %v776
          %793 = vst.msk [vmem:[%s334] sm:$0xff] %vm689, %v777
          %794 = vst.msk [vmem:[%s334 + $0x8] sm:$0xff] %vm689, %v778
          %795 = vst.msk [vmem:[%s334 + $0x10] sm:$0xff] %vm689, %v779
          %796 = vst.msk [vmem:[%s334 + $0x18] sm:$0xff] %vm689, %v780
          %797 = vst.msk [vmem:[%s334 + $0x20] sm:$0xff] %vm689, %v781
          %798 = vst.msk [vmem:[%s334 + $0x28] sm:$0xff] %vm689, %v782
          %799 = vst.msk [vmem:[%s334 + $0x30] sm:$0xff] %vm689, %v783
          %800 = vst.msk [vmem:[%s334 + $0x38] sm:$0xff] %vm689, %v784
          %801 = vst.msk [vmem:[%s334 + $0x40] sm:$0xff] %vm689, %v785
          %802 = vst.msk [vmem:[%s334 + $0x48] sm:$0xff] %vm689, %v786
          %803 = vst.msk [vmem:[%s334 + $0x50] sm:$0xff] %vm689, %v787
          %804 = vst.msk [vmem:[%s334 + $0x58] sm:$0xff] %vm689, %v788
          %805 = vst.msk [vmem:[%s334 + $0x60] sm:$0xff] %vm689, %v789
          %806 = vst.msk [vmem:[%s334 + $0x68] sm:$0xff] %vm689, %v790
          %807 = vst.msk [vmem:[%s334 + $0x70] sm:$0xff] %vm689, %v791
          %808 = vst.msk [vmem:[%s334 + $0x78] sm:$0xff] %vm689, %v792
        $region44: #{discriminator_s_forward.8} parent=31 // pred_fallthru
          _
        %s809 = smul.u32 16, %s24
        %p810 = scmp.lt.s32.totalorder %s23, 3
        %s811 = scalar_select %p810, %s23, 3
        %p812 = scmp.lt.s32.totalorder %s809, 15
        %s813 = scalar_select %p812, %s809, 15
        %p814 = scmp.lt.s32.totalorder %s25, 0
        %s815 = scalar_select %p814, %s25, 0
        %s816 = sadd.s32 %s815, %s813
        %s817 = smul.addr %s811, 16
        %s818 = sadd.s32 %s816, %s817
        %s819 = smul.addr %s818, 8
        %s820 = scalar_lea.vmem %s3, %s819
        // Predicated region
        $region45: #{discriminator_s_forward.8} parent=31 // pred_check
          %p821 = pneg %p153
        $region46: #{discriminator_s_forward.8} parent=31 // pred_check_branch
          %823 = sbr.rel (%p821) target = $region48
        $region47: #{discriminator_s_forward.8} parent=31 // pred_region
          %s824 = smul.u32 16, %s24
        $region48: #{discriminator_s_forward.8} parent=31 // pred_fallthru
          _
      $region32: #{discriminator_s_forward.8} parent=5 // pred_fallthru
        _
      %p825 = scmp.le.s32.totalorder 2, %s12
      // Predicated region
      $region49: #{discriminator_s_forward.8} parent=5 // pred_check
        %p826 = pneg %p825
      $region50: #{discriminator_s_forward.8} parent=5 // pred_check_branch
        %828 = sbr.rel (%p826) target = $region52
      $region51: #{discriminator_s_forward.8} parent=5 // pred_region
        %s829 = ssub.s32 %s12, 2
        // Predicated region
        $region53: #{discriminator_s_forward.8} parent=51 // pred_check
          %p830 = pneg %p159
        $region54: #{discriminator_s_forward.8} parent=51 // pred_check_branch
          %832 = sbr.rel (%p830) target = $region56
        $region55: #{discriminator_s_forward.8} parent=51 // pred_region
          %s833 = smul.u32 16, %s28
          %p834 = scmp.lt.s32.totalorder %s27, 3
          %s835 = scalar_select %p834, %s27, 3
          %p836 = scmp.lt.s32.totalorder %s833, 15
          %s837 = scalar_select %p836, %s833, 15
          %p838 = scmp.lt.s32.totalorder %s29, 0
          %s839 = scalar_select %p838, %s29, 0
          %s840 = sadd.s32 %s839, %s837
          %s841 = smul.addr %s835, 16
          %s842 = sadd.s32 %s840, %s841
          %s843 = smul.addr %s842, 8
          %s844 = scalar_lea.vmem %s3, %s843
        $region56: #{discriminator_s_forward.8} parent=51 // pred_fallthru
          _
      $region52: #{discriminator_s_forward.8} parent=5 // pred_fallthru
        _
    $region6: #{discriminator_s_forward.8} parent=1 // loop_footer
      %s16 = sadd.s32 1, %s12
    $region7: #{discriminator_s_forward.8} parent=1 // loop_footer_branch
      %11 = sbr.rel target = $region3
    $region8: #{discriminator_s_forward.8} parent=1 // loop_exit
      _
    %845 = vsyncpa [#allocation4], 1
    %s846 = scalar_lea.sflag [#allocation4], 1
    %847 = vsyncpa %s846, 1

// kernel: discriminator_s_forward.9
$region0: #{discriminator_s_forward.9}
  #allocation0 [shape = 'u32[]', space=smem, size = 0x4, offset = 0x4, fixed_abs, tag = 'smem constant byte address 0x4 - core index']
  #allocation1 [shape = 'u32[72,128]{1,0:T(1,128)}', space=vmem, size = 0x9000, scoped, tag = 'internal scratch']
  #allocation2 [shape = 'f32[32,16]{1,0:T(8,128)}', space=vmem, size = 0x4000, scoped, tag = 'scratch operand']
  %s0 = inlined_call_operand.vmem [shape: bf16[16,32,164], index: 0, kind: input, shape index: {}]
  %s1 = inlined_call_operand.vmem [shape: bf16[16,164,16], index: 1, kind: input, shape index: {}]
  %s2 = inlined_call_operand.vmem [shape: f32[16,1,16], index: 2, kind: input, shape index: {}]
  %s3 = inlined_call_operand.vmem [shape: f32[16,32,16], index: 3, kind: output, shape index: {}]
  %s4 = sld [smem:[#allocation0]]
  $region53: #{discriminator_s_forward.9} parent=0
    _
  %s6 = ssub.s32 1, %s4
  %s7 = scalar_select 0, %s6, %s4
  loop: start=0, step=1, limit=18
  $region2: #{discriminator_s_forward.9} parent=0 // loop_pre_header
    _
  $region3: #{discriminator_s_forward.9} parent=0 // loop_header
    %s9 = sphi 0, %s13
    %p10 = scmp.ge.s32.totalorder %s9, 18
    %s16 = sphi 0, %s42
    %s17 = sphi 0, %s38
    %s18 = sphi 0, %s34
    %s19 = sphi 0, %s30
    %s20 = sphi 0, %s16
    %s21 = sphi 0, %s17
    %s22 = sphi 0, %s18
    %s23 = sphi 0, %s19
    %s24 = sphi 0, %s20
    %s25 = sphi 0, %s21
    %s26 = sphi 0, %s22
    %s27 = sphi 0, %s23
    %s49 = sphi 0, %s51
    %s52 = sphi 0, %s49
    %s53 = sphi 0, %s52
    %s69 = sphi 0, %s53
    %s79 = sphi 0, %s81
    %s82 = sphi 0, %s79
    %s83 = sphi 0, %s82
    %s99 = sphi 0, %s83
    %s107 = sphi 0, %s109
    %s110 = sphi 0, %s107
    %s111 = sphi 0, %s110
    %s127 = sphi 0, %s111
    %s137 = sphi 0, %s139
    %s140 = sphi 0, %s137
    %s141 = sphi 0, %s140
    %s157 = sphi 0, %s141
  $region4: #{discriminator_s_forward.9} parent=0 // loop_header_branch
    %12 = sbr.rel (%p10) target = $region8
  $region5: #{discriminator_s_forward.9} parent=0 // loop_body
    %s14 = ssub.s32 %s9, 1
    %s15 = ssub.s32 %s9, 2
    %s28 = sadd.s32 1, %s19
    %p29 = scmp.ge.s32.totalorder %s28, 1
    %s30 = scalar_select %p29, 0, %s28
    %s31 = sadd.s32 1, %s18
    %s32 = scalar_select %p29, %s31, %s18
    %p33 = scmp.ge.s32.totalorder %s32, 1
    %s34 = scalar_select %p33, 0, %s32
    %s35 = sadd.s32 1, %s17
    %s36 = scalar_select %p33, %s35, %s17
    %p37 = scmp.ge.s32.totalorder %s36, 1
    %s38 = scalar_select %p37, 0, %s36
    %s39 = sadd.s32 1, %s16
    %s40 = scalar_select %p37, %s39, %s16
    %p41 = scmp.ge.s32.totalorder %s40, 16
    %s42 = scalar_select %p41, 0, %s40
    %s43 = ssub.s32 %s16, %s42
    %s44 = ssub.s32 %s17, %s38
    %s45 = sor.u32 %s43, %s44
    %s46 = ssub.s32 %s19, %s30
    %s47 = sor.u32 %s45, %s46
    %p48 = scmp.eq.s32.totalorder %s47, 0
    %s50 = sadd.s32 %s49, 1
    %s51 = scalar_select %p48, %s49, %s50
    %p54 = pneg %p48
    %p55 = scmp.eq.s32.totalorder %s9, 15
    %p56 = por %p54, %p55
    %p57 = scmp.ne.s32.totalorder %s49, %s52
    %p58 = scmp.eq.s32.totalorder %s9, 0
    %p59 = por %p57, %p58
    %p60 = scmp.ne.s32.totalorder %s49, %s52
    %p61 = scmp.eq.s32.totalorder %s14, 15
    %p62 = por %p60, %p61
    %p63 = scmp.ne.s32.totalorder %s52, %s53
    %p64 = scmp.eq.s32.totalorder %s14, 0
    %p65 = por %p63, %p64
    %p66 = scmp.ne.s32.totalorder %s52, %s53
    %p67 = scmp.eq.s32.totalorder %s15, 15
    %p68 = por %p66, %p67
    %p70 = scmp.ne.s32.totalorder %s53, %s69
    %p71 = scmp.eq.s32.totalorder %s15, 0
    %p72 = por %p70, %p71
    %s73 = ssub.s32 %s16, %s42
    %s74 = ssub.s32 %s19, %s30
    %s75 = sor.u32 %s73, %s74
    %s76 = ssub.s32 %s18, %s34
    %s77 = sor.u32 %s75, %s76
    %p78 = scmp.eq.s32.totalorder %s77, 0
    %s80 = sadd.s32 %s79, 1
    %s81 = scalar_select %p78, %s79, %s80
    %p84 = pneg %p78
    %p85 = scmp.eq.s32.totalorder %s9, 15
    %p86 = por %p84, %p85
    %p87 = scmp.ne.s32.totalorder %s79, %s82
    %p88 = scmp.eq.s32.totalorder %s9, 0
    %p89 = por %p87, %p88
    %p90 = scmp.ne.s32.totalorder %s79, %s82
    %p91 = scmp.eq.s32.totalorder %s14, 15
    %p92 = por %p90, %p91
    %p93 = scmp.ne.s32.totalorder %s82, %s83
    %p94 = scmp.eq.s32.totalorder %s14, 0
    %p95 = por %p93, %p94
    %p96 = scmp.ne.s32.totalorder %s82, %s83
    %p97 = scmp.eq.s32.totalorder %s15, 15
    %p98 = por %p96, %p97
    %p100 = scmp.ne.s32.totalorder %s83, %s99
    %p101 = scmp.eq.s32.totalorder %s15, 0
    %p102 = por %p100, %p101
    %s103 = ssub.s32 %s16, %s42
    %s104 = ssub.s32 %s18, %s34
    %s105 = sor.u32 %s103, %s104
    %p106 = scmp.eq.s32.totalorder %s105, 0
    %s108 = sadd.s32 %s107, 1
    %s109 = scalar_select %p106, %s107, %s108
    %p112 = pneg %p106
    %p113 = scmp.eq.s32.totalorder %s9, 15
    %p114 = por %p112, %p113
    %p115 = scmp.ne.s32.totalorder %s107, %s110
    %p116 = scmp.eq.s32.totalorder %s9, 0
    %p117 = por %p115, %p116
    %p118 = scmp.ne.s32.totalorder %s107, %s110
    %p119 = scmp.eq.s32.totalorder %s14, 15
    %p120 = por %p118, %p119
    %p121 = scmp.ne.s32.totalorder %s110, %s111
    %p122 = scmp.eq.s32.totalorder %s14, 0
    %p123 = por %p121, %p122
    %p124 = scmp.ne.s32.totalorder %s110, %s111
    %p125 = scmp.eq.s32.totalorder %s15, 15
    %p126 = por %p124, %p125
    %p128 = scmp.ne.s32.totalorder %s111, %s127
    %p129 = scmp.eq.s32.totalorder %s15, 0
    %p130 = por %p128, %p129
    %s131 = ssub.s32 %s16, %s42
    %s132 = ssub.s32 %s17, %s38
    %s133 = sor.u32 %s131, %s132
    %s134 = ssub.s32 %s18, %s34
    %s135 = sor.u32 %s133, %s134
    %p136 = scmp.eq.s32.totalorder %s135, 0
    %s138 = sadd.s32 %s137, 1
    %s139 = scalar_select %p136, %s137, %s138
    %p142 = pneg %p136
    %p143 = scmp.eq.s32.totalorder %s9, 15
    %p144 = por %p142, %p143
    %p145 = scmp.ne.s32.totalorder %s137, %s140
    %p146 = scmp.eq.s32.totalorder %s9, 0
    %p147 = por %p145, %p146
    %p148 = scmp.ne.s32.totalorder %s137, %s140
    %p149 = scmp.eq.s32.totalorder %s14, 15
    %p150 = por %p148, %p149
    %p151 = scmp.ne.s32.totalorder %s140, %s141
    %p152 = scmp.eq.s32.totalorder %s14, 0
    %p153 = por %p151, %p152
    %p154 = scmp.ne.s32.totalorder %s140, %s141
    %p155 = scmp.eq.s32.totalorder %s15, 15
    %p156 = por %p154, %p155
    %p158 = scmp.ne.s32.totalorder %s141, %s157
    %p159 = scmp.eq.s32.totalorder %s15, 0
    %p160 = por %p158, %p159
    %p161 = scmp.le.s32.totalorder 1, %s9
    %p162 = scmp.lt.s32.totalorder %s9, 17
    %p163 = pnand %p161, %p162
    %p164 = pneg %p163
    // Predicated region
    $region9: #{discriminator_s_forward.9} parent=5 // pred_check
      _
    $region10: #{discriminator_s_forward.9} parent=5 // pred_check_branch
      %166 = sbr.rel (%p163) target = $region12
    $region11: #{discriminator_s_forward.9} parent=5 // pred_region
      %s167 = ssub.s32 %s9, 1
    $region12: #{discriminator_s_forward.9} parent=5 // pred_fallthru
      _
    %p168 = scmp.lt.s32.totalorder %s9, 16
    // Predicated region
    $region13: #{discriminator_s_forward.9} parent=5 // pred_check
      %p169 = pneg %p168
    $region14: #{discriminator_s_forward.9} parent=5 // pred_check_branch
      %171 = sbr.rel (%p169) target = $region16
    $region15: #{discriminator_s_forward.9} parent=5 // pred_region
      // Predicated region
      $region17: #{discriminator_s_forward.9} parent=15 // pred_check
        %p172 = pneg %p59
      $region18: #{discriminator_s_forward.9} parent=15 // pred_check_branch
        %174 = sbr.rel (%p172) target = $region20
      $region19: #{discriminator_s_forward.9} parent=15 // pred_region
        %s175 = smul.u32 4, %s17
        %s176 = smul.u32 2, %s19
        %p177 = scmp.lt.s32.totalorder %s16, 15
        %s178 = scalar_select %p177, %s16, 15
        %p179 = scmp.lt.s32.totalorder %s175, 3
        %s180 = scalar_select %p179, %s175, 3
        %p181 = scmp.lt.s32.totalorder %s176, 1
        %s182 = scalar_select %p181, %s176, 1
        %s183 = smul.addr %s180, 2
        %s184 = sadd.s32 %s182, %s183
        %s185 = smul.addr %s178, 8
        %s186 = sadd.s32 %s184, %s185
        %s187 = smul.addr %s186, 4
        %s188 = scalar_lea.vmem %s0, %s187
        %s189 = smul.u32 4, %s17
        %s190 = smul.u32 2, %s19
      $region20: #{discriminator_s_forward.9} parent=15 // pred_fallthru
        _
      // Predicated region
      $region21: #{discriminator_s_forward.9} parent=15 // pred_check
        %p191 = pneg %p89
      $region22: #{discriminator_s_forward.9} parent=15 // pred_check_branch
        %193 = sbr.rel (%p191) target = $region24
      $region23: #{discriminator_s_forward.9} parent=15 // pred_region
        %s194 = smul.u32 21, %s19
        %p195 = scmp.lt.s32.totalorder %s16, 15
        %s196 = scalar_select %p195, %s16, 15
        %p197 = scmp.lt.s32.totalorder %s194, 20
        %s198 = scalar_select %p197, %s194, 20
        %p199 = scmp.lt.s32.totalorder %s18, 0
        %s200 = scalar_select %p199, %s18, 0
        %s201 = sadd.s32 %s200, %s198
        %s202 = smul.addr %s196, 21
        %s203 = sadd.s32 %s201, %s202
        %s204 = smul.addr %s203, 4
        %s205 = scalar_lea.vmem %s1, %s204
        %s206 = smul.u32 21, %s19
      $region24: #{discriminator_s_forward.9} parent=15 // pred_fallthru
        _
      // Predicated region
      $region25: #{discriminator_s_forward.9} parent=15 // pred_check
        %p207 = pneg %p117
      $region26: #{discriminator_s_forward.9} parent=15 // pred_check_branch
        %209 = sbr.rel (%p207) target = $region28
      $region27: #{discriminator_s_forward.9} parent=15 // pred_region
        %p210 = scmp.lt.s32.totalorder %s16, 15
        %s211 = scalar_select %p210, %s16, 15
        %p212 = scmp.lt.s32.totalorder %s18, 0
        %s213 = scalar_select %p212, %s18, 0
        %s214 = sadd.s32 %s213, %s211
        %s215 = scalar_lea.vmem %s2, %s214
      $region28: #{discriminator_s_forward.9} parent=15 // pred_fallthru
        _
    $region16: #{discriminator_s_forward.9} parent=5 // pred_fallthru
      _
    %p216 = scmp.le.s32.totalorder 1, %s9
    %p217 = scmp.lt.s32.totalorder %s9, 17
    %p218 = pnand %p216, %p217
    %p219 = pneg %p218
    // Predicated region
    $region29: #{discriminator_s_forward.9} parent=5 // pred_check
      _
    $region30: #{discriminator_s_forward.9} parent=5 // pred_check_branch
      %221 = sbr.rel (%p218) target = $region32
    $region31: #{discriminator_s_forward.9} parent=5 // pred_region
      %s222 = ssub.s32 %s9, 1
      %s223 = smul.u32 4, %s21
      %s224 = smul.u32 2, %s23
      %p225 = scmp.lt.s32.totalorder %s20, 15
      %s226 = scalar_select %p225, %s20, 15
      %p227 = scmp.lt.s32.totalorder %s223, 3
      %s228 = scalar_select %p227, %s223, 3
      %p229 = scmp.lt.s32.totalorder %s224, 1
      %s230 = scalar_select %p229, %s224, 1
      %s231 = smul.addr %s228, 2
      %s232 = sadd.s32 %s230, %s231
      %s233 = smul.addr %s226, 8
      %s234 = sadd.s32 %s232, %s233
      %s235 = smul.addr %s234, 4
      %s236 = scalar_lea.vmem %s0, %s235
      %p237 = pneg %p65
      %p238 = pneg %p62
      %s239 = smul.u32 21, %s23
      %p240 = scmp.lt.s32.totalorder %s20, 15
      %s241 = scalar_select %p240, %s20, 15
      %p242 = scmp.lt.s32.totalorder %s239, 20
      %s243 = scalar_select %p242, %s239, 20
      %p244 = scmp.lt.s32.totalorder %s22, 0
      %s245 = scalar_select %p244, %s22, 0
      %s246 = sadd.s32 %s245, %s243
      %s247 = smul.addr %s241, 21
      %s248 = sadd.s32 %s246, %s247
      %s249 = smul.addr %s248, 4
      %s250 = scalar_lea.vmem %s1, %s249
      %p251 = pneg %p95
      %p252 = pneg %p92
      %p253 = scmp.lt.s32.totalorder %s20, 15
      %s254 = scalar_select %p253, %s20, 15
      %p255 = scmp.lt.s32.totalorder %s22, 0
      %s256 = scalar_select %p255, %s22, 0
      %s257 = sadd.s32 %s256, %s254
      %s258 = scalar_lea.vmem %s2, %s257
      %p259 = pneg %p123
      %p260 = pneg %p120
      %p261 = pneg %p153
      %p262 = pneg %p150
      %s263 = smul.u32 4, %s21
      %p264 = scmp.lt.s32.totalorder %s20, 15
      %s265 = scalar_select %p264, %s20, 15
      %p266 = scmp.lt.s32.totalorder %s263, 3
      %s267 = scalar_select %p266, %s263, 3
      %p268 = scmp.lt.s32.totalorder %s22, 0
      %s269 = scalar_select %p268, %s22, 0
      %s270 = sadd.s32 %s269, %s267
      %s271 = smul.addr %s265, 4
      %s272 = sadd.s32 %s270, %s271
      %s273 = smul.addr %s272, 8
      %s274 = scalar_lea.vmem %s3, %s273
      %s275 = smul.u32 4, %s21
      %s276 = smul.u32 2, %s23
      %p277 = scmp.lt.s32.totalorder %s20, 15
      %s278 = scalar_select %p277, %s20, 15
      %p279 = scmp.lt.s32.totalorder %s275, 3
      %s280 = scalar_select %p279, %s275, 3
      %p281 = scmp.lt.s32.totalorder %s276, 1
      %s282 = scalar_select %p281, %s276, 1
      %s283 = smul.addr %s280, 2
      %s284 = sadd.s32 %s282, %s283
      %s285 = smul.addr %s278, 8
      %s286 = sadd.s32 %s284, %s285
      %s287 = smul.addr %s286, 4
      %s288 = scalar_lea.vmem %s0, %s287
      %s289 = smul.u32 4, %s21
      %s290 = smul.u32 2, %s23
      %s291 = smul.u32 21, %s23
      %p292 = scmp.lt.s32.totalorder %s20, 15
      %s293 = scalar_select %p292, %s20, 15
      %p294 = scmp.lt.s32.totalorder %s291, 20
      %s295 = scalar_select %p294, %s291, 20
      %p296 = scmp.lt.s32.totalorder %s22, 0
      %s297 = scalar_select %p296, %s22, 0
      %s298 = sadd.s32 %s297, %s295
      %s299 = smul.addr %s293, 21
      %s300 = sadd.s32 %s298, %s299
      %s301 = smul.addr %s300, 4
      %s302 = scalar_lea.vmem %s1, %s301
      %s303 = smul.u32 21, %s23
      %p304 = scmp.lt.s32.totalorder %s20, 15
      %s305 = scalar_select %p304, %s20, 15
      %p306 = scmp.lt.s32.totalorder %s22, 0
      %s307 = scalar_select %p306, %s22, 0
      %s308 = sadd.s32 %s307, %s305
      %s309 = scalar_lea.vmem %s2, %s308
      %s310 = smul.u32 4, %s21
      %p311 = scmp.lt.s32.totalorder %s20, 15
      %s312 = scalar_select %p311, %s20, 15
      %p313 = scmp.lt.s32.totalorder %s310, 3
      %s314 = scalar_select %p313, %s310, 3
      %p315 = scmp.lt.s32.totalorder %s22, 0
      %s316 = scalar_select %p315, %s22, 0
      %s317 = sadd.s32 %s316, %s314
      %s318 = smul.addr %s312, 4
      %s319 = sadd.s32 %s317, %s318
      %s320 = smul.addr %s319, 8
      %s321 = scalar_lea.vmem %s3, %s320
      %s322 = smul.u32 4, %s21
      %p324 = scmp.eq.s32.totalorder %s23, 0
      // Predicated region
      $region33: #{discriminator_s_forward.9} parent=31 // pred_check
        %p325 = pneg %p324
      $region34: #{discriminator_s_forward.9} parent=31 // pred_check_branch
        %327 = sbr.rel (%p325) target = $region36
      $region35: #{discriminator_s_forward.9} parent=31 // pred_region
        %vm328 = vcmask 130048
        %329 = vst.msk [vmem:[#allocation2] sm:$0xff] %vm328, 0.0
        %330 = vst.msk [vmem:[#allocation2 + $0x8] sm:$0xff] %vm328, 0.0
        %331 = vst.msk [vmem:[#allocation2 + $0x10] sm:$0xff] %vm328, 0.0
        %332 = vst.msk [vmem:[#allocation2 + $0x18] sm:$0xff] %vm328, 0.0
      $region36: #{discriminator_s_forward.9} parent=31 // pred_fallthru
        _
      %v333 = vld [vmem:[#allocation2] sm:$0xff]
      %v334 = vld [vmem:[#allocation2 + $0x8] sm:$0xff]
      %v335 = vld [vmem:[#allocation2 + $0x10] sm:$0xff]
      %v336 = vld [vmem:[#allocation2 + $0x18] sm:$0xff]
      %v337 = vld [vmem:[%s288] sm:$0xff]
      %v338 = vld [vmem:[%s288 + $0x8] sm:$0xff]
      %v339 = vld [vmem:[%s288 + $0x10] sm:$0xff]
      %v340 = vld [vmem:[%s288 + $0x18] sm:$0xff]
      %v341 = vld [vmem:[%s302] sm:$0xf]
      %v342 = vld [vmem:[%s302 + $0x4] sm:$0xf]
      %v343 = vld [vmem:[%s302 + $0x8] sm:$0xf]
      %v344 = vld [vmem:[%s302 + $0xc] sm:$0xf]
      %v345 = vld [vmem:[%s302 + $0x10] sm:$0xf]
      %v346 = vld [vmem:[%s302 + $0x14] sm:$0xf]
      %v347 = vld [vmem:[%s302 + $0x18] sm:$0xf]
      %v348 = vld [vmem:[%s302 + $0x1c] sm:$0xf]
      %v349 = vld [vmem:[%s302 + $0x20] sm:$0xf]
      %v350 = vld [vmem:[%s302 + $0x24] sm:$0xf]
      %v351 = vld [vmem:[%s302 + $0x28] sm:$0xf]
      %v352 = vld [vmem:[%s302 + $0x2c] sm:$0xf]
      %v353 = vld [vmem:[%s302 + $0x30] sm:$0xf]
      %v354 = vld [vmem:[%s302 + $0x34] sm:$0xf]
      %v355 = vld [vmem:[%s302 + $0x38] sm:$0xf]
      %v356 = vld [vmem:[%s302 + $0x3c] sm:$0xf]
      %v357 = vld [vmem:[%s302 + $0x40] sm:$0xf]
      %v358 = vld [vmem:[%s302 + $0x44] sm:$0xf]
      %v359 = vld [vmem:[%s302 + $0x48] sm:$0xf]
      %v360 = vld [vmem:[%s302 + $0x4c] sm:$0xf]
      %v361 = vld [vmem:[%s302 + $0x50] sm:$0x3]
      %v366 = vunpack.c.l.b16 %v337
      %v367 = vunpack.c.h.b16 %v337
      %v368 = vunpack.c.l.b16 %v338
      %v369 = vunpack.c.h.b16 %v338
      %v370 = vunpack.c.l.b16 %v339
      %v371 = vunpack.c.h.b16 %v339
      %v372 = vunpack.c.l.b16 %v340
      %v373 = vunpack.c.h.b16 %v340
      %v374 = vpack.c.b16 %v368, %v366
      %v375 = vpack.c.b16 %v369, %v367
      %v376 = vpack.c.b16 %v372, %v370
      %v377 = vpack.c.b16 %v373, %v371
      %v401 = vunpack.c.l.b16 %v341
      %v402 = vunpack.c.l.b16 %v342
      %v403 = vunpack.c.l.b16 %v343
      %v404 = vunpack.c.l.b16 %v344
      %v405 = vunpack.c.l.b16 %v345
      %v406 = vunpack.c.l.b16 %v346
      %v407 = vunpack.c.l.b16 %v347
      %v408 = vunpack.c.l.b16 %v348
      %v409 = vunpack.c.l.b16 %v349
      %v410 = vunpack.c.l.b16 %v350
      %v411 = vunpack.c.l.b16 %v351
      %v412 = vunpack.c.l.b16 %v352
      %v413 = vunpack.c.l.b16 %v353
      %v414 = vunpack.c.l.b16 %v354
      %v415 = vunpack.c.l.b16 %v355
      %v416 = vunpack.c.l.b16 %v356
      %v417 = vunpack.c.l.b16 %v357
      %v418 = vunpack.c.l.b16 %v358
      %v419 = vunpack.c.l.b16 %v359
      %v420 = vunpack.c.l.b16 %v360
      %v421 = vunpack.c.l.b16 %v361
      %v422 = vpack.c.b16 %v402, %v401
      %v423 = vpack.c.b16 %v404, %v403
      %v424 = vpack.c.b16 %v406, %v405
      %v425 = vpack.c.b16 %v408, %v407
      %v426 = vpack.c.b16 %v410, %v409
      %v427 = vpack.c.b16 %v412, %v411
      %v428 = vpack.c.b16 %v414, %v413
      %v429 = vpack.c.b16 %v416, %v415
      %v430 = vpack.c.b16 %v418, %v417
      %v431 = vpack.c.b16 %v420, %v419
      %v432 = vpack.c.b16 %v421, %v421
      %vm443 = vcmask 293888
      %v445 = vsel %vm443, %v375, 0
      %v448 = vsel %vm443, %v377, 0
      %vm450 = vcmask 1041408
      %v452 = vsel %vm450, %v432, 0
      %454 = vmatpush.bf16.msra.mxu0 %v429
      %455 = vmatpush.bf16.msra.mxu0 %v428
      %456 = vmatpush.bf16.msra.mxu0 %v427
      %457 = vmatpush.bf16.msra.mxu0 %v426
      %458 = vmatpush.bf16.msra.mxu0 %v425
      %459 = vmatpush.bf16.msra.mxu0 %v424
      %460 = vmatpush.bf16.msra.mxu0 %v423
      %461 = vmatpush.bf16.msra.mxu0 %v422
      %462 = vmatmul.bf16.gmra.mxu0 %v374
      %v463 = vpop.f32.mrf.mxu0
      %v464 = vadd.f32 0.0, %v463
      %v465 = vpop.f32.mrf.mxu0
      %v466 = vadd.f32 0.0, %v465
      %467 = vmatmul.bf16.gmra.mxu0 %v376
      %v468 = vpop.f32.mrf.mxu0
      %v469 = vadd.f32 0.0, %v468
      %v470 = vpop.f32.mrf.mxu0
      %v471 = vadd.f32 0.0, %v470
      %472 = vdwg.mxu0
      %473 = vmatpush.bf16.msra.mxu0 0
      %474 = vmatpush.bf16.msra.mxu0 0
      %475 = vmatpush.bf16.msra.mxu0 0
      %476 = vmatpush.bf16.msra.mxu0 0
      %477 = vmatpush.bf16.msra.mxu0 0
      %478 = vmatpush.bf16.msra.mxu0 %v452
      %479 = vmatpush.bf16.msra.mxu0 %v431
      %480 = vmatpush.bf16.msra.mxu0 %v430
      %481 = vmatmul.bf16.gmra.mxu0 %v445
      %v482 = vpop.f32.mrf.mxu0
      %v483 = vadd.f32 %v464, %v482
      %v484 = vpop.f32.mrf.mxu0
      %v485 = vadd.f32 %v466, %v484
      %486 = vmatmul.bf16.gmra.mxu0 %v448
      %v487 = vpop.f32.mrf.mxu0
      %v488 = vadd.f32 %v469, %v487
      %v489 = vpop.f32.mrf.mxu0
      %v490 = vadd.f32 %v471, %v489
      %491 = vdwg.mxu0
      %v492 = vadd.f32 %v333, %v483
      %v493 = vadd.f32 %v334, %v485
      %v494 = vadd.f32 %v335, %v488
      %v495 = vadd.f32 %v336, %v490
      %vm496 = vcmask 130048
      %497 = vst.msk [vmem:[#allocation2] sm:$0xff] %vm496, %v492
      %498 = vst.msk [vmem:[#allocation2 + $0x8] sm:$0xff] %vm496, %v493
      %499 = vst.msk [vmem:[#allocation2 + $0x10] sm:$0xff] %vm496, %v494
      %500 = vst.msk [vmem:[#allocation2 + $0x18] sm:$0xff] %vm496, %v495
      // Predicated region
      $region37: #{discriminator_s_forward.9} parent=31 // pred_check
        %p501 = pneg %p324
      $region38: #{discriminator_s_forward.9} parent=31 // pred_check_branch
        %503 = sbr.rel (%p501) target = $region40
      $region39: #{discriminator_s_forward.9} parent=31 // pred_region
        %v504 = vld [vmem:[#allocation2] sm:$0xff]
        %v505 = vld [vmem:[#allocation2 + $0x8] sm:$0xff]
        %v506 = vld [vmem:[#allocation2 + $0x10] sm:$0xff]
        %v507 = vld [vmem:[#allocation2 + $0x18] sm:$0xff]
        %v508 = vld [vmem:[%s309] sm:$0x1]
        %v510 = vperm.slane %v508, 0
        %v512 = vadd.f32 %v504, %v510
        %v513 = vadd.f32 %v505, %v510
        %v514 = vadd.f32 %v506, %v510
        %v515 = vadd.f32 %v507, %v510
        %vm516 = vcmp.ge.f32.partialorder %v512, 0.0
        %vm517 = vcmp.ge.f32.partialorder %v513, 0.0
        %vm518 = vcmp.ge.f32.partialorder %v514, 0.0
        %vm519 = vcmp.ge.f32.partialorder %v515, 0.0
        %v520 = vmul.f32 %v512, 0.1
        %v521 = vmul.f32 %v513, 0.1
        %v522 = vmul.f32 %v514, 0.1
        %v523 = vmul.f32 %v515, 0.1
        %v524 = vsel %vm516, %v512, %v520
        %v525 = vsel %vm517, %v513, %v521
        %v526 = vsel %vm518, %v514, %v522
        %v527 = vsel %vm519, %v515, %v523
        %528 = vst.msk [vmem:[%s321] sm:$0xff] %vm496, %v524
        %529 = vst.msk [vmem:[%s321 + $0x8] sm:$0xff] %vm496, %v525
        %530 = vst.msk [vmem:[%s321 + $0x10] sm:$0xff] %vm496, %v526
        %531 = vst.msk [vmem:[%s321 + $0x18] sm:$0xff] %vm496, %v527
      $region40: #{discriminator_s_forward.9} parent=31 // pred_fallthru
        _
      %s532 = smul.u32 4, %s21
      %p533 = scmp.lt.s32.totalorder %s20, 15
      %s534 = scalar_select %p533, %s20, 15
      %p535 = scmp.lt.s32.totalorder %s532, 3
      %s536 = scalar_select %p535, %s532, 3
      %p537 = scmp.lt.s32.totalorder %s22, 0
      %s538 = scalar_select %p537, %s22, 0
      %s539 = sadd.s32 %s538, %s536
      %s540 = smul.addr %s534, 4
      %s541 = sadd.s32 %s539, %s540
      %s542 = smul.addr %s541, 8
      %s543 = scalar_lea.vmem %s3, %s542
      // Predicated region
      $region41: #{discriminator_s_forward.9} parent=31 // pred_check
        %p544 = pneg %p150
      $region42: #{discriminator_s_forward.9} parent=31 // pred_check_branch
        %546 = sbr.rel (%p544) target = $region44
      $region43: #{discriminator_s_forward.9} parent=31 // pred_region
        %s547 = smul.u32 4, %s21
      $region44: #{discriminator_s_forward.9} parent=31 // pred_fallthru
        _
    $region32: #{discriminator_s_forward.9} parent=5 // pred_fallthru
      _
    %p548 = scmp.le.s32.totalorder 2, %s9
    // Predicated region
    $region45: #{discriminator_s_forward.9} parent=5 // pred_check
      %p549 = pneg %p548
    $region46: #{discriminator_s_forward.9} parent=5 // pred_check_branch
      %551 = sbr.rel (%p549) target = $region48
    $region47: #{discriminator_s_forward.9} parent=5 // pred_region
      %s552 = ssub.s32 %s9, 2
      // Predicated region
      $region49: #{discriminator_s_forward.9} parent=47 // pred_check
        %p553 = pneg %p156
      $region50: #{discriminator_s_forward.9} parent=47 // pred_check_branch
        %555 = sbr.rel (%p553) target = $region52
      $region51: #{discriminator_s_forward.9} parent=47 // pred_region
        %s556 = smul.u32 4, %s25
        %p557 = scmp.lt.s32.totalorder %s24, 15
        %s558 = scalar_select %p557, %s24, 15
        %p559 = scmp.lt.s32.totalorder %s556, 3
        %s560 = scalar_select %p559, %s556, 3
        %p561 = scmp.lt.s32.totalorder %s26, 0
        %s562 = scalar_select %p561, %s26, 0
        %s563 = sadd.s32 %s562, %s560
        %s564 = smul.addr %s558, 4
        %s565 = sadd.s32 %s563, %s564
        %s566 = smul.addr %s565, 8
        %s567 = scalar_lea.vmem %s3, %s566
      $region52: #{discriminator_s_forward.9} parent=47 // pred_fallthru
        _
    $region48: #{discriminator_s_forward.9} parent=5 // pred_fallthru
      _
  $region6: #{discriminator_s_forward.9} parent=0 // loop_footer
    %s13 = sadd.s32 1, %s9
  $region7: #{discriminator_s_forward.9} parent=0 // loop_footer_branch
    %8 = sbr.rel target = $region3
  $region8: #{discriminator_s_forward.9} parent=0 // loop_exit
    _

// kernel: discriminator_s_forward.10
$region0: #{discriminator_s_forward.10}
  #allocation0 [shape = 'u32[]', space=smem, size = 0x4, offset = 0x4, fixed_abs, tag = 'smem constant byte address 0x4 - core index']
  #allocation1 [shape = 'u32[72,128]{1,0:T(1,128)}', space=vmem, size = 0x9000, scoped, tag = 'internal scratch']
  #allocation2 [shape = 'f32[8,16]{1,0:T(8,128)}', space=vmem, size = 0x1000, scoped, tag = 'scratch operand']
  %s0 = inlined_call_operand.vmem [shape: bf16[64,8,164], index: 0, kind: input, shape index: {}]
  %s1 = inlined_call_operand.vmem [shape: bf16[64,164,16], index: 1, kind: input, shape index: {}]
  %s2 = inlined_call_operand.vmem [shape: f32[64,1,16], index: 2, kind: input, shape index: {}]
  %s3 = inlined_call_operand.vmem [shape: f32[64,8,16], index: 3, kind: output, shape index: {}]
  %s4 = sld [smem:[#allocation0]]
  $region53: #{discriminator_s_forward.10} parent=0
    _
  %s6 = ssub.s32 1, %s4
  %s7 = scalar_select 0, %s6, %s4
  loop: start=0, step=1, limit=66
  $region2: #{discriminator_s_forward.10} parent=0 // loop_pre_header
    _
  $region3: #{discriminator_s_forward.10} parent=0 // loop_header
    %s9 = sphi 0, %s13
    %p10 = scmp.ge.s32.totalorder %s9, 66
    %s16 = sphi 0, %s42
    %s17 = sphi 0, %s38
    %s18 = sphi 0, %s34
    %s19 = sphi 0, %s30
    %s20 = sphi 0, %s16
    %s21 = sphi 0, %s17
    %s22 = sphi 0, %s18
    %s23 = sphi 0, %s19
    %s24 = sphi 0, %s20
    %s25 = sphi 0, %s21
    %s26 = sphi 0, %s22
    %s27 = sphi 0, %s23
    %s49 = sphi 0, %s51
    %s52 = sphi 0, %s49
    %s53 = sphi 0, %s52
    %s69 = sphi 0, %s53
    %s79 = sphi 0, %s81
    %s82 = sphi 0, %s79
    %s83 = sphi 0, %s82
    %s99 = sphi 0, %s83
    %s107 = sphi 0, %s109
    %s110 = sphi 0, %s107
    %s111 = sphi 0, %s110
    %s127 = sphi 0, %s111
    %s137 = sphi 0, %s139
    %s140 = sphi 0, %s137
    %s141 = sphi 0, %s140
    %s157 = sphi 0, %s141
  $region4: #{discriminator_s_forward.10} parent=0 // loop_header_branch
    %12 = sbr.rel (%p10) target = $region8
  $region5: #{discriminator_s_forward.10} parent=0 // loop_body
    %s14 = ssub.s32 %s9, 1
    %s15 = ssub.s32 %s9, 2
    %s28 = sadd.s32 1, %s19
    %p29 = scmp.ge.s32.totalorder %s28, 1
    %s30 = scalar_select %p29, 0, %s28
    %s31 = sadd.s32 1, %s18
    %s32 = scalar_select %p29, %s31, %s18
    %p33 = scmp.ge.s32.totalorder %s32, 1
    %s34 = scalar_select %p33, 0, %s32
    %s35 = sadd.s32 1, %s17
    %s36 = scalar_select %p33, %s35, %s17
    %p37 = scmp.ge.s32.totalorder %s36, 1
    %s38 = scalar_select %p37, 0, %s36
    %s39 = sadd.s32 1, %s16
    %s40 = scalar_select %p37, %s39, %s16
    %p41 = scmp.ge.s32.totalorder %s40, 64
    %s42 = scalar_select %p41, 0, %s40
    %s43 = ssub.s32 %s16, %s42
    %s44 = ssub.s32 %s17, %s38
    %s45 = sor.u32 %s43, %s44
    %s46 = ssub.s32 %s19, %s30
    %s47 = sor.u32 %s45, %s46
    %p48 = scmp.eq.s32.totalorder %s47, 0
    %s50 = sadd.s32 %s49, 1
    %s51 = scalar_select %p48, %s49, %s50
    %p54 = pneg %p48
    %p55 = scmp.eq.s32.totalorder %s9, 63
    %p56 = por %p54, %p55
    %p57 = scmp.ne.s32.totalorder %s49, %s52
    %p58 = scmp.eq.s32.totalorder %s9, 0
    %p59 = por %p57, %p58
    %p60 = scmp.ne.s32.totalorder %s49, %s52
    %p61 = scmp.eq.s32.totalorder %s14, 63
    %p62 = por %p60, %p61
    %p63 = scmp.ne.s32.totalorder %s52, %s53
    %p64 = scmp.eq.s32.totalorder %s14, 0
    %p65 = por %p63, %p64
    %p66 = scmp.ne.s32.totalorder %s52, %s53
    %p67 = scmp.eq.s32.totalorder %s15, 63
    %p68 = por %p66, %p67
    %p70 = scmp.ne.s32.totalorder %s53, %s69
    %p71 = scmp.eq.s32.totalorder %s15, 0
    %p72 = por %p70, %p71
    %s73 = ssub.s32 %s16, %s42
    %s74 = ssub.s32 %s19, %s30
    %s75 = sor.u32 %s73, %s74
    %s76 = ssub.s32 %s18, %s34
    %s77 = sor.u32 %s75, %s76
    %p78 = scmp.eq.s32.totalorder %s77, 0
    %s80 = sadd.s32 %s79, 1
    %s81 = scalar_select %p78, %s79, %s80
    %p84 = pneg %p78
    %p85 = scmp.eq.s32.totalorder %s9, 63
    %p86 = por %p84, %p85
    %p87 = scmp.ne.s32.totalorder %s79, %s82
    %p88 = scmp.eq.s32.totalorder %s9, 0
    %p89 = por %p87, %p88
    %p90 = scmp.ne.s32.totalorder %s79, %s82
    %p91 = scmp.eq.s32.totalorder %s14, 63
    %p92 = por %p90, %p91
    %p93 = scmp.ne.s32.totalorder %s82, %s83
    %p94 = scmp.eq.s32.totalorder %s14, 0
    %p95 = por %p93, %p94
    %p96 = scmp.ne.s32.totalorder %s82, %s83
    %p97 = scmp.eq.s32.totalorder %s15, 63
    %p98 = por %p96, %p97
    %p100 = scmp.ne.s32.totalorder %s83, %s99
    %p101 = scmp.eq.s32.totalorder %s15, 0
    %p102 = por %p100, %p101
    %s103 = ssub.s32 %s16, %s42
    %s104 = ssub.s32 %s18, %s34
    %s105 = sor.u32 %s103, %s104
    %p106 = scmp.eq.s32.totalorder %s105, 0
    %s108 = sadd.s32 %s107, 1
    %s109 = scalar_select %p106, %s107, %s108
    %p112 = pneg %p106
    %p113 = scmp.eq.s32.totalorder %s9, 63
    %p114 = por %p112, %p113
    %p115 = scmp.ne.s32.totalorder %s107, %s110
    %p116 = scmp.eq.s32.totalorder %s9, 0
    %p117 = por %p115, %p116
    %p118 = scmp.ne.s32.totalorder %s107, %s110
    %p119 = scmp.eq.s32.totalorder %s14, 63
    %p120 = por %p118, %p119
    %p121 = scmp.ne.s32.totalorder %s110, %s111
    %p122 = scmp.eq.s32.totalorder %s14, 0
    %p123 = por %p121, %p122
    %p124 = scmp.ne.s32.totalorder %s110, %s111
    %p125 = scmp.eq.s32.totalorder %s15, 63
    %p126 = por %p124, %p125
    %p128 = scmp.ne.s32.totalorder %s111, %s127
    %p129 = scmp.eq.s32.totalorder %s15, 0
    %p130 = por %p128, %p129
    %s131 = ssub.s32 %s16, %s42
    %s132 = ssub.s32 %s17, %s38
    %s133 = sor.u32 %s131, %s132
    %s134 = ssub.s32 %s18, %s34
    %s135 = sor.u32 %s133, %s134
    %p136 = scmp.eq.s32.totalorder %s135, 0
    %s138 = sadd.s32 %s137, 1
    %s139 = scalar_select %p136, %s137, %s138
    %p142 = pneg %p136
    %p143 = scmp.eq.s32.totalorder %s9, 63
    %p144 = por %p142, %p143
    %p145 = scmp.ne.s32.totalorder %s137, %s140
    %p146 = scmp.eq.s32.totalorder %s9, 0
    %p147 = por %p145, %p146
    %p148 = scmp.ne.s32.totalorder %s137, %s140
    %p149 = scmp.eq.s32.totalorder %s14, 63
    %p150 = por %p148, %p149
    %p151 = scmp.ne.s32.totalorder %s140, %s141
    %p152 = scmp.eq.s32.totalorder %s14, 0
    %p153 = por %p151, %p152
    %p154 = scmp.ne.s32.totalorder %s140, %s141
    %p155 = scmp.eq.s32.totalorder %s15, 63
    %p156 = por %p154, %p155
    %p158 = scmp.ne.s32.totalorder %s141, %s157
    %p159 = scmp.eq.s32.totalorder %s15, 0
    %p160 = por %p158, %p159
    %p161 = scmp.le.s32.totalorder 1, %s9
    %p162 = scmp.lt.s32.totalorder %s9, 65
    %p163 = pnand %p161, %p162
    %p164 = pneg %p163
    // Predicated region
    $region9: #{discriminator_s_forward.10} parent=5 // pred_check
      _
    $region10: #{discriminator_s_forward.10} parent=5 // pred_check_branch
      %166 = sbr.rel (%p163) target = $region12
    $region11: #{discriminator_s_forward.10} parent=5 // pred_region
      %s167 = ssub.s32 %s9, 1
    $region12: #{discriminator_s_forward.10} parent=5 // pred_fallthru
      _
    %p168 = scmp.lt.s32.totalorder %s9, 64
    // Predicated region
    $region13: #{discriminator_s_forward.10} parent=5 // pred_check
      %p169 = pneg %p168
    $region14: #{discriminator_s_forward.10} parent=5 // pred_check_branch
      %171 = sbr.rel (%p169) target = $region16
    $region15: #{discriminator_s_forward.10} parent=5 // pred_region
      // Predicated region
      $region17: #{discriminator_s_forward.10} parent=15 // pred_check
        %p172 = pneg %p59
      $region18: #{discriminator_s_forward.10} parent=15 // pred_check_branch
        %174 = sbr.rel (%p172) target = $region20
      $region19: #{discriminator_s_forward.10} parent=15 // pred_region
        %s175 = smul.u32 2, %s19
        %p176 = scmp.lt.s32.totalorder %s16, 63
        %s177 = scalar_select %p176, %s16, 63
        %p178 = scmp.lt.s32.totalorder %s17, 0
        %s179 = scalar_select %p178, %s17, 0
        %p180 = scmp.lt.s32.totalorder %s175, 1
        %s181 = scalar_select %p180, %s175, 1
        %s182 = smul.addr %s179, 2
        %s183 = sadd.s32 %s181, %s182
        %s184 = smul.addr %s177, 2
        %s185 = sadd.s32 %s183, %s184
        %s186 = smul.addr %s185, 4
        %s187 = scalar_lea.vmem %s0, %s186
        %s188 = smul.u32 2, %s19
      $region20: #{discriminator_s_forward.10} parent=15 // pred_fallthru
        _
      // Predicated region
      $region21: #{discriminator_s_forward.10} parent=15 // pred_check
        %p189 = pneg %p89
      $region22: #{discriminator_s_forward.10} parent=15 // pred_check_branch
        %191 = sbr.rel (%p189) target = $region24
      $region23: #{discriminator_s_forward.10} parent=15 // pred_region
        %s192 = smul.u32 21, %s19
        %p193 = scmp.lt.s32.totalorder %s16, 63
        %s194 = scalar_select %p193, %s16, 63
        %p195 = scmp.lt.s32.totalorder %s192, 20
        %s196 = scalar_select %p195, %s192, 20
        %p197 = scmp.lt.s32.totalorder %s18, 0
        %s198 = scalar_select %p197, %s18, 0
        %s199 = sadd.s32 %s198, %s196
        %s200 = smul.addr %s194, 21
        %s201 = sadd.s32 %s199, %s200
        %s202 = smul.addr %s201, 4
        %s203 = scalar_lea.vmem %s1, %s202
        %s204 = smul.u32 21, %s19
      $region24: #{discriminator_s_forward.10} parent=15 // pred_fallthru
        _
      // Predicated region
      $region25: #{discriminator_s_forward.10} parent=15 // pred_check
        %p205 = pneg %p117
      $region26: #{discriminator_s_forward.10} parent=15 // pred_check_branch
        %207 = sbr.rel (%p205) target = $region28
      $region27: #{discriminator_s_forward.10} parent=15 // pred_region
        %p208 = scmp.lt.s32.totalorder %s16, 63
        %s209 = scalar_select %p208, %s16, 63
        %p210 = scmp.lt.s32.totalorder %s18, 0
        %s211 = scalar_select %p210, %s18, 0
        %s212 = sadd.s32 %s211, %s209
        %s213 = scalar_lea.vmem %s2, %s212
      $region28: #{discriminator_s_forward.10} parent=15 // pred_fallthru
        _
    $region16: #{discriminator_s_forward.10} parent=5 // pred_fallthru
      _
    %p214 = scmp.le.s32.totalorder 1, %s9
    %p215 = scmp.lt.s32.totalorder %s9, 65
    %p216 = pnand %p214, %p215
    %p217 = pneg %p216
    // Predicated region
    $region29: #{discriminator_s_forward.10} parent=5 // pred_check
      _
    $region30: #{discriminator_s_forward.10} parent=5 // pred_check_branch
      %219 = sbr.rel (%p216) target = $region32
    $region31: #{discriminator_s_forward.10} parent=5 // pred_region
      %s220 = ssub.s32 %s9, 1
      %s221 = smul.u32 2, %s23
      %p222 = scmp.lt.s32.totalorder %s20, 63
      %s223 = scalar_select %p222, %s20, 63
      %p224 = scmp.lt.s32.totalorder %s21, 0
      %s225 = scalar_select %p224, %s21, 0
      %p226 = scmp.lt.s32.totalorder %s221, 1
      %s227 = scalar_select %p226, %s221, 1
      %s228 = smul.addr %s225, 2
      %s229 = sadd.s32 %s227, %s228
      %s230 = smul.addr %s223, 2
      %s231 = sadd.s32 %s229, %s230
      %s232 = smul.addr %s231, 4
      %s233 = scalar_lea.vmem %s0, %s232
      %p234 = pneg %p65
      %p235 = pneg %p62
      %s236 = smul.u32 21, %s23
      %p237 = scmp.lt.s32.totalorder %s20, 63
      %s238 = scalar_select %p237, %s20, 63
      %p239 = scmp.lt.s32.totalorder %s236, 20
      %s240 = scalar_select %p239, %s236, 20
      %p241 = scmp.lt.s32.totalorder %s22, 0
      %s242 = scalar_select %p241, %s22, 0
      %s243 = sadd.s32 %s242, %s240
      %s244 = smul.addr %s238, 21
      %s245 = sadd.s32 %s243, %s244
      %s246 = smul.addr %s245, 4
      %s247 = scalar_lea.vmem %s1, %s246
      %p248 = pneg %p95
      %p249 = pneg %p92
      %p250 = scmp.lt.s32.totalorder %s20, 63
      %s251 = scalar_select %p250, %s20, 63
      %p252 = scmp.lt.s32.totalorder %s22, 0
      %s253 = scalar_select %p252, %s22, 0
      %s254 = sadd.s32 %s253, %s251
      %s255 = scalar_lea.vmem %s2, %s254
      %p256 = pneg %p123
      %p257 = pneg %p120
      %p258 = pneg %p153
      %p259 = pneg %p150
      %p260 = scmp.lt.s32.totalorder %s20, 63
      %s261 = scalar_select %p260, %s20, 63
      %p262 = scmp.lt.s32.totalorder %s21, 0
      %s263 = scalar_select %p262, %s21, 0
      %p264 = scmp.lt.s32.totalorder %s22, 0
      %s265 = scalar_select %p264, %s22, 0
      %s266 = sadd.s32 %s265, %s263
      %s267 = sadd.s32 %s266, %s261
      %s268 = smul.addr %s267, 8
      %s269 = scalar_lea.vmem %s3, %s268
      %s270 = smul.u32 2, %s23
      %p271 = scmp.lt.s32.totalorder %s20, 63
      %s272 = scalar_select %p271, %s20, 63
      %p273 = scmp.lt.s32.totalorder %s21, 0
      %s274 = scalar_select %p273, %s21, 0
      %p275 = scmp.lt.s32.totalorder %s270, 1
      %s276 = scalar_select %p275, %s270, 1
      %s277 = smul.addr %s274, 2
      %s278 = sadd.s32 %s276, %s277
      %s279 = smul.addr %s272, 2
      %s280 = sadd.s32 %s278, %s279
      %s281 = smul.addr %s280, 4
      %s282 = scalar_lea.vmem %s0, %s281
      %s283 = smul.u32 2, %s23
      %s284 = smul.u32 21, %s23
      %p285 = scmp.lt.s32.totalorder %s20, 63
      %s286 = scalar_select %p285, %s20, 63
      %p287 = scmp.lt.s32.totalorder %s284, 20
      %s288 = scalar_select %p287, %s284, 20
      %p289 = scmp.lt.s32.totalorder %s22, 0
      %s290 = scalar_select %p289, %s22, 0
      %s291 = sadd.s32 %s290, %s288
      %s292 = smul.addr %s286, 21
      %s293 = sadd.s32 %s291, %s292
      %s294 = smul.addr %s293, 4
      %s295 = scalar_lea.vmem %s1, %s294
      %s296 = smul.u32 21, %s23
      %p297 = scmp.lt.s32.totalorder %s20, 63
      %s298 = scalar_select %p297, %s20, 63
      %p299 = scmp.lt.s32.totalorder %s22, 0
      %s300 = scalar_select %p299, %s22, 0
      %s301 = sadd.s32 %s300, %s298
      %s302 = scalar_lea.vmem %s2, %s301
      %p303 = scmp.lt.s32.totalorder %s20, 63
      %s304 = scalar_select %p303, %s20, 63
      %p305 = scmp.lt.s32.totalorder %s21, 0
      %s306 = scalar_select %p305, %s21, 0
      %p307 = scmp.lt.s32.totalorder %s22, 0
      %s308 = scalar_select %p307, %s22, 0
      %s309 = sadd.s32 %s308, %s306
      %s310 = sadd.s32 %s309, %s304
      %s311 = smul.addr %s310, 8
      %s312 = scalar_lea.vmem %s3, %s311
      %p314 = scmp.eq.s32.totalorder %s23, 0
      // Predicated region
      $region33: #{discriminator_s_forward.10} parent=31 // pred_check
        %p315 = pneg %p314
      $region34: #{discriminator_s_forward.10} parent=31 // pred_check_branch
        %317 = sbr.rel (%p315) target = $region36
      $region35: #{discriminator_s_forward.10} parent=31 // pred_region
        %vm318 = vcmask 130048
        %319 = vst.msk [vmem:[#allocation2] sm:$0xff] %vm318, 0.0
      $region36: #{discriminator_s_forward.10} parent=31 // pred_fallthru
        _
      %v320 = vld [vmem:[#allocation2] sm:$0xff]
      %v321 = vld [vmem:[%s282] sm:$0xff]
      %v322 = vld [vmem:[%s295] sm:$0xf]
      %v323 = vld [vmem:[%s295 + $0x4] sm:$0xf]
      %v324 = vld [vmem:[%s295 + $0x8] sm:$0xf]
      %v325 = vld [vmem:[%s295 + $0xc] sm:$0xf]
      %v326 = vld [vmem:[%s295 + $0x10] sm:$0xf]
      %v327 = vld [vmem:[%s295 + $0x14] sm:$0xf]
      %v328 = vld [vmem:[%s295 + $0x18] sm:$0xf]
      %v329 = vld [vmem:[%s295 + $0x1c] sm:$0xf]
      %v330 = vld [vmem:[%s295 + $0x20] sm:$0xf]
      %v331 = vld [vmem:[%s295 + $0x24] sm:$0xf]
      %v332 = vld [vmem:[%s295 + $0x28] sm:$0xf]
      %v333 = vld [vmem:[%s295 + $0x2c] sm:$0xf]
      %v334 = vld [vmem:[%s295 + $0x30] sm:$0xf]
      %v335 = vld [vmem:[%s295 + $0x34] sm:$0xf]
      %v336 = vld [vmem:[%s295 + $0x38] sm:$0xf]
      %v337 = vld [vmem:[%s295 + $0x3c] sm:$0xf]
      %v338 = vld [vmem:[%s295 + $0x40] sm:$0xf]
      %v339 = vld [vmem:[%s295 + $0x44] sm:$0xf]
      %v340 = vld [vmem:[%s295 + $0x48] sm:$0xf]
      %v341 = vld [vmem:[%s295 + $0x4c] sm:$0xf]
      %v342 = vld [vmem:[%s295 + $0x50] sm:$0x3]
      %v344 = vunpack.c.l.b16 %v321
      %v345 = vunpack.c.h.b16 %v321
      %v346 = vpack.c.b16 %v344, %v344
      %v347 = vpack.c.b16 %v345, %v345
      %v370 = vunpack.c.l.b16 %v322
      %v371 = vunpack.c.l.b16 %v323
      %v372 = vunpack.c.l.b16 %v324
      %v373 = vunpack.c.l.b16 %v325
      %v374 = vunpack.c.l.b16 %v326
      %v375 = vunpack.c.l.b16 %v327
      %v376 = vunpack.c.l.b16 %v328
      %v377 = vunpack.c.l.b16 %v329
      %v378 = vunpack.c.l.b16 %v330
      %v379 = vunpack.c.l.b16 %v331
      %v380 = vunpack.c.l.b16 %v332
      %v381 = vunpack.c.l.b16 %v333
      %v382 = vunpack.c.l.b16 %v334
      %v383 = vunpack.c.l.b16 %v335
      %v384 = vunpack.c.l.b16 %v336
      %v385 = vunpack.c.l.b16 %v337
      %v386 = vunpack.c.l.b16 %v338
      %v387 = vunpack.c.l.b16 %v339
      %v388 = vunpack.c.l.b16 %v340
      %v389 = vunpack.c.l.b16 %v341
      %v390 = vunpack.c.l.b16 %v342
      %v391 = vpack.c.b16 %v371, %v370
      %v392 = vpack.c.b16 %v373, %v372
      %v393 = vpack.c.b16 %v375, %v374
      %v394 = vpack.c.b16 %v377, %v376
      %v395 = vpack.c.b16 %v379, %v378
      %v396 = vpack.c.b16 %v381, %v380
      %v397 = vpack.c.b16 %v383, %v382
      %v398 = vpack.c.b16 %v385, %v384
      %v399 = vpack.c.b16 %v387, %v386
      %v400 = vpack.c.b16 %v389, %v388
      %v401 = vpack.c.b16 %v390, %v390
      %vm412 = vcmask 293888
      %v414 = vsel %vm412, %v347, 0
      %vm416 = vcmask 1041408
      %v418 = vsel %vm416, %v401, 0
      %420 = vmatpush.bf16.msra.mxu0 %v398
      %421 = vmatpush.bf16.msra.mxu0 %v397
      %422 = vmatpush.bf16.msra.mxu0 %v396
      %423 = vmatpush.bf16.msra.mxu0 %v395
      %424 = vmatpush.bf16.msra.mxu0 %v394
      %425 = vmatpush.bf16.msra.mxu0 %v393
      %426 = vmatpush.bf16.msra.mxu0 %v392
      %427 = vmatpush.bf16.msra.mxu0 %v391
      %428 = vmatmul.bf16.gmra.mxu0 %v346
      %v429 = vpop.f32.mrf.mxu0
      %v430 = vadd.f32 0.0, %v429
      %v431 = vpop.f32.mrf.mxu0
      %432 = vdwg.mxu0
      %433 = vmatpush.bf16.msra.mxu0 0
      %434 = vmatpush.bf16.msra.mxu0 0
      %435 = vmatpush.bf16.msra.mxu0 0
      %436 = vmatpush.bf16.msra.mxu0 0
      %437 = vmatpush.bf16.msra.mxu0 0
      %438 = vmatpush.bf16.msra.mxu0 %v418
      %439 = vmatpush.bf16.msra.mxu0 %v400
      %440 = vmatpush.bf16.msra.mxu0 %v399
      %441 = vmatmul.bf16.gmra.mxu0 %v414
      %v442 = vpop.f32.mrf.mxu0
      %v443 = vadd.f32 %v430, %v442
      %v444 = vpop.f32.mrf.mxu0
      %445 = vdwg.mxu0
      %v446 = vadd.f32 %v320, %v443
      %vm447 = vcmask 130048
      %448 = vst.msk [vmem:[#allocation2] sm:$0xff] %vm447, %v446
      // Predicated region
      $region37: #{discriminator_s_forward.10} parent=31 // pred_check
        %p449 = pneg %p314
      $region38: #{discriminator_s_forward.10} parent=31 // pred_check_branch
        %451 = sbr.rel (%p449) target = $region40
      $region39: #{discriminator_s_forward.10} parent=31 // pred_region
        %v452 = vld [vmem:[#allocation2] sm:$0xff]
        %v453 = vld [vmem:[%s302] sm:$0x1]
        %v455 = vperm.slane %v453, 0
        %v457 = vadd.f32 %v452, %v455
        %vm458 = vcmp.ge.f32.partialorder %v457, 0.0
        %v459 = vmul.f32 %v457, 0.1
        %v460 = vsel %vm458, %v457, %v459
        %461 = vst.msk [vmem:[%s312] sm:$0xff] %vm447, %v460
      $region40: #{discriminator_s_forward.10} parent=31 // pred_fallthru
        _
      %p462 = scmp.lt.s32.totalorder %s20, 63
      %s463 = scalar_select %p462, %s20, 63
      %p464 = scmp.lt.s32.totalorder %s21, 0
      %s465 = scalar_select %p464, %s21, 0
      %p466 = scmp.lt.s32.totalorder %s22, 0
      %s467 = scalar_select %p466, %s22, 0
      %s468 = sadd.s32 %s467, %s465
      %s469 = sadd.s32 %s468, %s463
      %s470 = smul.addr %s469, 8
      %s471 = scalar_lea.vmem %s3, %s470
      // Predicated region
      $region41: #{discriminator_s_forward.10} parent=31 // pred_check
        %p472 = pneg %p150
      $region42: #{discriminator_s_forward.10} parent=31 // pred_check_branch
        %474 = sbr.rel (%p472) target = $region44
      $region43: #{discriminator_s_forward.10} parent=31 // pred_region
        _
      $region44: #{discriminator_s_forward.10} parent=31 // pred_fallthru
        _
    $region32: #{discriminator_s_forward.10} parent=5 // pred_fallthru
      _
    %p475 = scmp.le.s32.totalorder 2, %s9
    // Predicated region
    $region45: #{discriminator_s_forward.10} parent=5 // pred_check
      %p476 = pneg %p475
    $region46: #{discriminator_s_forward.10} parent=5 // pred_check_branch
      %478 = sbr.rel (%p476) target = $region48
    $region47: #{discriminator_s_forward.10} parent=5 // pred_region
      %s479 = ssub.s32 %s9, 2
      // Predicated region
      $region49: #{discriminator_s_forward.10} parent=47 // pred_check
        %p480 = pneg %p156
      $region50: #{discriminator_s_forward.10} parent=47 // pred_check_branch
        %482 = sbr.rel (%p480) target = $region52
      $region51: #{discriminator_s_forward.10} parent=47 // pred_region
        %p483 = scmp.lt.s32.totalorder %s24, 63
        %s484 = scalar_select %p483, %s24, 63
        %p485 = scmp.lt.s32.totalorder %s25, 0
        %s486 = scalar_select %p485, %s25, 0
        %p487 = scmp.lt.s32.totalorder %s26, 0
        %s488 = scalar_select %p487, %s26, 0
        %s489 = sadd.s32 %s488, %s486
        %s490 = sadd.s32 %s489, %s484
        %s491 = smul.addr %s490, 8
        %s492 = scalar_lea.vmem %s3, %s491
      $region52: #{discriminator_s_forward.10} parent=47 // pred_fallthru
        _
    $region48: #{discriminator_s_forward.10} parent=5 // pred_fallthru
      _
  $region6: #{discriminator_s_forward.10} parent=0 // loop_footer
    %s13 = sadd.s32 1, %s9
  $region7: #{discriminator_s_forward.10} parent=0 // loop_footer_branch
    %8 = sbr.rel target = $region3
  $region8: #{discriminator_s_forward.10} parent=0 // loop_exit
    _

// kernel: discriminator_s_forward.11
$region0: #{discriminator_s_forward.11}
  #allocation0 [shape = 'u32[]', space=smem, size = 0x4, offset = 0x4, fixed_abs, tag = 'smem constant byte address 0x4 - core index']
  #allocation1 [shape = 'u32[72,128]{1,0:T(1,128)}', space=vmem, size = 0x9000, scoped, tag = 'internal scratch']
  #allocation2 [shape = 'f32[8,4]{1,0:T(8,128)}', space=vmem, size = 0x1000, scoped, tag = 'scratch operand']
  %s0 = inlined_call_operand.vmem [shape: bf16[256,8,164], index: 0, kind: input, shape index: {}]
  %s1 = inlined_call_operand.vmem [shape: bf16[256,164,4], index: 1, kind: input, shape index: {}]
  %s2 = inlined_call_operand.vmem [shape: f32[256,1,4], index: 2, kind: input, shape index: {}]
  %s3 = inlined_call_operand.vmem [shape: f32[256,8,4], index: 3, kind: output, shape index: {}]
  %s4 = sld [smem:[#allocation0]]
  $region53: #{discriminator_s_forward.11} parent=0
    _
  %s6 = ssub.s32 1, %s4
  %s7 = scalar_select 0, %s6, %s4
  loop: start=0, step=1, limit=258
  $region2: #{discriminator_s_forward.11} parent=0 // loop_pre_header
    _
  $region3: #{discriminator_s_forward.11} parent=0 // loop_header
    %s9 = sphi 0, %s13
    %p10 = scmp.ge.s32.totalorder %s9, 258
    %s16 = sphi 0, %s42
    %s17 = sphi 0, %s38
    %s18 = sphi 0, %s34
    %s19 = sphi 0, %s30
    %s20 = sphi 0, %s16
    %s21 = sphi 0, %s17
    %s22 = sphi 0, %s18
    %s23 = sphi 0, %s19
    %s24 = sphi 0, %s20
    %s25 = sphi 0, %s21
    %s26 = sphi 0, %s22
    %s27 = sphi 0, %s23
    %s49 = sphi 0, %s51
    %s52 = sphi 0, %s49
    %s53 = sphi 0, %s52
    %s69 = sphi 0, %s53
    %s79 = sphi 0, %s81
    %s82 = sphi 0, %s79
    %s83 = sphi 0, %s82
    %s99 = sphi 0, %s83
    %s107 = sphi 0, %s109
    %s110 = sphi 0, %s107
    %s111 = sphi 0, %s110
    %s127 = sphi 0, %s111
    %s137 = sphi 0, %s139
    %s140 = sphi 0, %s137
    %s141 = sphi 0, %s140
    %s157 = sphi 0, %s141
  $region4: #{discriminator_s_forward.11} parent=0 // loop_header_branch
    %12 = sbr.rel (%p10) target = $region8
  $region5: #{discriminator_s_forward.11} parent=0 // loop_body
    %s14 = ssub.s32 %s9, 1
    %s15 = ssub.s32 %s9, 2
    %s28 = sadd.s32 1, %s19
    %p29 = scmp.ge.s32.totalorder %s28, 1
    %s30 = scalar_select %p29, 0, %s28
    %s31 = sadd.s32 1, %s18
    %s32 = scalar_select %p29, %s31, %s18
    %p33 = scmp.ge.s32.totalorder %s32, 1
    %s34 = scalar_select %p33, 0, %s32
    %s35 = sadd.s32 1, %s17
    %s36 = scalar_select %p33, %s35, %s17
    %p37 = scmp.ge.s32.totalorder %s36, 1
    %s38 = scalar_select %p37, 0, %s36
    %s39 = sadd.s32 1, %s16
    %s40 = scalar_select %p37, %s39, %s16
    %p41 = scmp.ge.s32.totalorder %s40, 256
    %s42 = scalar_select %p41, 0, %s40
    %s43 = ssub.s32 %s16, %s42
    %s44 = ssub.s32 %s17, %s38
    %s45 = sor.u32 %s43, %s44
    %s46 = ssub.s32 %s19, %s30
    %s47 = sor.u32 %s45, %s46
    %p48 = scmp.eq.s32.totalorder %s47, 0
    %s50 = sadd.s32 %s49, 1
    %s51 = scalar_select %p48, %s49, %s50
    %p54 = pneg %p48
    %p55 = scmp.eq.s32.totalorder %s9, 255
    %p56 = por %p54, %p55
    %p57 = scmp.ne.s32.totalorder %s49, %s52
    %p58 = scmp.eq.s32.totalorder %s9, 0
    %p59 = por %p57, %p58
    %p60 = scmp.ne.s32.totalorder %s49, %s52
    %p61 = scmp.eq.s32.totalorder %s14, 255
    %p62 = por %p60, %p61
    %p63 = scmp.ne.s32.totalorder %s52, %s53
    %p64 = scmp.eq.s32.totalorder %s14, 0
    %p65 = por %p63, %p64
    %p66 = scmp.ne.s32.totalorder %s52, %s53
    %p67 = scmp.eq.s32.totalorder %s15, 255
    %p68 = por %p66, %p67
    %p70 = scmp.ne.s32.totalorder %s53, %s69
    %p71 = scmp.eq.s32.totalorder %s15, 0
    %p72 = por %p70, %p71
    %s73 = ssub.s32 %s16, %s42
    %s74 = ssub.s32 %s19, %s30
    %s75 = sor.u32 %s73, %s74
    %s76 = ssub.s32 %s18, %s34
    %s77 = sor.u32 %s75, %s76
    %p78 = scmp.eq.s32.totalorder %s77, 0
    %s80 = sadd.s32 %s79, 1
    %s81 = scalar_select %p78, %s79, %s80
    %p84 = pneg %p78
    %p85 = scmp.eq.s32.totalorder %s9, 255
    %p86 = por %p84, %p85
    %p87 = scmp.ne.s32.totalorder %s79, %s82
    %p88 = scmp.eq.s32.totalorder %s9, 0
    %p89 = por %p87, %p88
    %p90 = scmp.ne.s32.totalorder %s79, %s82
    %p91 = scmp.eq.s32.totalorder %s14, 255
    %p92 = por %p90, %p91
    %p93 = scmp.ne.s32.totalorder %s82, %s83
    %p94 = scmp.eq.s32.totalorder %s14, 0
    %p95 = por %p93, %p94
    %p96 = scmp.ne.s32.totalorder %s82, %s83
    %p97 = scmp.eq.s32.totalorder %s15, 255
    %p98 = por %p96, %p97
    %p100 = scmp.ne.s32.totalorder %s83, %s99
    %p101 = scmp.eq.s32.totalorder %s15, 0
    %p102 = por %p100, %p101
    %s103 = ssub.s32 %s16, %s42
    %s104 = ssub.s32 %s18, %s34
    %s105 = sor.u32 %s103, %s104
    %p106 = scmp.eq.s32.totalorder %s105, 0
    %s108 = sadd.s32 %s107, 1
    %s109 = scalar_select %p106, %s107, %s108
    %p112 = pneg %p106
    %p113 = scmp.eq.s32.totalorder %s9, 255
    %p114 = por %p112, %p113
    %p115 = scmp.ne.s32.totalorder %s107, %s110
    %p116 = scmp.eq.s32.totalorder %s9, 0
    %p117 = por %p115, %p116
    %p118 = scmp.ne.s32.totalorder %s107, %s110
    %p119 = scmp.eq.s32.totalorder %s14, 255
    %p120 = por %p118, %p119
    %p121 = scmp.ne.s32.totalorder %s110, %s111
    %p122 = scmp.eq.s32.totalorder %s14, 0
    %p123 = por %p121, %p122
    %p124 = scmp.ne.s32.totalorder %s110, %s111
    %p125 = scmp.eq.s32.totalorder %s15, 255
    %p126 = por %p124, %p125
    %p128 = scmp.ne.s32.totalorder %s111, %s127
    %p129 = scmp.eq.s32.totalorder %s15, 0
    %p130 = por %p128, %p129
    %s131 = ssub.s32 %s16, %s42
    %s132 = ssub.s32 %s17, %s38
    %s133 = sor.u32 %s131, %s132
    %s134 = ssub.s32 %s18, %s34
    %s135 = sor.u32 %s133, %s134
    %p136 = scmp.eq.s32.totalorder %s135, 0
    %s138 = sadd.s32 %s137, 1
    %s139 = scalar_select %p136, %s137, %s138
    %p142 = pneg %p136
    %p143 = scmp.eq.s32.totalorder %s9, 255
    %p144 = por %p142, %p143
    %p145 = scmp.ne.s32.totalorder %s137, %s140
    %p146 = scmp.eq.s32.totalorder %s9, 0
    %p147 = por %p145, %p146
    %p148 = scmp.ne.s32.totalorder %s137, %s140
    %p149 = scmp.eq.s32.totalorder %s14, 255
    %p150 = por %p148, %p149
    %p151 = scmp.ne.s32.totalorder %s140, %s141
    %p152 = scmp.eq.s32.totalorder %s14, 0
    %p153 = por %p151, %p152
    %p154 = scmp.ne.s32.totalorder %s140, %s141
    %p155 = scmp.eq.s32.totalorder %s15, 255
    %p156 = por %p154, %p155
    %p158 = scmp.ne.s32.totalorder %s141, %s157
    %p159 = scmp.eq.s32.totalorder %s15, 0
    %p160 = por %p158, %p159
    %p161 = scmp.le.s32.totalorder 1, %s9
    %p162 = scmp.lt.s32.totalorder %s9, 257
    %p163 = pnand %p161, %p162
    %p164 = pneg %p163
    // Predicated region
    $region9: #{discriminator_s_forward.11} parent=5 // pred_check
      _
    $region10: #{discriminator_s_forward.11} parent=5 // pred_check_branch
      %166 = sbr.rel (%p163) target = $region12
    $region11: #{discriminator_s_forward.11} parent=5 // pred_region
      %s167 = ssub.s32 %s9, 1
    $region12: #{discriminator_s_forward.11} parent=5 // pred_fallthru
      _
    %p168 = scmp.lt.s32.totalorder %s9, 256
    // Predicated region
    $region13: #{discriminator_s_forward.11} parent=5 // pred_check
      %p169 = pneg %p168
    $region14: #{discriminator_s_forward.11} parent=5 // pred_check_branch
      %171 = sbr.rel (%p169) target = $region16
    $region15: #{discriminator_s_forward.11} parent=5 // pred_region
      // Predicated region
      $region17: #{discriminator_s_forward.11} parent=15 // pred_check
        %p172 = pneg %p59
      $region18: #{discriminator_s_forward.11} parent=15 // pred_check_branch
        %174 = sbr.rel (%p172) target = $region20
      $region19: #{discriminator_s_forward.11} parent=15 // pred_region
        %s175 = smul.u32 2, %s19
        %p176 = scmp.lt.s32.totalorder %s16, 255
        %s177 = scalar_select %p176, %s16, 255
        %p178 = scmp.lt.s32.totalorder %s17, 0
        %s179 = scalar_select %p178, %s17, 0
        %p180 = scmp.lt.s32.totalorder %s175, 1
        %s181 = scalar_select %p180, %s175, 1
        %s182 = smul.addr %s179, 2
        %s183 = sadd.s32 %s181, %s182
        %s184 = smul.addr %s177, 2
        %s185 = sadd.s32 %s183, %s184
        %s186 = smul.addr %s185, 4
        %s187 = scalar_lea.vmem %s0, %s186
        %s188 = smul.u32 2, %s19
      $region20: #{discriminator_s_forward.11} parent=15 // pred_fallthru
        _
      // Predicated region
      $region21: #{discriminator_s_forward.11} parent=15 // pred_check
        %p189 = pneg %p89
      $region22: #{discriminator_s_forward.11} parent=15 // pred_check_branch
        %191 = sbr.rel (%p189) target = $region24
      $region23: #{discriminator_s_forward.11} parent=15 // pred_region
        %s192 = smul.u32 21, %s19
        %p193 = scmp.lt.s32.totalorder %s16, 255
        %s194 = scalar_select %p193, %s16, 255
        %p195 = scmp.lt.s32.totalorder %s192, 20
        %s196 = scalar_select %p195, %s192, 20
        %p197 = scmp.lt.s32.totalorder %s18, 0
        %s198 = scalar_select %p197, %s18, 0
        %s199 = sadd.s32 %s198, %s196
        %s200 = smul.addr %s194, 21
        %s201 = sadd.s32 %s199, %s200
        %s202 = smul.addr %s201, 4
        %s203 = scalar_lea.vmem %s1, %s202
        %s204 = smul.u32 21, %s19
      $region24: #{discriminator_s_forward.11} parent=15 // pred_fallthru
        _
      // Predicated region
      $region25: #{discriminator_s_forward.11} parent=15 // pred_check
        %p205 = pneg %p117
      $region26: #{discriminator_s_forward.11} parent=15 // pred_check_branch
        %207 = sbr.rel (%p205) target = $region28
      $region27: #{discriminator_s_forward.11} parent=15 // pred_region
        %p208 = scmp.lt.s32.totalorder %s16, 255
        %s209 = scalar_select %p208, %s16, 255
        %p210 = scmp.lt.s32.totalorder %s18, 0
        %s211 = scalar_select %p210, %s18, 0
        %s212 = sadd.s32 %s211, %s209
        %s213 = scalar_lea.vmem %s2, %s212
      $region28: #{discriminator_s_forward.11} parent=15 // pred_fallthru
        _
    $region16: #{discriminator_s_forward.11} parent=5 // pred_fallthru
      _
    %p214 = scmp.le.s32.totalorder 1, %s9
    %p215 = scmp.lt.s32.totalorder %s9, 257
    %p216 = pnand %p214, %p215
    %p217 = pneg %p216
    // Predicated region
    $region29: #{discriminator_s_forward.11} parent=5 // pred_check
      _
    $region30: #{discriminator_s_forward.11} parent=5 // pred_check_branch
      %219 = sbr.rel (%p216) target = $region32
    $region31: #{discriminator_s_forward.11} parent=5 // pred_region
      %s220 = ssub.s32 %s9, 1
      %s221 = smul.u32 2, %s23
      %p222 = scmp.lt.s32.totalorder %s20, 255
      %s223 = scalar_select %p222, %s20, 255
      %p224 = scmp.lt.s32.totalorder %s21, 0
      %s225 = scalar_select %p224, %s21, 0
      %p226 = scmp.lt.s32.totalorder %s221, 1
      %s227 = scalar_select %p226, %s221, 1
      %s228 = smul.addr %s225, 2
      %s229 = sadd.s32 %s227, %s228
      %s230 = smul.addr %s223, 2
      %s231 = sadd.s32 %s229, %s230
      %s232 = smul.addr %s231, 4
      %s233 = scalar_lea.vmem %s0, %s232
      %p234 = pneg %p65
      %p235 = pneg %p62
      %s236 = smul.u32 21, %s23
      %p237 = scmp.lt.s32.totalorder %s20, 255
      %s238 = scalar_select %p237, %s20, 255
      %p239 = scmp.lt.s32.totalorder %s236, 20
      %s240 = scalar_select %p239, %s236, 20
      %p241 = scmp.lt.s32.totalorder %s22, 0
      %s242 = scalar_select %p241, %s22, 0
      %s243 = sadd.s32 %s242, %s240
      %s244 = smul.addr %s238, 21
      %s245 = sadd.s32 %s243, %s244
      %s246 = smul.addr %s245, 4
      %s247 = scalar_lea.vmem %s1, %s246
      %p248 = pneg %p95
      %p249 = pneg %p92
      %p250 = scmp.lt.s32.totalorder %s20, 255
      %s251 = scalar_select %p250, %s20, 255
      %p252 = scmp.lt.s32.totalorder %s22, 0
      %s253 = scalar_select %p252, %s22, 0
      %s254 = sadd.s32 %s253, %s251
      %s255 = scalar_lea.vmem %s2, %s254
      %p256 = pneg %p123
      %p257 = pneg %p120
      %p258 = pneg %p153
      %p259 = pneg %p150
      %p260 = scmp.lt.s32.totalorder %s20, 255
      %s261 = scalar_select %p260, %s20, 255
      %p262 = scmp.lt.s32.totalorder %s21, 0
      %s263 = scalar_select %p262, %s21, 0
      %p264 = scmp.lt.s32.totalorder %s22, 0
      %s265 = scalar_select %p264, %s22, 0
      %s266 = sadd.s32 %s265, %s263
      %s267 = sadd.s32 %s266, %s261
      %s268 = smul.addr %s267, 8
      %s269 = scalar_lea.vmem %s3, %s268
      %s270 = smul.u32 2, %s23
      %p271 = scmp.lt.s32.totalorder %s20, 255
      %s272 = scalar_select %p271, %s20, 255
      %p273 = scmp.lt.s32.totalorder %s21, 0
      %s274 = scalar_select %p273, %s21, 0
      %p275 = scmp.lt.s32.totalorder %s270, 1
      %s276 = scalar_select %p275, %s270, 1
      %s277 = smul.addr %s274, 2
      %s278 = sadd.s32 %s276, %s277
      %s279 = smul.addr %s272, 2
      %s280 = sadd.s32 %s278, %s279
      %s281 = smul.addr %s280, 4
      %s282 = scalar_lea.vmem %s0, %s281
      %s283 = smul.u32 2, %s23
      %s284 = smul.u32 21, %s23
      %p285 = scmp.lt.s32.totalorder %s20, 255
      %s286 = scalar_select %p285, %s20, 255
      %p287 = scmp.lt.s32.totalorder %s284, 20
      %s288 = scalar_select %p287, %s284, 20
      %p289 = scmp.lt.s32.totalorder %s22, 0
      %s290 = scalar_select %p289, %s22, 0
      %s291 = sadd.s32 %s290, %s288
      %s292 = smul.addr %s286, 21
      %s293 = sadd.s32 %s291, %s292
      %s294 = smul.addr %s293, 4
      %s295 = scalar_lea.vmem %s1, %s294
      %s296 = smul.u32 21, %s23
      %p297 = scmp.lt.s32.totalorder %s20, 255
      %s298 = scalar_select %p297, %s20, 255
      %p299 = scmp.lt.s32.totalorder %s22, 0
      %s300 = scalar_select %p299, %s22, 0
      %s301 = sadd.s32 %s300, %s298
      %s302 = scalar_lea.vmem %s2, %s301
      %p303 = scmp.lt.s32.totalorder %s20, 255
      %s304 = scalar_select %p303, %s20, 255
      %p305 = scmp.lt.s32.totalorder %s21, 0
      %s306 = scalar_select %p305, %s21, 0
      %p307 = scmp.lt.s32.totalorder %s22, 0
      %s308 = scalar_select %p307, %s22, 0
      %s309 = sadd.s32 %s308, %s306
      %s310 = sadd.s32 %s309, %s304
      %s311 = smul.addr %s310, 8
      %s312 = scalar_lea.vmem %s3, %s311
      %p314 = scmp.eq.s32.totalorder %s23, 0
      // Predicated region
      $region33: #{discriminator_s_forward.11} parent=31 // pred_check
        %p315 = pneg %p314
      $region34: #{discriminator_s_forward.11} parent=31 // pred_check_branch
        %317 = sbr.rel (%p315) target = $region36
      $region35: #{discriminator_s_forward.11} parent=31 // pred_region
        %vm318 = vcmask 31744
        %319 = vst.msk [vmem:[#allocation2] sm:$0xff] %vm318, 0.0
      $region36: #{discriminator_s_forward.11} parent=31 // pred_fallthru
        _
      %v320 = vld [vmem:[#allocation2] sm:$0xff]
      %v321 = vld [vmem:[%s282] sm:$0xff]
      %v322 = vld [vmem:[%s295] sm:$0xf]
      %v323 = vld [vmem:[%s295 + $0x4] sm:$0xf]
      %v324 = vld [vmem:[%s295 + $0x8] sm:$0xf]
      %v325 = vld [vmem:[%s295 + $0xc] sm:$0xf]
      %v326 = vld [vmem:[%s295 + $0x10] sm:$0xf]
      %v327 = vld [vmem:[%s295 + $0x14] sm:$0xf]
      %v328 = vld [vmem:[%s295 + $0x18] sm:$0xf]
      %v329 = vld [vmem:[%s295 + $0x1c] sm:$0xf]
      %v330 = vld [vmem:[%s295 + $0x20] sm:$0xf]
      %v331 = vld [vmem:[%s295 + $0x24] sm:$0xf]
      %v332 = vld [vmem:[%s295 + $0x28] sm:$0xf]
      %v333 = vld [vmem:[%s295 + $0x2c] sm:$0xf]
      %v334 = vld [vmem:[%s295 + $0x30] sm:$0xf]
      %v335 = vld [vmem:[%s295 + $0x34] sm:$0xf]
      %v336 = vld [vmem:[%s295 + $0x38] sm:$0xf]
      %v337 = vld [vmem:[%s295 + $0x3c] sm:$0xf]
      %v338 = vld [vmem:[%s295 + $0x40] sm:$0xf]
      %v339 = vld [vmem:[%s295 + $0x44] sm:$0xf]
      %v340 = vld [vmem:[%s295 + $0x48] sm:$0xf]
      %v341 = vld [vmem:[%s295 + $0x4c] sm:$0xf]
      %v342 = vld [vmem:[%s295 + $0x50] sm:$0x3]
      %v344 = vunpack.c.l.b16 %v321
      %v345 = vunpack.c.h.b16 %v321
      %v346 = vpack.c.b16 %v344, %v344
      %v347 = vpack.c.b16 %v345, %v345
      %v370 = vunpack.c.l.b16 %v322
      %v371 = vunpack.c.l.b16 %v323
      %v372 = vunpack.c.l.b16 %v324
      %v373 = vunpack.c.l.b16 %v325
      %v374 = vunpack.c.l.b16 %v326
      %v375 = vunpack.c.l.b16 %v327
      %v376 = vunpack.c.l.b16 %v328
      %v377 = vunpack.c.l.b16 %v329
      %v378 = vunpack.c.l.b16 %v330
      %v379 = vunpack.c.l.b16 %v331
      %v380 = vunpack.c.l.b16 %v332
      %v381 = vunpack.c.l.b16 %v333
      %v382 = vunpack.c.l.b16 %v334
      %v383 = vunpack.c.l.b16 %v335
      %v384 = vunpack.c.l.b16 %v336
      %v385 = vunpack.c.l.b16 %v337
      %v386 = vunpack.c.l.b16 %v338
      %v387 = vunpack.c.l.b16 %v339
      %v388 = vunpack.c.l.b16 %v340
      %v389 = vunpack.c.l.b16 %v341
      %v390 = vunpack.c.l.b16 %v342
      %v391 = vpack.c.b16 %v371, %v370
      %v392 = vpack.c.b16 %v373, %v372
      %v393 = vpack.c.b16 %v375, %v374
      %v394 = vpack.c.b16 %v377, %v376
      %v395 = vpack.c.b16 %v379, %v378
      %v396 = vpack.c.b16 %v381, %v380
      %v397 = vpack.c.b16 %v383, %v382
      %v398 = vpack.c.b16 %v385, %v384
      %v399 = vpack.c.b16 %v387, %v386
      %v400 = vpack.c.b16 %v389, %v388
      %v401 = vpack.c.b16 %v390, %v390
      %vm412 = vcmask 293888
      %v414 = vsel %vm412, %v347, 0
      %vm416 = vcmask 1041408
      %v418 = vsel %vm416, %v401, 0
      %420 = vmatpush.bf16.msra.mxu0 %v398
      %421 = vmatpush.bf16.msra.mxu0 %v397
      %422 = vmatpush.bf16.msra.mxu0 %v396
      %423 = vmatpush.bf16.msra.mxu0 %v395
      %424 = vmatpush.bf16.msra.mxu0 %v394
      %425 = vmatpush.bf16.msra.mxu0 %v393
      %426 = vmatpush.bf16.msra.mxu0 %v392
      %427 = vmatpush.bf16.msra.mxu0 %v391
      %428 = vmatmul.bf16.gmra.mxu0 %v346
      %v429 = vpop.f32.mrf.mxu0
      %v430 = vadd.f32 0.0, %v429
      %v431 = vpop.f32.mrf.mxu0
      %432 = vdwg.mxu0
      %433 = vmatpush.bf16.msra.mxu0 0
      %434 = vmatpush.bf16.msra.mxu0 0
      %435 = vmatpush.bf16.msra.mxu0 0
      %436 = vmatpush.bf16.msra.mxu0 0
      %437 = vmatpush.bf16.msra.mxu0 0
      %438 = vmatpush.bf16.msra.mxu0 %v418
      %439 = vmatpush.bf16.msra.mxu0 %v400
      %440 = vmatpush.bf16.msra.mxu0 %v399
      %441 = vmatmul.bf16.gmra.mxu0 %v414
      %v442 = vpop.f32.mrf.mxu0
      %v443 = vadd.f32 %v430, %v442
      %v444 = vpop.f32.mrf.mxu0
      %445 = vdwg.mxu0
      %v446 = vadd.f32 %v320, %v443
      %vm447 = vcmask 31744
      %448 = vst.msk [vmem:[#allocation2] sm:$0xff] %vm447, %v446
      // Predicated region
      $region37: #{discriminator_s_forward.11} parent=31 // pred_check
        %p449 = pneg %p314
      $region38: #{discriminator_s_forward.11} parent=31 // pred_check_branch
        %451 = sbr.rel (%p449) target = $region40
      $region39: #{discriminator_s_forward.11} parent=31 // pred_region
        %v452 = vld [vmem:[#allocation2] sm:$0xff]
        %v453 = vld [vmem:[%s302] sm:$0x1]
        %v455 = vperm.slane %v453, 0
        %v457 = vadd.f32 %v452, %v455
        %vm458 = vcmp.ge.f32.partialorder %v457, 0.0
        %v459 = vmul.f32 %v457, 0.1
        %v460 = vsel %vm458, %v457, %v459
        %461 = vst.msk [vmem:[%s312] sm:$0xff] %vm447, %v460
      $region40: #{discriminator_s_forward.11} parent=31 // pred_fallthru
        _
      %p462 = scmp.lt.s32.totalorder %s20, 255
      %s463 = scalar_select %p462, %s20, 255
      %p464 = scmp.lt.s32.totalorder %s21, 0
      %s465 = scalar_select %p464, %s21, 0
      %p466 = scmp.lt.s32.totalorder %s22, 0
      %s467 = scalar_select %p466, %s22, 0
      %s468 = sadd.s32 %s467, %s465
      %s469 = sadd.s32 %s468, %s463
      %s470 = smul.addr %s469, 8
      %s471 = scalar_lea.vmem %s3, %s470
      // Predicated region
      $region41: #{discriminator_s_forward.11} parent=31 // pred_check
        %p472 = pneg %p150
      $region42: #{discriminator_s_forward.11} parent=31 // pred_check_branch
        %474 = sbr.rel (%p472) target = $region44
      $region43: #{discriminator_s_forward.11} parent=31 // pred_region
        _
      $region44: #{discriminator_s_forward.11} parent=31 // pred_fallthru
        _
    $region32: #{discriminator_s_forward.11} parent=5 // pred_fallthru
      _
    %p475 = scmp.le.s32.totalorder 2, %s9
    // Predicated region
    $region45: #{discriminator_s_forward.11} parent=5 // pred_check
      %p476 = pneg %p475
    $region46: #{discriminator_s_forward.11} parent=5 // pred_check_branch
      %478 = sbr.rel (%p476) target = $region48
    $region47: #{discriminator_s_forward.11} parent=5 // pred_region
      %s479 = ssub.s32 %s9, 2
      // Predicated region
      $region49: #{discriminator_s_forward.11} parent=47 // pred_check
        %p480 = pneg %p156
      $region50: #{discriminator_s_forward.11} parent=47 // pred_check_branch
        %482 = sbr.rel (%p480) target = $region52
      $region51: #{discriminator_s_forward.11} parent=47 // pred_region
        %p483 = scmp.lt.s32.totalorder %s24, 255
        %s484 = scalar_select %p483, %s24, 255
        %p485 = scmp.lt.s32.totalorder %s25, 0
        %s486 = scalar_select %p485, %s25, 0
        %p487 = scmp.lt.s32.totalorder %s26, 0
        %s488 = scalar_select %p487, %s26, 0
        %s489 = sadd.s32 %s488, %s486
        %s490 = sadd.s32 %s489, %s484
        %s491 = smul.addr %s490, 8
        %s492 = scalar_lea.vmem %s3, %s491
      $region52: #{discriminator_s_forward.11} parent=47 // pred_fallthru
        _
    $region48: #{discriminator_s_forward.11} parent=5 // pred_fallthru
      _
  $region6: #{discriminator_s_forward.11} parent=0 // loop_footer
    %s13 = sadd.s32 1, %s9
  $region7: #{discriminator_s_forward.11} parent=0 // loop_footer_branch
    %8 = sbr.rel target = $region3
  $region8: #{discriminator_s_forward.11} parent=0 // loop_exit
    _

// kernel: discriminator_s_forward.12
$region0: #{discriminator_s_forward.12}
  #allocation0 [shape = 'u32[]', space=smem, size = 0x4, offset = 0x4, fixed_abs, tag = 'smem constant byte address 0x4 - core index']
  #allocation1 [shape = 'u32[72,128]{1,0:T(1,128)}', space=vmem, size = 0x9000, scoped, tag = 'internal scratch']
  #allocation2 [shape = 'f32[8,256]{1,0:T(8,128)}', space=vmem, size = 0x2000, scoped, tag = 'scratch operand']
  %s0 = inlined_call_operand.vmem [shape: bf16[1,8,5120], index: 0, kind: input, shape index: {}]
  %s1 = inlined_call_operand.vmem [shape: bf16[1,5120,1024], index: 1, kind: input, shape index: {}]
  %s2 = inlined_call_operand.vmem [shape: f32[1,1,1024], index: 2, kind: input, shape index: {}]
  %s3 = inlined_call_operand.vmem [shape: f32[1,8,1024], index: 3, kind: output, shape index: {}]
  %s4 = sld [smem:[#allocation0]]
  $region91: #{discriminator_s_forward.12} parent=0
    _
  %s6 = ssub.s32 1, %s4
  %s7 = scalar_select 0, %s6, %s4
  $region1: #{discriminator_s_forward.12} parent=0
    #allocation3 [shape = 'u8[524288]{0}', space=vmem, size = 0x80000, scoped, tag = 'input window, operand 1']
    loop: start=0, step=1, limit=42
    $region2: #{discriminator_s_forward.12} parent=1 // loop_pre_header
      _
    $region3: #{discriminator_s_forward.12} parent=1 // loop_header
      %s9 = sphi 0, %s13
      %p10 = scmp.ge.s32.totalorder %s9, 42
      %s16 = sphi 0, %s42
      %s17 = sphi 0, %s38
      %s18 = sphi 0, %s34
      %s19 = sphi 0, %s30
      %s20 = sphi 0, %s16
      %s21 = sphi 0, %s17
      %s22 = sphi 0, %s18
      %s23 = sphi 0, %s19
      %s24 = sphi 0, %s20
      %s25 = sphi 0, %s21
      %s26 = sphi 0, %s22
      %s27 = sphi 0, %s23
      %s49 = sphi 0, %s51
      %s52 = sphi 0, %s49
      %s53 = sphi 0, %s52
      %s69 = sphi 0, %s53
      %s79 = sphi 0, %s81
      %s82 = sphi 0, %s79
      %s83 = sphi 0, %s82
      %s99 = sphi 0, %s83
      %s107 = sphi 0, %s109
      %s110 = sphi 0, %s107
      %s111 = sphi 0, %s110
      %s127 = sphi 0, %s111
      %s137 = sphi 0, %s139
      %s140 = sphi 0, %s137
      %s141 = sphi 0, %s140
      %s157 = sphi 0, %s141
    $region4: #{discriminator_s_forward.12} parent=1 // loop_header_branch
      %12 = sbr.rel (%p10) target = $region8
    $region5: #{discriminator_s_forward.12} parent=1 // loop_body
      %s14 = ssub.s32 %s9, 1
      %s15 = ssub.s32 %s9, 2
      %s28 = sadd.s32 1, %s19
      %p29 = scmp.ge.s32.totalorder %s28, 10
      %s30 = scalar_select %p29, 0, %s28
      %s31 = sadd.s32 1, %s18
      %s32 = scalar_select %p29, %s31, %s18
      %p33 = scmp.ge.s32.totalorder %s32, 4
      %s34 = scalar_select %p33, 0, %s32
      %s35 = sadd.s32 1, %s17
      %s36 = scalar_select %p33, %s35, %s17
      %p37 = scmp.ge.s32.totalorder %s36, 1
      %s38 = scalar_select %p37, 0, %s36
      %s39 = sadd.s32 1, %s16
      %s40 = scalar_select %p37, %s39, %s16
      %p41 = scmp.ge.s32.totalorder %s40, 1
      %s42 = scalar_select %p41, 0, %s40
      %s43 = ssub.s32 %s16, %s42
      %s44 = ssub.s32 %s17, %s38
      %s45 = sor.u32 %s43, %s44
      %s46 = ssub.s32 %s19, %s30
      %s47 = sor.u32 %s45, %s46
      %p48 = scmp.eq.s32.totalorder %s47, 0
      %s50 = sadd.s32 %s49, 1
      %s51 = scalar_select %p48, %s49, %s50
      %p54 = pneg %p48
      %p55 = scmp.eq.s32.totalorder %s9, 39
      %p56 = por %p54, %p55
      %p57 = scmp.ne.s32.totalorder %s49, %s52
      %p58 = scmp.eq.s32.totalorder %s9, 0
      %p59 = por %p57, %p58
      %p60 = scmp.ne.s32.totalorder %s49, %s52
      %p61 = scmp.eq.s32.totalorder %s14, 39
      %p62 = por %p60, %p61
      %p63 = scmp.ne.s32.totalorder %s52, %s53
      %p64 = scmp.eq.s32.totalorder %s14, 0
      %p65 = por %p63, %p64
      %p66 = scmp.ne.s32.totalorder %s52, %s53
      %p67 = scmp.eq.s32.totalorder %s15, 39
      %p68 = por %p66, %p67
      %p70 = scmp.ne.s32.totalorder %s53, %s69
      %p71 = scmp.eq.s32.totalorder %s15, 0
      %p72 = por %p70, %p71
      %s73 = ssub.s32 %s16, %s42
      %s74 = ssub.s32 %s19, %s30
      %s75 = sor.u32 %s73, %s74
      %s76 = ssub.s32 %s18, %s34
      %s77 = sor.u32 %s75, %s76
      %p78 = scmp.eq.s32.totalorder %s77, 0
      %s80 = sadd.s32 %s79, 1
      %s81 = scalar_select %p78, %s79, %s80
      %p84 = pneg %p78
      %p85 = scmp.eq.s32.totalorder %s9, 39
      %p86 = por %p84, %p85
      %p87 = scmp.ne.s32.totalorder %s79, %s82
      %p88 = scmp.eq.s32.totalorder %s9, 0
      %p89 = por %p87, %p88
      %p90 = scmp.ne.s32.totalorder %s79, %s82
      %p91 = scmp.eq.s32.totalorder %s14, 39
      %p92 = por %p90, %p91
      %p93 = scmp.ne.s32.totalorder %s82, %s83
      %p94 = scmp.eq.s32.totalorder %s14, 0
      %p95 = por %p93, %p94
      %p96 = scmp.ne.s32.totalorder %s82, %s83
      %p97 = scmp.eq.s32.totalorder %s15, 39
      %p98 = por %p96, %p97
      %p100 = scmp.ne.s32.totalorder %s83, %s99
      %p101 = scmp.eq.s32.totalorder %s15, 0
      %p102 = por %p100, %p101
      %s103 = ssub.s32 %s16, %s42
      %s104 = ssub.s32 %s18, %s34
      %s105 = sor.u32 %s103, %s104
      %p106 = scmp.eq.s32.totalorder %s105, 0
      %s108 = sadd.s32 %s107, 1
      %s109 = scalar_select %p106, %s107, %s108
      %p112 = pneg %p106
      %p113 = scmp.eq.s32.totalorder %s9, 39
      %p114 = por %p112, %p113
      %p115 = scmp.ne.s32.totalorder %s107, %s110
      %p116 = scmp.eq.s32.totalorder %s9, 0
      %p117 = por %p115, %p116
      %p118 = scmp.ne.s32.totalorder %s107, %s110
      %p119 = scmp.eq.s32.totalorder %s14, 39
      %p120 = por %p118, %p119
      %p121 = scmp.ne.s32.totalorder %s110, %s111
      %p122 = scmp.eq.s32.totalorder %s14, 0
      %p123 = por %p121, %p122
      %p124 = scmp.ne.s32.totalorder %s110, %s111
      %p125 = scmp.eq.s32.totalorder %s15, 39
      %p126 = por %p124, %p125
      %p128 = scmp.ne.s32.totalorder %s111, %s127
      %p129 = scmp.eq.s32.totalorder %s15, 0
      %p130 = por %p128, %p129
      %s131 = ssub.s32 %s16, %s42
      %s132 = ssub.s32 %s17, %s38
      %s133 = sor.u32 %s131, %s132
      %s134 = ssub.s32 %s18, %s34
      %s135 = sor.u32 %s133, %s134
      %p136 = scmp.eq.s32.totalorder %s135, 0
      %s138 = sadd.s32 %s137, 1
      %s139 = scalar_select %p136, %s137, %s138
      %p142 = pneg %p136
      %p143 = scmp.eq.s32.totalorder %s9, 39
      %p144 = por %p142, %p143
      %p145 = scmp.ne.s32.totalorder %s137, %s140
      %p146 = scmp.eq.s32.totalorder %s9, 0
      %p147 = por %p145, %p146
      %p148 = scmp.ne.s32.totalorder %s137, %s140
      %p149 = scmp.eq.s32.totalorder %s14, 39
      %p150 = por %p148, %p149
      %p151 = scmp.ne.s32.totalorder %s140, %s141
      %p152 = scmp.eq.s32.totalorder %s14, 0
      %p153 = por %p151, %p152
      %p154 = scmp.ne.s32.totalorder %s140, %s141
      %p155 = scmp.eq.s32.totalorder %s15, 39
      %p156 = por %p154, %p155
      %p158 = scmp.ne.s32.totalorder %s141, %s157
      %p159 = scmp.eq.s32.totalorder %s15, 0
      %p160 = por %p158, %p159
      %p161 = scmp.le.s32.totalorder 1, %s9
      %p162 = scmp.lt.s32.totalorder %s9, 41
      %p163 = pnand %p161, %p162
      %p164 = pneg %p163
      // Predicated region
      $region9: #{discriminator_s_forward.12} parent=5 // pred_check
        _
      $region10: #{discriminator_s_forward.12} parent=5 // pred_check_branch
        %166 = sbr.rel (%p163) target = $region12
      $region11: #{discriminator_s_forward.12} parent=5 // pred_region
        %s167 = ssub.s32 %s9, 1
      $region12: #{discriminator_s_forward.12} parent=5 // pred_fallthru
        _
      %p168 = scmp.lt.s32.totalorder %s9, 40
      // Predicated region
      $region13: #{discriminator_s_forward.12} parent=5 // pred_check
        %p169 = pneg %p168
      $region14: #{discriminator_s_forward.12} parent=5 // pred_check_branch
        %171 = sbr.rel (%p169) target = $region16
      $region15: #{discriminator_s_forward.12} parent=5 // pred_region
        // Predicated region
        $region17: #{discriminator_s_forward.12} parent=15 // pred_check
          %p172 = pneg %p59
        $region18: #{discriminator_s_forward.12} parent=15 // pred_check_branch
          %174 = sbr.rel (%p172) target = $region20
        $region19: #{discriminator_s_forward.12} parent=15 // pred_region
          %s175 = smul.u32 4, %s19
          %p176 = scmp.lt.s32.totalorder %s16, 0
          %s177 = scalar_select %p176, %s16, 0
          %p178 = scmp.lt.s32.totalorder %s17, 0
          %s179 = scalar_select %p178, %s17, 0
          %p180 = scmp.lt.s32.totalorder %s175, 39
          %s181 = scalar_select %p180, %s175, 39
          %s182 = smul.addr %s179, 40
          %s183 = sadd.s32 %s181, %s182
          %s184 = smul.addr %s177, 40
          %s185 = sadd.s32 %s183, %s184
          %s186 = smul.addr %s185, 4
          %s187 = scalar_lea.vmem %s0, %s186
          %s188 = smul.u32 4, %s19
        $region20: #{discriminator_s_forward.12} parent=15 // pred_fallthru
          _
        // Predicated region
        $region21: #{discriminator_s_forward.12} parent=15 // pred_check
          %p189 = pneg %p89
        $region22: #{discriminator_s_forward.12} parent=15 // pred_check_branch
          %191 = sbr.rel (%p189) target = $region24
        $region23: #{discriminator_s_forward.12} parent=15 // pred_region
          %s192 = sand.u32 %s79, 1
          %s193 = sand.u32 %s79, 1
          %s194 = smul.addr %s193, 512
          %s195 = scalar_lea.vmem [#allocation3], %s194
          %s196 = smul.u32 64, %s19
          %s197 = smul.u32 2, %s18
          %s198 = smul.addr %s196, 8
          %s199 = sadd.s32 %s197, %s198
          %s200 = smul.addr %s16, 5120
          %s201 = sadd.s32 %s199, %s200
          %s202 = smul.addr %s201, 4
          %s203 = scalar_lea.vmem %s1, %s202
          // Predicated region
          $region25: #{discriminator_s_forward.12} parent=23 // pred_check
            _
          $region26: #{discriminator_s_forward.12} parent=23 // pred_check_branch
            %205 = sbr.rel (0) target = $region28
          $region27: #{discriminator_s_forward.12} parent=23 // pred_region
            // Predicated region
            $region29: #{discriminator_s_forward.12} parent=27 // pred_check
              _
            $region30: #{discriminator_s_forward.12} parent=27 // pred_check_branch
              %207 = sbr.rel (0) target = $region32
            $region31: #{discriminator_s_forward.12} parent=27 // pred_region
              // Predicated region
              $region44: #{discriminator_s_forward.12} parent=31 // pred_check
                _
              $region45: #{discriminator_s_forward.12} parent=31 // pred_check_branch
                %349 = sbr.rel (0) target = $region47
              $region46: #{discriminator_s_forward.12} parent=31 // pred_region
                loop: start=0, step=1, limit=1
                $region48: #{discriminator_s_forward.12} parent=46 // loop_pre_header
                  _
                $region49: #{discriminator_s_forward.12} parent=46 // loop_header
                  %s351 = sphi 0, %s355
                  %p352 = scmp.ge.s32.totalorder %s351, 1
                  %s356 = sphi %s203, %s203
                  %s357 = sphi %s195, %s195
                $region50: #{discriminator_s_forward.12} parent=46 // loop_header_branch
                  %354 = sbr.rel (%p352) target = $region54
                $region51: #{discriminator_s_forward.12} parent=46 // loop_body
                  %v358 = vld [vmem:[%s356] sm:$0xff]
                  %359 = vst [vmem:[%s357] sm:$0xff] %v358
                  %v360 = vld [vmem:[%s356 + $0x20] sm:$0xff]
                  %361 = vst [vmem:[%s357 + $0x8] sm:$0xff] %v360
                  %v362 = vld [vmem:[%s356 + $0x40] sm:$0xff]
                  %363 = vst [vmem:[%s357 + $0x10] sm:$0xff] %v362
                  %v364 = vld [vmem:[%s356 + $0x60] sm:$0xff]
                  %365 = vst [vmem:[%s357 + $0x18] sm:$0xff] %v364
                  %v366 = vld [vmem:[%s356 + $0x80] sm:$0xff]
                  %367 = vst [vmem:[%s357 + $0x20] sm:$0xff] %v366
                  %v368 = vld [vmem:[%s356 + $0xa0] sm:$0xff]
                  %369 = vst [vmem:[%s357 + $0x28] sm:$0xff] %v368
                  %v370 = vld [vmem:[%s356 + $0xc0] sm:$0xff]
                  %371 = vst [vmem:[%s357 + $0x30] sm:$0xff] %v370
                  %v372 = vld [vmem:[%s356 + $0xe0] sm:$0xff]
                  %373 = vst [vmem:[%s357 + $0x38] sm:$0xff] %v372
                  %v374 = vld [vmem:[%s356 + $0x100] sm:$0xff]
                  %375 = vst [vmem:[%s357 + $0x40] sm:$0xff] %v374
                  %v376 = vld [vmem:[%s356 + $0x120] sm:$0xff]
                  %377 = vst [vmem:[%s357 + $0x48] sm:$0xff] %v376
                  %v378 = vld [vmem:[%s356 + $0x140] sm:$0xff]
                  %379 = vst [vmem:[%s357 + $0x50] sm:$0xff] %v378
                  %v380 = vld [vmem:[%s356 + $0x160] sm:$0xff]
                  %381 = vst [vmem:[%s357 + $0x58] sm:$0xff] %v380
                  %v382 = vld [vmem:[%s356 + $0x180] sm:$0xff]
                  %383 = vst [vmem:[%s357 + $0x60] sm:$0xff] %v382
                  %v384 = vld [vmem:[%s356 + $0x1a0] sm:$0xff]
                  %385 = vst [vmem:[%s357 + $0x68] sm:$0xff] %v384
                  %v386 = vld [vmem:[%s356 + $0x1c0] sm:$0xff]
                  %387 = vst [vmem:[%s357 + $0x70] sm:$0xff] %v386
                  %v388 = vld [vmem:[%s356 + $0x1e0] sm:$0xff]
                  %389 = vst [vmem:[%s357 + $0x78] sm:$0xff] %v388
                  %v390 = vld [vmem:[%s356 + $0x200] sm:$0xff]
                  %391 = vst [vmem:[%s357 + $0x80] sm:$0xff] %v390
                  %v392 = vld [vmem:[%s356 + $0x220] sm:$0xff]
                  %393 = vst [vmem:[%s357 + $0x88] sm:$0xff] %v392
                  %v394 = vld [vmem:[%s356 + $0x240] sm:$0xff]
                  %395 = vst [vmem:[%s357 + $0x90] sm:$0xff] %v394
                  %v396 = vld [vmem:[%s356 + $0x260] sm:$0xff]
                  %397 = vst [vmem:[%s357 + $0x98] sm:$0xff] %v396
                  %v398 = vld [vmem:[%s356 + $0x280] sm:$0xff]
                  %399 = vst [vmem:[%s357 + $0xa0] sm:$0xff] %v398
                  %v400 = vld [vmem:[%s356 + $0x2a0] sm:$0xff]
                  %401 = vst [vmem:[%s357 + $0xa8] sm:$0xff] %v400
                  %v402 = vld [vmem:[%s356 + $0x2c0] sm:$0xff]
                  %403 = vst [vmem:[%s357 + $0xb0] sm:$0xff] %v402
                  %v404 = vld [vmem:[%s356 + $0x2e0] sm:$0xff]
                  %405 = vst [vmem:[%s357 + $0xb8] sm:$0xff] %v404
                  %v406 = vld [vmem:[%s356 + $0x300] sm:$0xff]
                  %407 = vst [vmem:[%s357 + $0xc0] sm:$0xff] %v406
                  %v408 = vld [vmem:[%s356 + $0x320] sm:$0xff]
                  %409 = vst [vmem:[%s357 + $0xc8] sm:$0xff] %v408
                  %v410 = vld [vmem:[%s356 + $0x340] sm:$0xff]
                  %411 = vst [vmem:[%s357 + $0xd0] sm:$0xff] %v410
                  %v412 = vld [vmem:[%s356 + $0x360] sm:$0xff]
                  %413 = vst [vmem:[%s357 + $0xd8] sm:$0xff] %v412
                  %v414 = vld [vmem:[%s356 + $0x380] sm:$0xff]
                  %415 = vst [vmem:[%s357 + $0xe0] sm:$0xff] %v414
                  %v416 = vld [vmem:[%s356 + $0x3a0] sm:$0xff]
                  %417 = vst [vmem:[%s357 + $0xe8] sm:$0xff] %v416
                  %v418 = vld [vmem:[%s356 + $0x3c0] sm:$0xff]
                  %419 = vst [vmem:[%s357 + $0xf0] sm:$0xff] %v418
                  %v420 = vld [vmem:[%s356 + $0x3e0] sm:$0xff]
                  %421 = vst [vmem:[%s357 + $0xf8] sm:$0xff] %v420
                  %v422 = vld [vmem:[%s356 + $0x400] sm:$0xff]
                  %423 = vst [vmem:[%s357 + $0x100] sm:$0xff] %v422
                  %v424 = vld [vmem:[%s356 + $0x420] sm:$0xff]
                  %425 = vst [vmem:[%s357 + $0x108] sm:$0xff] %v424
                  %v426 = vld [vmem:[%s356 + $0x440] sm:$0xff]
                  %427 = vst [vmem:[%s357 + $0x110] sm:$0xff] %v426
                  %v428 = vld [vmem:[%s356 + $0x460] sm:$0xff]
                  %429 = vst [vmem:[%s357 + $0x118] sm:$0xff] %v428
                  %v430 = vld [vmem:[%s356 + $0x480] sm:$0xff]
                  %431 = vst [vmem:[%s357 + $0x120] sm:$0xff] %v430
                  %v432 = vld [vmem:[%s356 + $0x4a0] sm:$0xff]
                  %433 = vst [vmem:[%s357 + $0x128] sm:$0xff] %v432
                  %v434 = vld [vmem:[%s356 + $0x4c0] sm:$0xff]
                  %435 = vst [vmem:[%s357 + $0x130] sm:$0xff] %v434
                  %v436 = vld [vmem:[%s356 + $0x4e0] sm:$0xff]
                  %437 = vst [vmem:[%s357 + $0x138] sm:$0xff] %v436
                  %v438 = vld [vmem:[%s356 + $0x500] sm:$0xff]
                  %439 = vst [vmem:[%s357 + $0x140] sm:$0xff] %v438
                  %v440 = vld [vmem:[%s356 + $0x520] sm:$0xff]
                  %441 = vst [vmem:[%s357 + $0x148] sm:$0xff] %v440
                  %v442 = vld [vmem:[%s356 + $0x540] sm:$0xff]
                  %443 = vst [vmem:[%s357 + $0x150] sm:$0xff] %v442
                  %v444 = vld [vmem:[%s356 + $0x560] sm:$0xff]
                  %445 = vst [vmem:[%s357 + $0x158] sm:$0xff] %v444
                  %v446 = vld [vmem:[%s356 + $0x580] sm:$0xff]
                  %447 = vst [vmem:[%s357 + $0x160] sm:$0xff] %v446
                  %v448 = vld [vmem:[%s356 + $0x5a0] sm:$0xff]
                  %449 = vst [vmem:[%s357 + $0x168] sm:$0xff] %v448
                  %v450 = vld [vmem:[%s356 + $0x5c0] sm:$0xff]
                  %451 = vst [vmem:[%s357 + $0x170] sm:$0xff] %v450
                  %v452 = vld [vmem:[%s356 + $0x5e0] sm:$0xff]
                  %453 = vst [vmem:[%s357 + $0x178] sm:$0xff] %v452
                  %v454 = vld [vmem:[%s356 + $0x600] sm:$0xff]
                  %455 = vst [vmem:[%s357 + $0x180] sm:$0xff] %v454
                  %v456 = vld [vmem:[%s356 + $0x620] sm:$0xff]
                  %457 = vst [vmem:[%s357 + $0x188] sm:$0xff] %v456
                  %v458 = vld [vmem:[%s356 + $0x640] sm:$0xff]
                  %459 = vst [vmem:[%s357 + $0x190] sm:$0xff] %v458
                  %v460 = vld [vmem:[%s356 + $0x660] sm:$0xff]
                  %461 = vst [vmem:[%s357 + $0x198] sm:$0xff] %v460
                  %v462 = vld [vmem:[%s356 + $0x680] sm:$0xff]
                  %463 = vst [vmem:[%s357 + $0x1a0] sm:$0xff] %v462
                  %v464 = vld [vmem:[%s356 + $0x6a0] sm:$0xff]
                  %465 = vst [vmem:[%s357 + $0x1a8] sm:$0xff] %v464
                  %v466 = vld [vmem:[%s356 + $0x6c0] sm:$0xff]
                  %467 = vst [vmem:[%s357 + $0x1b0] sm:$0xff] %v466
                  %v468 = vld [vmem:[%s356 + $0x6e0] sm:$0xff]
                  %469 = vst [vmem:[%s357 + $0x1b8] sm:$0xff] %v468
                  %v470 = vld [vmem:[%s356 + $0x700] sm:$0xff]
                  %471 = vst [vmem:[%s357 + $0x1c0] sm:$0xff] %v470
                  %v472 = vld [vmem:[%s356 + $0x720] sm:$0xff]
                  %473 = vst [vmem:[%s357 + $0x1c8] sm:$0xff] %v472
                  %v474 = vld [vmem:[%s356 + $0x740] sm:$0xff]
                  %475 = vst [vmem:[%s357 + $0x1d0] sm:$0xff] %v474
                  %v476 = vld [vmem:[%s356 + $0x760] sm:$0xff]
                  %477 = vst [vmem:[%s357 + $0x1d8] sm:$0xff] %v476
                  %v478 = vld [vmem:[%s356 + $0x780] sm:$0xff]
                  %479 = vst [vmem:[%s357 + $0x1e0] sm:$0xff] %v478
                  %v480 = vld [vmem:[%s356 + $0x7a0] sm:$0xff]
                  %481 = vst [vmem:[%s357 + $0x1e8] sm:$0xff] %v480
                  %v482 = vld [vmem:[%s356 + $0x7c0] sm:$0xff]
                  %483 = vst [vmem:[%s357 + $0x1f0] sm:$0xff] %v482
                  %v484 = vld [vmem:[%s356 + $0x7e0] sm:$0xff]
                  %485 = vst [vmem:[%s357 + $0x1f8] sm:$0xff] %v484
                $region52: #{discriminator_s_forward.12} parent=46 // loop_footer
                  %s355 = sadd.s32 1, %s351
                $region53: #{discriminator_s_forward.12} parent=46 // loop_footer_branch
                  %350 = sbr.rel target = $region49
                $region54: #{discriminator_s_forward.12} parent=46 // loop_exit
                  _
              $region47: #{discriminator_s_forward.12} parent=31 // pred_fallthru
                _
              // Predicated region
              $region55: #{discriminator_s_forward.12} parent=31 // pred_check
                _
              $region56: #{discriminator_s_forward.12} parent=31 // pred_check_branch
                %487 = sbr.rel target = $region58
              $region57: #{discriminator_s_forward.12} parent=31 // pred_region
                _
              $region58: #{discriminator_s_forward.12} parent=31 // pred_fallthru
                _
            $region32: #{discriminator_s_forward.12} parent=27 // pred_fallthru
              _
            // Predicated region
            $region33: #{discriminator_s_forward.12} parent=27 // pred_check
              _
            $region34: #{discriminator_s_forward.12} parent=27 // pred_check_branch
              %209 = sbr.rel target = $region36
            $region35: #{discriminator_s_forward.12} parent=27 // pred_region
              %s211 = ssub.s32 256, 1
              loop: start=0, step=1, limit=1
              $region37: #{discriminator_s_forward.12} parent=35 // loop_pre_header
                _
              $region38: #{discriminator_s_forward.12} parent=35 // loop_header
                %s213 = sphi 0, %s217
                %p214 = scmp.ge.s32.totalorder %s213, 1
                %s218 = sphi %s203, %s203
                %s219 = sphi %s195, %s195
              $region39: #{discriminator_s_forward.12} parent=35 // loop_header_branch
                %216 = sbr.rel (%p214) target = $region43
              $region40: #{discriminator_s_forward.12} parent=35 // loop_body
                %v220 = vld [vmem:[%s218] sm:%s211]
                %221 = vst [vmem:[%s219] sm:%s211] %v220
                %v222 = vld [vmem:[%s218 + $0x20] sm:%s211]
                %223 = vst [vmem:[%s219 + $0x8] sm:%s211] %v222
                %v224 = vld [vmem:[%s218 + $0x40] sm:%s211]
                %225 = vst [vmem:[%s219 + $0x10] sm:%s211] %v224
                %v226 = vld [vmem:[%s218 + $0x60] sm:%s211]
                %227 = vst [vmem:[%s219 + $0x18] sm:%s211] %v226
                %v228 = vld [vmem:[%s218 + $0x80] sm:%s211]
                %229 = vst [vmem:[%s219 + $0x20] sm:%s211] %v228
                %v230 = vld [vmem:[%s218 + $0xa0] sm:%s211]
                %231 = vst [vmem:[%s219 + $0x28] sm:%s211] %v230
                %v232 = vld [vmem:[%s218 + $0xc0] sm:%s211]
                %233 = vst [vmem:[%s219 + $0x30] sm:%s211] %v232
                %v234 = vld [vmem:[%s218 + $0xe0] sm:%s211]
                %235 = vst [vmem:[%s219 + $0x38] sm:%s211] %v234
                %v236 = vld [vmem:[%s218 + $0x100] sm:%s211]
                %237 = vst [vmem:[%s219 + $0x40] sm:%s211] %v236
                %v238 = vld [vmem:[%s218 + $0x120] sm:%s211]
                %239 = vst [vmem:[%s219 + $0x48] sm:%s211] %v238
                %v240 = vld [vmem:[%s218 + $0x140] sm:%s211]
                %241 = vst [vmem:[%s219 + $0x50] sm:%s211] %v240
                %v242 = vld [vmem:[%s218 + $0x160] sm:%s211]
                %243 = vst [vmem:[%s219 + $0x58] sm:%s211] %v242
                %v244 = vld [vmem:[%s218 + $0x180] sm:%s211]
                %245 = vst [vmem:[%s219 + $0x60] sm:%s211] %v244
                %v246 = vld [vmem:[%s218 + $0x1a0] sm:%s211]
                %247 = vst [vmem:[%s219 + $0x68] sm:%s211] %v246
                %v248 = vld [vmem:[%s218 + $0x1c0] sm:%s211]
                %249 = vst [vmem:[%s219 + $0x70] sm:%s211] %v248
                %v250 = vld [vmem:[%s218 + $0x1e0] sm:%s211]
                %251 = vst [vmem:[%s219 + $0x78] sm:%s211] %v250
                %v252 = vld [vmem:[%s218 + $0x200] sm:%s211]
                %253 = vst [vmem:[%s219 + $0x80] sm:%s211] %v252
                %v254 = vld [vmem:[%s218 + $0x220] sm:%s211]
                %255 = vst [vmem:[%s219 + $0x88] sm:%s211] %v254
                %v256 = vld [vmem:[%s218 + $0x240] sm:%s211]
                %257 = vst [vmem:[%s219 + $0x90] sm:%s211] %v256
                %v258 = vld [vmem:[%s218 + $0x260] sm:%s211]
                %259 = vst [vmem:[%s219 + $0x98] sm:%s211] %v258
                %v260 = vld [vmem:[%s218 + $0x280] sm:%s211]
                %261 = vst [vmem:[%s219 + $0xa0] sm:%s211] %v260
                %v262 = vld [vmem:[%s218 + $0x2a0] sm:%s211]
                %263 = vst [vmem:[%s219 + $0xa8] sm:%s211] %v262
                %v264 = vld [vmem:[%s218 + $0x2c0] sm:%s211]
                %265 = vst [vmem:[%s219 + $0xb0] sm:%s211] %v264
                %v266 = vld [vmem:[%s218 + $0x2e0] sm:%s211]
                %267 = vst [vmem:[%s219 + $0xb8] sm:%s211] %v266
                %v268 = vld [vmem:[%s218 + $0x300] sm:%s211]
                %269 = vst [vmem:[%s219 + $0xc0] sm:%s211] %v268
                %v270 = vld [vmem:[%s218 + $0x320] sm:%s211]
                %271 = vst [vmem:[%s219 + $0xc8] sm:%s211] %v270
                %v272 = vld [vmem:[%s218 + $0x340] sm:%s211]
                %273 = vst [vmem:[%s219 + $0xd0] sm:%s211] %v272
                %v274 = vld [vmem:[%s218 + $0x360] sm:%s211]
                %275 = vst [vmem:[%s219 + $0xd8] sm:%s211] %v274
                %v276 = vld [vmem:[%s218 + $0x380] sm:%s211]
                %277 = vst [vmem:[%s219 + $0xe0] sm:%s211] %v276
                %v278 = vld [vmem:[%s218 + $0x3a0] sm:%s211]
                %279 = vst [vmem:[%s219 + $0xe8] sm:%s211] %v278
                %v280 = vld [vmem:[%s218 + $0x3c0] sm:%s211]
                %281 = vst [vmem:[%s219 + $0xf0] sm:%s211] %v280
                %v282 = vld [vmem:[%s218 + $0x3e0] sm:%s211]
                %283 = vst [vmem:[%s219 + $0xf8] sm:%s211] %v282
                %v284 = vld [vmem:[%s218 + $0x400] sm:%s211]
                %285 = vst [vmem:[%s219 + $0x100] sm:%s211] %v284
                %v286 = vld [vmem:[%s218 + $0x420] sm:%s211]
                %287 = vst [vmem:[%s219 + $0x108] sm:%s211] %v286
                %v288 = vld [vmem:[%s218 + $0x440] sm:%s211]
                %289 = vst [vmem:[%s219 + $0x110] sm:%s211] %v288
                %v290 = vld [vmem:[%s218 + $0x460] sm:%s211]
                %291 = vst [vmem:[%s219 + $0x118] sm:%s211] %v290
                %v292 = vld [vmem:[%s218 + $0x480] sm:%s211]
                %293 = vst [vmem:[%s219 + $0x120] sm:%s211] %v292
                %v294 = vld [vmem:[%s218 + $0x4a0] sm:%s211]
                %295 = vst [vmem:[%s219 + $0x128] sm:%s211] %v294
                %v296 = vld [vmem:[%s218 + $0x4c0] sm:%s211]
                %297 = vst [vmem:[%s219 + $0x130] sm:%s211] %v296
                %v298 = vld [vmem:[%s218 + $0x4e0] sm:%s211]
                %299 = vst [vmem:[%s219 + $0x138] sm:%s211] %v298
                %v300 = vld [vmem:[%s218 + $0x500] sm:%s211]
                %301 = vst [vmem:[%s219 + $0x140] sm:%s211] %v300
                %v302 = vld [vmem:[%s218 + $0x520] sm:%s211]
                %303 = vst [vmem:[%s219 + $0x148] sm:%s211] %v302
                %v304 = vld [vmem:[%s218 + $0x540] sm:%s211]
                %305 = vst [vmem:[%s219 + $0x150] sm:%s211] %v304
                %v306 = vld [vmem:[%s218 + $0x560] sm:%s211]
                %307 = vst [vmem:[%s219 + $0x158] sm:%s211] %v306
                %v308 = vld [vmem:[%s218 + $0x580] sm:%s211]
                %309 = vst [vmem:[%s219 + $0x160] sm:%s211] %v308
                %v310 = vld [vmem:[%s218 + $0x5a0] sm:%s211]
                %311 = vst [vmem:[%s219 + $0x168] sm:%s211] %v310
                %v312 = vld [vmem:[%s218 + $0x5c0] sm:%s211]
                %313 = vst [vmem:[%s219 + $0x170] sm:%s211] %v312
                %v314 = vld [vmem:[%s218 + $0x5e0] sm:%s211]
                %315 = vst [vmem:[%s219 + $0x178] sm:%s211] %v314
                %v316 = vld [vmem:[%s218 + $0x600] sm:%s211]
                %317 = vst [vmem:[%s219 + $0x180] sm:%s211] %v316
                %v318 = vld [vmem:[%s218 + $0x620] sm:%s211]
                %319 = vst [vmem:[%s219 + $0x188] sm:%s211] %v318
                %v320 = vld [vmem:[%s218 + $0x640] sm:%s211]
                %321 = vst [vmem:[%s219 + $0x190] sm:%s211] %v320
                %v322 = vld [vmem:[%s218 + $0x660] sm:%s211]
                %323 = vst [vmem:[%s219 + $0x198] sm:%s211] %v322
                %v324 = vld [vmem:[%s218 + $0x680] sm:%s211]
                %325 = vst [vmem:[%s219 + $0x1a0] sm:%s211] %v324
                %v326 = vld [vmem:[%s218 + $0x6a0] sm:%s211]
                %327 = vst [vmem:[%s219 + $0x1a8] sm:%s211] %v326
                %v328 = vld [vmem:[%s218 + $0x6c0] sm:%s211]
                %329 = vst [vmem:[%s219 + $0x1b0] sm:%s211] %v328
                %v330 = vld [vmem:[%s218 + $0x6e0] sm:%s211]
                %331 = vst [vmem:[%s219 + $0x1b8] sm:%s211] %v330
                %v332 = vld [vmem:[%s218 + $0x700] sm:%s211]
                %333 = vst [vmem:[%s219 + $0x1c0] sm:%s211] %v332
                %v334 = vld [vmem:[%s218 + $0x720] sm:%s211]
                %335 = vst [vmem:[%s219 + $0x1c8] sm:%s211] %v334
                %v336 = vld [vmem:[%s218 + $0x740] sm:%s211]
                %337 = vst [vmem:[%s219 + $0x1d0] sm:%s211] %v336
                %v338 = vld [vmem:[%s218 + $0x760] sm:%s211]
                %339 = vst [vmem:[%s219 + $0x1d8] sm:%s211] %v338
                %v340 = vld [vmem:[%s218 + $0x780] sm:%s211]
                %341 = vst [vmem:[%s219 + $0x1e0] sm:%s211] %v340
                %v342 = vld [vmem:[%s218 + $0x7a0] sm:%s211]
                %343 = vst [vmem:[%s219 + $0x1e8] sm:%s211] %v342
                %v344 = vld [vmem:[%s218 + $0x7c0] sm:%s211]
                %345 = vst [vmem:[%s219 + $0x1f0] sm:%s211] %v344
                %v346 = vld [vmem:[%s218 + $0x7e0] sm:%s211]
                %347 = vst [vmem:[%s219 + $0x1f8] sm:%s211] %v346
              $region41: #{discriminator_s_forward.12} parent=35 // loop_footer
                %s217 = sadd.s32 1, %s213
              $region42: #{discriminator_s_forward.12} parent=35 // loop_footer_branch
                %212 = sbr.rel target = $region38
              $region43: #{discriminator_s_forward.12} parent=35 // loop_exit
                _
            $region36: #{discriminator_s_forward.12} parent=27 // pred_fallthru
              _
          $region28: #{discriminator_s_forward.12} parent=23 // pred_fallthru
            _
          %488 = vnop
        $region24: #{discriminator_s_forward.12} parent=15 // pred_fallthru
          _
        // Predicated region
        $region59: #{discriminator_s_forward.12} parent=15 // pred_check
          %p489 = pneg %p117
        $region60: #{discriminator_s_forward.12} parent=15 // pred_check_branch
          %491 = sbr.rel (%p489) target = $region62
        $region61: #{discriminator_s_forward.12} parent=15 // pred_region
          %s492 = smul.u32 2, %s18
          %p493 = scmp.lt.s32.totalorder %s16, 0
          %s494 = scalar_select %p493, %s16, 0
          %p495 = scmp.lt.s32.totalorder %s492, 7
          %s496 = scalar_select %p495, %s492, 7
          %s497 = smul.addr %s494, 8
          %s498 = sadd.s32 %s496, %s497
          %s499 = scalar_lea.vmem %s2, %s498
          %s500 = smul.u32 2, %s18
        $region62: #{discriminator_s_forward.12} parent=15 // pred_fallthru
          _
      $region16: #{discriminator_s_forward.12} parent=5 // pred_fallthru
        _
      %p501 = scmp.le.s32.totalorder 1, %s9
      %p502 = scmp.lt.s32.totalorder %s9, 41
      %p503 = pnand %p501, %p502
      %p504 = pneg %p503
      // Predicated region
      $region63: #{discriminator_s_forward.12} parent=5 // pred_check
        _
      $region64: #{discriminator_s_forward.12} parent=5 // pred_check_branch
        %506 = sbr.rel (%p503) target = $region66
      $region65: #{discriminator_s_forward.12} parent=5 // pred_region
        %s507 = ssub.s32 %s9, 1
        %s508 = sand.u32 %s82, 1
        %s509 = sand.u32 %s82, 1
        %s510 = smul.addr %s509, 512
        %s511 = scalar_lea.vmem [#allocation3], %s510
        // Predicated region
        $region67: #{discriminator_s_forward.12} parent=65 // pred_check
          %p512 = pneg %p95
        $region68: #{discriminator_s_forward.12} parent=65 // pred_check_branch
          %514 = sbr.rel (%p512) target = $region70
        $region69: #{discriminator_s_forward.12} parent=65 // pred_region
          _
        $region70: #{discriminator_s_forward.12} parent=65 // pred_fallthru
          _
        %s515 = smul.u32 4, %s23
        %p516 = scmp.lt.s32.totalorder %s20, 0
        %s517 = scalar_select %p516, %s20, 0
        %p518 = scmp.lt.s32.totalorder %s21, 0
        %s519 = scalar_select %p518, %s21, 0
        %p520 = scmp.lt.s32.totalorder %s515, 39
        %s521 = scalar_select %p520, %s515, 39
        %s522 = smul.addr %s519, 40
        %s523 = sadd.s32 %s521, %s522
        %s524 = smul.addr %s517, 40
        %s525 = sadd.s32 %s523, %s524
        %s526 = smul.addr %s525, 4
        %s527 = scalar_lea.vmem %s0, %s526
        %p528 = pneg %p65
        %p529 = pneg %p62
        %s530 = sand.u32 %s82, 1
        %s531 = sand.u32 %s82, 1
        %s532 = smul.addr %s531, 512
        %s533 = scalar_lea.vmem [#allocation3], %s532
        %p534 = pneg %p95
        %p535 = pneg %p92
        %s536 = smul.u32 2, %s22
        %p537 = scmp.lt.s32.totalorder %s20, 0
        %s538 = scalar_select %p537, %s20, 0
        %p539 = scmp.lt.s32.totalorder %s536, 7
        %s540 = scalar_select %p539, %s536, 7
        %s541 = smul.addr %s538, 8
        %s542 = sadd.s32 %s540, %s541
        %s543 = scalar_lea.vmem %s2, %s542
        %p544 = pneg %p123
        %p545 = pneg %p120
        %p546 = pneg %p153
        %p547 = pneg %p150
        %s548 = smul.u32 2, %s22
        %p549 = scmp.lt.s32.totalorder %s20, 0
        %s550 = scalar_select %p549, %s20, 0
        %p551 = scmp.lt.s32.totalorder %s21, 0
        %s552 = scalar_select %p551, %s21, 0
        %p553 = scmp.lt.s32.totalorder %s548, 7
        %s554 = scalar_select %p553, %s548, 7
        %s555 = smul.addr %s552, 8
        %s556 = sadd.s32 %s554, %s555
        %s557 = smul.addr %s550, 8
        %s558 = sadd.s32 %s556, %s557
        %s559 = smul.addr %s558, 8
        %s560 = scalar_lea.vmem %s3, %s559
        %s561 = smul.u32 4, %s23
        %p562 = scmp.lt.s32.totalorder %s20, 0
        %s563 = scalar_select %p562, %s20, 0
        %p564 = scmp.lt.s32.totalorder %s21, 0
        %s565 = scalar_select %p564, %s21, 0
        %p566 = scmp.lt.s32.totalorder %s561, 39
        %s567 = scalar_select %p566, %s561, 39
        %s568 = smul.addr %s565, 40
        %s569 = sadd.s32 %s567, %s568
        %s570 = smul.addr %s563, 40
        %s571 = sadd.s32 %s569, %s570
        %s572 = smul.addr %s571, 4
        %s573 = scalar_lea.vmem %s0, %s572
        %s574 = smul.u32 4, %s23
        %s575 = smul.u32 64, %s23
        %s576 = smul.u32 2, %s22
        %s577 = smul.u32 2, %s22
        %p578 = scmp.lt.s32.totalorder %s20, 0
        %s579 = scalar_select %p578, %s20, 0
        %p580 = scmp.lt.s32.totalorder %s577, 7
        %s581 = scalar_select %p580, %s577, 7
        %s582 = smul.addr %s579, 8
        %s583 = sadd.s32 %s581, %s582
        %s584 = scalar_lea.vmem %s2, %s583
        %s585 = smul.u32 2, %s22
        %s586 = smul.u32 2, %s22
        %p587 = scmp.lt.s32.totalorder %s20, 0
        %s588 = scalar_select %p587, %s20, 0
        %p589 = scmp.lt.s32.totalorder %s21, 0
        %s590 = scalar_select %p589, %s21, 0
        %p591 = scmp.lt.s32.totalorder %s586, 7
        %s592 = scalar_select %p591, %s586, 7
        %s593 = smul.addr %s590, 8
        %s594 = sadd.s32 %s592, %s593
        %s595 = smul.addr %s588, 8
        %s596 = sadd.s32 %s594, %s595
        %s597 = smul.addr %s596, 8
        %s598 = scalar_lea.vmem %s3, %s597
        %s599 = smul.u32 2, %s22
        %p600 = scmp.eq.s32.totalorder %s23, 0
        // Predicated region
        $region71: #{discriminator_s_forward.12} parent=65 // pred_check
          %p601 = pneg %p600
        $region72: #{discriminator_s_forward.12} parent=65 // pred_check_branch
          %603 = sbr.rel (%p601) target = $region74
        $region73: #{discriminator_s_forward.12} parent=65 // pred_region
          %604 = vst [vmem:[#allocation2] sm:$0xff] 0.0
          %605 = vst [vmem:[#allocation2 + $0x8] sm:$0xff] 0.0
        $region74: #{discriminator_s_forward.12} parent=65 // pred_fallthru
          _
        %v606 = vld [vmem:[#allocation2] sm:$0xff]
        %v607 = vld [vmem:[#allocation2 + $0x8] sm:$0xff]
        %v608 = vld [vmem:[%s573] sm:$0xff]
        %v609 = vld [vmem:[%s573 + $0x8] sm:$0xff]
        %v610 = vld [vmem:[%s511] sm:$0xff]
        %v611 = vld [vmem:[%s511 + $0x8] sm:$0xff]
        %v612 = vld [vmem:[%s511 + $0x10] sm:$0xff]
        %v613 = vld [vmem:[%s511 + $0x18] sm:$0xff]
        %v614 = vld [vmem:[%s511 + $0x20] sm:$0xff]
        %v615 = vld [vmem:[%s511 + $0x28] sm:$0xff]
        %v616 = vld [vmem:[%s511 + $0x30] sm:$0xff]
        %v617 = vld [vmem:[%s511 + $0x38] sm:$0xff]
        %v618 = vld [vmem:[%s511 + $0x40] sm:$0xff]
        %v619 = vld [vmem:[%s511 + $0x48] sm:$0xff]
        %v620 = vld [vmem:[%s511 + $0x50] sm:$0xff]
        %v621 = vld [vmem:[%s511 + $0x58] sm:$0xff]
        %v622 = vld [vmem:[%s511 + $0x60] sm:$0xff]
        %v623 = vld [vmem:[%s511 + $0x68] sm:$0xff]
        %v624 = vld [vmem:[%s511 + $0x70] sm:$0xff]
        %v625 = vld [vmem:[%s511 + $0x78] sm:$0xff]
        %v626 = vld [vmem:[%s511 + $0x80] sm:$0xff]
        %v627 = vld [vmem:[%s511 + $0x88] sm:$0xff]
        %v628 = vld [vmem:[%s511 + $0x90] sm:$0xff]
        %v629 = vld [vmem:[%s511 + $0x98] sm:$0xff]
        %v630 = vld [vmem:[%s511 + $0xa0] sm:$0xff]
        %v631 = vld [vmem:[%s511 + $0xa8] sm:$0xff]
        %v632 = vld [vmem:[%s511 + $0xb0] sm:$0xff]
        %v633 = vld [vmem:[%s511 + $0xb8] sm:$0xff]
        %v634 = vld [vmem:[%s511 + $0xc0] sm:$0xff]
        %v635 = vld [vmem:[%s511 + $0xc8] sm:$0xff]
        %v636 = vld [vmem:[%s511 + $0xd0] sm:$0xff]
        %v637 = vld [vmem:[%s511 + $0xd8] sm:$0xff]
        %v638 = vld [vmem:[%s511 + $0xe0] sm:$0xff]
        %v639 = vld [vmem:[%s511 + $0xe8] sm:$0xff]
        %v640 = vld [vmem:[%s511 + $0xf0] sm:$0xff]
        %v641 = vld [vmem:[%s511 + $0xf8] sm:$0xff]
        %v642 = vld [vmem:[%s511 + $0x100] sm:$0xff]
        %v643 = vld [vmem:[%s511 + $0x108] sm:$0xff]
        %v644 = vld [vmem:[%s511 + $0x110] sm:$0xff]
        %v645 = vld [vmem:[%s511 + $0x118] sm:$0xff]
        %v646 = vld [vmem:[%s511 + $0x120] sm:$0xff]
        %v647 = vld [vmem:[%s511 + $0x128] sm:$0xff]
        %v648 = vld [vmem:[%s511 + $0x130] sm:$0xff]
        %v649 = vld [vmem:[%s511 + $0x138] sm:$0xff]
        %v650 = vld [vmem:[%s511 + $0x140] sm:$0xff]
        %v651 = vld [vmem:[%s511 + $0x148] sm:$0xff]
        %v652 = vld [vmem:[%s511 + $0x150] sm:$0xff]
        %v653 = vld [vmem:[%s511 + $0x158] sm:$0xff]
        %v654 = vld [vmem:[%s511 + $0x160] sm:$0xff]
        %v655 = vld [vmem:[%s511 + $0x168] sm:$0xff]
        %v656 = vld [vmem:[%s511 + $0x170] sm:$0xff]
        %v657 = vld [vmem:[%s511 + $0x178] sm:$0xff]
        %v658 = vld [vmem:[%s511 + $0x180] sm:$0xff]
        %v659 = vld [vmem:[%s511 + $0x188] sm:$0xff]
        %v660 = vld [vmem:[%s511 + $0x190] sm:$0xff]
        %v661 = vld [vmem:[%s511 + $0x198] sm:$0xff]
        %v662 = vld [vmem:[%s511 + $0x1a0] sm:$0xff]
        %v663 = vld [vmem:[%s511 + $0x1a8] sm:$0xff]
        %v664 = vld [vmem:[%s511 + $0x1b0] sm:$0xff]
        %v665 = vld [vmem:[%s511 + $0x1b8] sm:$0xff]
        %v666 = vld [vmem:[%s511 + $0x1c0] sm:$0xff]
        %v667 = vld [vmem:[%s511 + $0x1c8] sm:$0xff]
        %v668 = vld [vmem:[%s511 + $0x1d0] sm:$0xff]
        %v669 = vld [vmem:[%s511 + $0x1d8] sm:$0xff]
        %v670 = vld [vmem:[%s511 + $0x1e0] sm:$0xff]
        %v671 = vld [vmem:[%s511 + $0x1e8] sm:$0xff]
        %v672 = vld [vmem:[%s511 + $0x1f0] sm:$0xff]
        %v673 = vld [vmem:[%s511 + $0x1f8] sm:$0xff]
        %v676 = vunpack.c.l.b16 %v608
        %v677 = vunpack.c.h.b16 %v608
        %v678 = vunpack.c.l.b16 %v609
        %v679 = vunpack.c.h.b16 %v609
        %v680 = vpack.c.b16 %v676, %v676
        %v681 = vpack.c.b16 %v677, %v677
        %v682 = vpack.c.b16 %v678, %v678
        %v683 = vpack.c.b16 %v679, %v679
        %v752 = vunpack.c.l.b16 %v610
        %v753 = vunpack.c.h.b16 %v610
        %v754 = vunpack.c.l.b16 %v611
        %v755 = vunpack.c.h.b16 %v611
        %v756 = vunpack.c.l.b16 %v612
        %v757 = vunpack.c.h.b16 %v612
        %v758 = vunpack.c.l.b16 %v613
        %v759 = vunpack.c.h.b16 %v613
        %v760 = vunpack.c.l.b16 %v614
        %v761 = vunpack.c.h.b16 %v614
        %v762 = vunpack.c.l.b16 %v615
        %v763 = vunpack.c.h.b16 %v615
        %v764 = vunpack.c.l.b16 %v616
        %v765 = vunpack.c.h.b16 %v616
        %v766 = vunpack.c.l.b16 %v617
        %v767 = vunpack.c.h.b16 %v617
        %v768 = vunpack.c.l.b16 %v618
        %v769 = vunpack.c.h.b16 %v618
        %v770 = vunpack.c.l.b16 %v619
        %v771 = vunpack.c.h.b16 %v619
        %v772 = vunpack.c.l.b16 %v620
        %v773 = vunpack.c.h.b16 %v620
        %v774 = vunpack.c.l.b16 %v621
        %v775 = vunpack.c.h.b16 %v621
        %v776 = vunpack.c.l.b16 %v622
        %v777 = vunpack.c.h.b16 %v622
        %v778 = vunpack.c.l.b16 %v623
        %v779 = vunpack.c.h.b16 %v623
        %v780 = vunpack.c.l.b16 %v624
        %v781 = vunpack.c.h.b16 %v624
        %v782 = vunpack.c.l.b16 %v625
        %v783 = vunpack.c.h.b16 %v625
        %v784 = vunpack.c.l.b16 %v626
        %v785 = vunpack.c.h.b16 %v626
        %v786 = vunpack.c.l.b16 %v627
        %v787 = vunpack.c.h.b16 %v627
        %v788 = vunpack.c.l.b16 %v628
        %v789 = vunpack.c.h.b16 %v628
        %v790 = vunpack.c.l.b16 %v629
        %v791 = vunpack.c.h.b16 %v629
        %v792 = vunpack.c.l.b16 %v630
        %v793 = vunpack.c.h.b16 %v630
        %v794 = vunpack.c.l.b16 %v631
        %v795 = vunpack.c.h.b16 %v631
        %v796 = vunpack.c.l.b16 %v632
        %v797 = vunpack.c.h.b16 %v632
        %v798 = vunpack.c.l.b16 %v633
        %v799 = vunpack.c.h.b16 %v633
        %v800 = vunpack.c.l.b16 %v634
        %v801 = vunpack.c.h.b16 %v634
        %v802 = vunpack.c.l.b16 %v635
        %v803 = vunpack.c.h.b16 %v635
        %v804 = vunpack.c.l.b16 %v636
        %v805 = vunpack.c.h.b16 %v636
        %v806 = vunpack.c.l.b16 %v637
        %v807 = vunpack.c.h.b16 %v637
        %v808 = vunpack.c.l.b16 %v638
        %v809 = vunpack.c.h.b16 %v638
        %v810 = vunpack.c.l.b16 %v639
        %v811 = vunpack.c.h.b16 %v639
        %v812 = vunpack.c.l.b16 %v640
        %v813 = vunpack.c.h.b16 %v640
        %v814 = vunpack.c.l.b16 %v641
        %v815 = vunpack.c.h.b16 %v641
        %v816 = vunpack.c.l.b16 %v642
        %v817 = vunpack.c.h.b16 %v642
        %v818 = vunpack.c.l.b16 %v643
        %v819 = vunpack.c.h.b16 %v643
        %v820 = vunpack.c.l.b16 %v644
        %v821 = vunpack.c.h.b16 %v644
        %v822 = vunpack.c.l.b16 %v645
        %v823 = vunpack.c.h.b16 %v645
        %v824 = vunpack.c.l.b16 %v646
        %v825 = vunpack.c.h.b16 %v646
        %v826 = vunpack.c.l.b16 %v647
        %v827 = vunpack.c.h.b16 %v647
        %v828 = vunpack.c.l.b16 %v648
        %v829 = vunpack.c.h.b16 %v648
        %v830 = vunpack.c.l.b16 %v649
        %v831 = vunpack.c.h.b16 %v649
        %v832 = vunpack.c.l.b16 %v650
        %v833 = vunpack.c.h.b16 %v650
        %v834 = vunpack.c.l.b16 %v651
        %v835 = vunpack.c.h.b16 %v651
        %v836 = vunpack.c.l.b16 %v652
        %v837 = vunpack.c.h.b16 %v652
        %v838 = vunpack.c.l.b16 %v653
        %v839 = vunpack.c.h.b16 %v653
        %v840 = vunpack.c.l.b16 %v654
        %v841 = vunpack.c.h.b16 %v654
        %v842 = vunpack.c.l.b16 %v655
        %v843 = vunpack.c.h.b16 %v655
        %v844 = vunpack.c.l.b16 %v656
        %v845 = vunpack.c.h.b16 %v656
        %v846 = vunpack.c.l.b16 %v657
        %v847 = vunpack.c.h.b16 %v657
        %v848 = vunpack.c.l.b16 %v658
        %v849 = vunpack.c.h.b16 %v658
        %v850 = vunpack.c.l.b16 %v659
        %v851 = vunpack.c.h.b16 %v659
        %v852 = vunpack.c.l.b16 %v660
        %v853 = vunpack.c.h.b16 %v660
        %v854 = vunpack.c.l.b16 %v661
        %v855 = vunpack.c.h.b16 %v661
        %v856 = vunpack.c.l.b16 %v662
        %v857 = vunpack.c.h.b16 %v662
        %v858 = vunpack.c.l.b16 %v663
        %v859 = vunpack.c.h.b16 %v663
        %v860 = vunpack.c.l.b16 %v664
        %v861 = vunpack.c.h.b16 %v664
        %v862 = vunpack.c.l.b16 %v665
        %v863 = vunpack.c.h.b16 %v665
        %v864 = vunpack.c.l.b16 %v666
        %v865 = vunpack.c.h.b16 %v666
        %v866 = vunpack.c.l.b16 %v667
        %v867 = vunpack.c.h.b16 %v667
        %v868 = vunpack.c.l.b16 %v668
        %v869 = vunpack.c.h.b16 %v668
        %v870 = vunpack.c.l.b16 %v669
        %v871 = vunpack.c.h.b16 %v669
        %v872 = vunpack.c.l.b16 %v670
        %v873 = vunpack.c.h.b16 %v670
        %v874 = vunpack.c.l.b16 %v671
        %v875 = vunpack.c.h.b16 %v671
        %v876 = vunpack.c.l.b16 %v672
        %v877 = vunpack.c.h.b16 %v672
        %v878 = vunpack.c.l.b16 %v673
        %v879 = vunpack.c.h.b16 %v673
        %v880 = vpack.c.b16 %v754, %v752
        %v881 = vpack.c.b16 %v755, %v753
        %v882 = vpack.c.b16 %v758, %v756
        %v883 = vpack.c.b16 %v759, %v757
        %v884 = vpack.c.b16 %v762, %v760
        %v885 = vpack.c.b16 %v763, %v761
        %v886 = vpack.c.b16 %v766, %v764
        %v887 = vpack.c.b16 %v767, %v765
        %v888 = vpack.c.b16 %v770, %v768
        %v889 = vpack.c.b16 %v771, %v769
        %v890 = vpack.c.b16 %v774, %v772
        %v891 = vpack.c.b16 %v775, %v773
        %v892 = vpack.c.b16 %v778, %v776
        %v893 = vpack.c.b16 %v779, %v777
        %v894 = vpack.c.b16 %v782, %v780
        %v895 = vpack.c.b16 %v783, %v781
        %v896 = vpack.c.b16 %v786, %v784
        %v897 = vpack.c.b16 %v787, %v785
        %v898 = vpack.c.b16 %v790, %v788
        %v899 = vpack.c.b16 %v791, %v789
        %v900 = vpack.c.b16 %v794, %v792
        %v901 = vpack.c.b16 %v795, %v793
        %v902 = vpack.c.b16 %v798, %v796
        %v903 = vpack.c.b16 %v799, %v797
        %v904 = vpack.c.b16 %v802, %v800
        %v905 = vpack.c.b16 %v803, %v801
        %v906 = vpack.c.b16 %v806, %v804
        %v907 = vpack.c.b16 %v807, %v805
        %v908 = vpack.c.b16 %v810, %v808
        %v909 = vpack.c.b16 %v811, %v809
        %v910 = vpack.c.b16 %v814, %v812
        %v911 = vpack.c.b16 %v815, %v813
        %v912 = vpack.c.b16 %v818, %v816
        %v913 = vpack.c.b16 %v819, %v817
        %v914 = vpack.c.b16 %v822, %v820
        %v915 = vpack.c.b16 %v823, %v821
        %v916 = vpack.c.b16 %v826, %v824
        %v917 = vpack.c.b16 %v827, %v825
        %v918 = vpack.c.b16 %v830, %v828
        %v919 = vpack.c.b16 %v831, %v829
        %v920 = vpack.c.b16 %v834, %v832
        %v921 = vpack.c.b16 %v835, %v833
        %v922 = vpack.c.b16 %v838, %v836
        %v923 = vpack.c.b16 %v839, %v837
        %v924 = vpack.c.b16 %v842, %v840
        %v925 = vpack.c.b16 %v843, %v841
        %v926 = vpack.c.b16 %v846, %v844
        %v927 = vpack.c.b16 %v847, %v845
        %v928 = vpack.c.b16 %v850, %v848
        %v929 = vpack.c.b16 %v851, %v849
        %v930 = vpack.c.b16 %v854, %v852
        %v931 = vpack.c.b16 %v855, %v853
        %v932 = vpack.c.b16 %v858, %v856
        %v933 = vpack.c.b16 %v859, %v857
        %v934 = vpack.c.b16 %v862, %v860
        %v935 = vpack.c.b16 %v863, %v861
        %v936 = vpack.c.b16 %v866, %v864
        %v937 = vpack.c.b16 %v867, %v865
        %v938 = vpack.c.b16 %v870, %v868
        %v939 = vpack.c.b16 %v871, %v869
        %v940 = vpack.c.b16 %v874, %v872
        %v941 = vpack.c.b16 %v875, %v873
        %v942 = vpack.c.b16 %v878, %v876
        %v943 = vpack.c.b16 %v879, %v877
        %1008 = vmatpush.bf16.msra.mxu0 %v894
        %1009 = vmatpush.bf16.msra.mxu0 %v892
        %1010 = vmatpush.bf16.msra.mxu0 %v890
        %1011 = vmatpush.bf16.msra.mxu0 %v888
        %1012 = vmatpush.bf16.msra.mxu0 %v886
        %1013 = vmatpush.bf16.msra.mxu0 %v884
        %1014 = vmatpush.bf16.msra.mxu0 %v882
        %1015 = vmatpush.bf16.msra.mxu0 %v880
        %1016 = vmatmul.bf16.gmra.mxu0 %v680
        %v1017 = vpop.f32.mrf.mxu0
        %v1018 = vadd.f32 0.0, %v1017
        %v1019 = vpop.f32.mrf.mxu0
        %1020 = vdwg.mxu0
        %1021 = vmatpush.bf16.msra.mxu0 %v910
        %1022 = vmatpush.bf16.msra.mxu0 %v908
        %1023 = vmatpush.bf16.msra.mxu0 %v906
        %1024 = vmatpush.bf16.msra.mxu0 %v904
        %1025 = vmatpush.bf16.msra.mxu0 %v902
        %1026 = vmatpush.bf16.msra.mxu0 %v900
        %1027 = vmatpush.bf16.msra.mxu0 %v898
        %1028 = vmatpush.bf16.msra.mxu0 %v896
        %1029 = vmatmul.bf16.gmra.mxu0 %v681
        %v1030 = vpop.f32.mrf.mxu0
        %v1031 = vadd.f32 %v1018, %v1030
        %v1032 = vpop.f32.mrf.mxu0
        %1033 = vdwg.mxu0
        %1034 = vmatpush.bf16.msra.mxu0 %v926
        %1035 = vmatpush.bf16.msra.mxu0 %v924
        %1036 = vmatpush.bf16.msra.mxu0 %v922
        %1037 = vmatpush.bf16.msra.mxu0 %v920
        %1038 = vmatpush.bf16.msra.mxu0 %v918
        %1039 = vmatpush.bf16.msra.mxu0 %v916
        %1040 = vmatpush.bf16.msra.mxu0 %v914
        %1041 = vmatpush.bf16.msra.mxu0 %v912
        %1042 = vmatmul.bf16.gmra.mxu0 %v682
        %v1043 = vpop.f32.mrf.mxu0
        %v1044 = vadd.f32 %v1031, %v1043
        %v1045 = vpop.f32.mrf.mxu0
        %1046 = vdwg.mxu0
        %1047 = vmatpush.bf16.msra.mxu0 %v942
        %1048 = vmatpush.bf16.msra.mxu0 %v940
        %1049 = vmatpush.bf16.msra.mxu0 %v938
        %1050 = vmatpush.bf16.msra.mxu0 %v936
        %1051 = vmatpush.bf16.msra.mxu0 %v934
        %1052 = vmatpush.bf16.msra.mxu0 %v932
        %1053 = vmatpush.bf16.msra.mxu0 %v930
        %1054 = vmatpush.bf16.msra.mxu0 %v928
        %1055 = vmatmul.bf16.gmra.mxu0 %v683
        %v1056 = vpop.f32.mrf.mxu0
        %v1057 = vadd.f32 %v1044, %v1056
        %v1058 = vpop.f32.mrf.mxu0
        %1059 = vdwg.mxu0
        %1060 = vmatpush.bf16.msra.mxu0 %v895
        %1061 = vmatpush.bf16.msra.mxu0 %v893
        %1062 = vmatpush.bf16.msra.mxu0 %v891
        %1063 = vmatpush.bf16.msra.mxu0 %v889
        %1064 = vmatpush.bf16.msra.mxu0 %v887
        %1065 = vmatpush.bf16.msra.mxu0 %v885
        %1066 = vmatpush.bf16.msra.mxu0 %v883
        %1067 = vmatpush.bf16.msra.mxu0 %v881
        %1068 = vmatmul.bf16.gmra.mxu0 %v680
        %v1069 = vpop.f32.mrf.mxu0
        %v1070 = vadd.f32 0.0, %v1069
        %v1071 = vpop.f32.mrf.mxu0
        %1072 = vdwg.mxu0
        %1073 = vmatpush.bf16.msra.mxu0 %v911
        %1074 = vmatpush.bf16.msra.mxu0 %v909
        %1075 = vmatpush.bf16.msra.mxu0 %v907
        %1076 = vmatpush.bf16.msra.mxu0 %v905
        %1077 = vmatpush.bf16.msra.mxu0 %v903
        %1078 = vmatpush.bf16.msra.mxu0 %v901
        %1079 = vmatpush.bf16.msra.mxu0 %v899
        %1080 = vmatpush.bf16.msra.mxu0 %v897
        %1081 = vmatmul.bf16.gmra.mxu0 %v681
        %v1082 = vpop.f32.mrf.mxu0
        %v1083 = vadd.f32 %v1070, %v1082
        %v1084 = vpop.f32.mrf.mxu0
        %1085 = vdwg.mxu0
        %1086 = vmatpush.bf16.msra.mxu0 %v927
        %1087 = vmatpush.bf16.msra.mxu0 %v925
        %1088 = vmatpush.bf16.msra.mxu0 %v923
        %1089 = vmatpush.bf16.msra.mxu0 %v921
        %1090 = vmatpush.bf16.msra.mxu0 %v919
        %1091 = vmatpush.bf16.msra.mxu0 %v917
        %1092 = vmatpush.bf16.msra.mxu0 %v915
        %1093 = vmatpush.bf16.msra.mxu0 %v913
        %1094 = vmatmul.bf16.gmra.mxu0 %v682
        %v1095 = vpop.f32.mrf.mxu0
        %v1096 = vadd.f32 %v1083, %v1095
        %v1097 = vpop.f32.mrf.mxu0
        %1098 = vdwg.mxu0
        %1099 = vmatpush.bf16.msra.mxu0 %v943
        %1100 = vmatpush.bf16.msra.mxu0 %v941
        %1101 = vmatpush.bf16.msra.mxu0 %v939
        %1102 = vmatpush.bf16.msra.mxu0 %v937
        %1103 = vmatpush.bf16.msra.mxu0 %v935
        %1104 = vmatpush.bf16.msra.mxu0 %v933
        %1105 = vmatpush.bf16.msra.mxu0 %v931
        %1106 = vmatpush.bf16.msra.mxu0 %v929
        %1107 = vmatmul.bf16.gmra.mxu0 %v683
        %v1108 = vpop.f32.mrf.mxu0
        %v1109 = vadd.f32 %v1096, %v1108
        %v1110 = vpop.f32.mrf.mxu0
        %1111 = vdwg.mxu0
        %v1112 = vadd.f32 %v606, %v1057
        %v1113 = vadd.f32 %v607, %v1109
        %1114 = vst [vmem:[#allocation2] sm:$0xff] %v1112
        %1115 = vst [vmem:[#allocation2 + $0x8] sm:$0xff] %v1113
        %p1116 = scmp.eq.s32.totalorder %s23, 9
        // Predicated region
        $region75: #{discriminator_s_forward.12} parent=65 // pred_check
          %p1117 = pneg %p1116
        $region76: #{discriminator_s_forward.12} parent=65 // pred_check_branch
          %1119 = sbr.rel (%p1117) target = $region78
        $region77: #{discriminator_s_forward.12} parent=65 // pred_region
          %v1120 = vld [vmem:[#allocation2] sm:$0xff]
          %v1121 = vld [vmem:[#allocation2 + $0x8] sm:$0xff]
          %v1122 = vld [vmem:[%s584] sm:$0x3]
          %v1124 = vperm.slane %v1122, 0
          %v1125 = vperm.slane %v1122, 1
          %v1128 = vadd.f32 %v1120, %v1124
          %v1129 = vadd.f32 %v1121, %v1125
          %vm1130 = vcmp.ge.f32.partialorder %v1128, 0.0
          %vm1131 = vcmp.ge.f32.partialorder %v1129, 0.0
          %v1132 = vmul.f32 %v1128, 0.1
          %v1133 = vmul.f32 %v1129, 0.1
          %v1134 = vsel %vm1130, %v1128, %v1132
          %v1135 = vsel %vm1131, %v1129, %v1133
          %1136 = vst [vmem:[%s598] sm:$0xff] %v1134
          %1137 = vst [vmem:[%s598 + $0x8] sm:$0xff] %v1135
        $region78: #{discriminator_s_forward.12} parent=65 // pred_fallthru
          _
        %s1138 = smul.u32 2, %s22
        %p1139 = scmp.lt.s32.totalorder %s20, 0
        %s1140 = scalar_select %p1139, %s20, 0
        %p1141 = scmp.lt.s32.totalorder %s21, 0
        %s1142 = scalar_select %p1141, %s21, 0
        %p1143 = scmp.lt.s32.totalorder %s1138, 7
        %s1144 = scalar_select %p1143, %s1138, 7
        %s1145 = smul.addr %s1142, 8
        %s1146 = sadd.s32 %s1144, %s1145
        %s1147 = smul.addr %s1140, 8
        %s1148 = sadd.s32 %s1146, %s1147
        %s1149 = smul.addr %s1148, 8
        %s1150 = scalar_lea.vmem %s3, %s1149
        // Predicated region
        $region79: #{discriminator_s_forward.12} parent=65 // pred_check
          %p1151 = pneg %p150
        $region80: #{discriminator_s_forward.12} parent=65 // pred_check_branch
          %1153 = sbr.rel (%p1151) target = $region82
        $region81: #{discriminator_s_forward.12} parent=65 // pred_region
          %s1154 = smul.u32 2, %s22
        $region82: #{discriminator_s_forward.12} parent=65 // pred_fallthru
          _
      $region66: #{discriminator_s_forward.12} parent=5 // pred_fallthru
        _
      %p1155 = scmp.le.s32.totalorder 2, %s9
      // Predicated region
      $region83: #{discriminator_s_forward.12} parent=5 // pred_check
        %p1156 = pneg %p1155
      $region84: #{discriminator_s_forward.12} parent=5 // pred_check_branch
        %1158 = sbr.rel (%p1156) target = $region86
      $region85: #{discriminator_s_forward.12} parent=5 // pred_region
        %s1159 = ssub.s32 %s9, 2
        // Predicated region
        $region87: #{discriminator_s_forward.12} parent=85 // pred_check
          %p1160 = pneg %p156
        $region88: #{discriminator_s_forward.12} parent=85 // pred_check_branch
          %1162 = sbr.rel (%p1160) target = $region90
        $region89: #{discriminator_s_forward.12} parent=85 // pred_region
          %s1163 = smul.u32 2, %s26
          %p1164 = scmp.lt.s32.totalorder %s24, 0
          %s1165 = scalar_select %p1164, %s24, 0
          %p1166 = scmp.lt.s32.totalorder %s25, 0
          %s1167 = scalar_select %p1166, %s25, 0
          %p1168 = scmp.lt.s32.totalorder %s1163, 7
          %s1169 = scalar_select %p1168, %s1163, 7
          %s1170 = smul.addr %s1167, 8
          %s1171 = sadd.s32 %s1169, %s1170
          %s1172 = smul.addr %s1165, 8
          %s1173 = sadd.s32 %s1171, %s1172
          %s1174 = smul.addr %s1173, 8
          %s1175 = scalar_lea.vmem %s3, %s1174
        $region90: #{discriminator_s_forward.12} parent=85 // pred_fallthru
          _
      $region86: #{discriminator_s_forward.12} parent=5 // pred_fallthru
        _
    $region6: #{discriminator_s_forward.12} parent=1 // loop_footer
      %s13 = sadd.s32 1, %s9
    $region7: #{discriminator_s_forward.12} parent=1 // loop_footer_branch
      %8 = sbr.rel target = $region3
    $region8: #{discriminator_s_forward.12} parent=1 // loop_exit
      _

// kernel: discriminator_s_forward.13
$region0: #{discriminator_s_forward.13}
  #allocation0 [shape = 'u32[]', space=smem, size = 0x4, offset = 0x4, fixed_abs, tag = 'smem constant byte address 0x4 - core index']
  #allocation1 [shape = 'u32[72,128]{1,0:T(1,128)}', space=vmem, size = 0x9000, scoped, tag = 'internal scratch']
  #allocation2 [shape = 'f32[1,1]{1,0:T(1,128)S(1)}', space=vmem, size = 0x200, scoped, tag = 'scoped memory for discriminator_s_forward.13']
  %s0 = inlined_call_operand.vmem [shape: bf16[8,3072], index: 0, kind: input, shape index: {}]
  %s1 = inlined_call_operand.vmem [shape: bf16[1,3072], index: 1, kind: input, shape index: {}]
  %s2 = inlined_call_operand.<no memory space> [shape: f32[1,1], index: 2, kind: input, shape index: {}]
  %s3 = inlined_call_operand.vmem [shape: f32[8,1], index: 3, kind: output, shape index: {}]
  %s4 = sld [smem:[#allocation0]]
  $region22: #{discriminator_s_forward.13} parent=0
    _
  %s6 = ssub.s32 1, %s4
  %s7 = scalar_select 0, %s6, %s4
  %v8 = vstv %s2
  %9 = vst [vmem:[#allocation2] sm:$0x1] %v8
  // Predicated region
  $region2: #{discriminator_s_forward.13} parent=0 // pred_check
    _
  $region3: #{discriminator_s_forward.13} parent=0 // pred_check_branch
    %11 = sbr.rel (0) target = $region5
  $region4: #{discriminator_s_forward.13} parent=0 // pred_region
    _
  $region5: #{discriminator_s_forward.13} parent=0 // pred_fallthru
    _
  // Predicated region
  $region6: #{discriminator_s_forward.13} parent=0 // pred_check
    _
  $region7: #{discriminator_s_forward.13} parent=0 // pred_check_branch
    %13 = sbr.rel (0) target = $region9
  $region8: #{discriminator_s_forward.13} parent=0 // pred_region
    _
  $region9: #{discriminator_s_forward.13} parent=0 // pred_fallthru
    _
  // Predicated region
  $region10: #{discriminator_s_forward.13} parent=0 // pred_check
    _
  $region11: #{discriminator_s_forward.13} parent=0 // pred_check_branch
    %15 = sbr.rel (0) target = $region13
  $region12: #{discriminator_s_forward.13} parent=0 // pred_region
    _
  $region13: #{discriminator_s_forward.13} parent=0 // pred_fallthru
    _
  %v16 = vld [vmem:[%s0] sm:$0xff]
  %v17 = vld [vmem:[%s0 + $0x8] sm:$0xff]
  %v18 = vld [vmem:[%s0 + $0x10] sm:$0xff]
  %v19 = vld [vmem:[%s0 + $0x18] sm:$0xff]
  %v20 = vld [vmem:[%s0 + $0x20] sm:$0xff]
  %v21 = vld [vmem:[%s0 + $0x28] sm:$0xff]
  %v22 = vld [vmem:[%s0 + $0x30] sm:$0xff]
  %v23 = vld [vmem:[%s0 + $0x38] sm:$0xff]
  %v24 = vld [vmem:[%s0 + $0x40] sm:$0xff]
  %v25 = vld [vmem:[%s0 + $0x48] sm:$0xff]
  %v26 = vld [vmem:[%s0 + $0x50] sm:$0xff]
  %v27 = vld [vmem:[%s0 + $0x58] sm:$0xff]
  %v28 = vunpack.c.l.bf16 %v16
  %v29 = vunpack.c.h.bf16 %v16
  %v30 = vunpack.c.l.bf16 %v17
  %v31 = vunpack.c.h.bf16 %v17
  %v32 = vunpack.c.l.bf16 %v18
  %v33 = vunpack.c.h.bf16 %v18
  %v34 = vunpack.c.l.bf16 %v19
  %v35 = vunpack.c.h.bf16 %v19
  %v36 = vunpack.c.l.bf16 %v20
  %v37 = vunpack.c.h.bf16 %v20
  %v38 = vunpack.c.l.bf16 %v21
  %v39 = vunpack.c.h.bf16 %v21
  %v40 = vunpack.c.l.bf16 %v22
  %v41 = vunpack.c.h.bf16 %v22
  %v42 = vunpack.c.l.bf16 %v23
  %v43 = vunpack.c.h.bf16 %v23
  %v44 = vunpack.c.l.bf16 %v24
  %v45 = vunpack.c.h.bf16 %v24
  %v46 = vunpack.c.l.bf16 %v25
  %v47 = vunpack.c.h.bf16 %v25
  %v48 = vunpack.c.l.bf16 %v26
  %v49 = vunpack.c.h.bf16 %v26
  %v50 = vunpack.c.l.bf16 %v27
  %v51 = vunpack.c.h.bf16 %v27
  %v52 = vld [vmem:[%s1] sm:$0xff]
  %v53 = vld [vmem:[%s1 + $0x8] sm:$0xff]
  %v54 = vld [vmem:[%s1 + $0x10] sm:$0xff]
  %v55 = vunpack.c.l.bf16 %v52
  %v56 = vunpack.c.h.bf16 %v52
  %v57 = vunpack.c.l.bf16 %v53
  %v58 = vunpack.c.h.bf16 %v53
  %v59 = vunpack.c.l.bf16 %v54
  %v60 = vunpack.c.h.bf16 %v54
  %v67 = vperm.slane %v55, 0
  %v68 = vperm.slane %v55, 2
  %v69 = vperm.slane %v55, 4
  %v70 = vperm.slane %v55, 6
  %v71 = vperm.slane %v56, 0
  %v72 = vperm.slane %v56, 2
  %v73 = vperm.slane %v56, 4
  %v74 = vperm.slane %v56, 6
  %v75 = vperm.slane %v57, 0
  %v76 = vperm.slane %v57, 2
  %v77 = vperm.slane %v57, 4
  %v78 = vperm.slane %v57, 6
  %v79 = vperm.slane %v58, 0
  %v80 = vperm.slane %v58, 2
  %v81 = vperm.slane %v58, 4
  %v82 = vperm.slane %v58, 6
  %v83 = vperm.slane %v59, 0
  %v84 = vperm.slane %v59, 2
  %v85 = vperm.slane %v59, 4
  %v86 = vperm.slane %v59, 6
  %v87 = vperm.slane %v60, 0
  %v88 = vperm.slane %v60, 2
  %v89 = vperm.slane %v60, 4
  %v90 = vperm.slane %v60, 6
  %v115 = vperm.slane %v67, 0
  %v116 = vperm.slane %v68, 0
  %v117 = vperm.slane %v69, 0
  %v118 = vperm.slane %v70, 0
  %v119 = vperm.slane %v71, 0
  %v120 = vperm.slane %v72, 0
  %v121 = vperm.slane %v73, 0
  %v122 = vperm.slane %v74, 0
  %v123 = vperm.slane %v75, 0
  %v124 = vperm.slane %v76, 0
  %v125 = vperm.slane %v77, 0
  %v126 = vperm.slane %v78, 0
  %v127 = vperm.slane %v79, 0
  %v128 = vperm.slane %v80, 0
  %v129 = vperm.slane %v81, 0
  %v130 = vperm.slane %v82, 0
  %v131 = vperm.slane %v83, 0
  %v132 = vperm.slane %v84, 0
  %v133 = vperm.slane %v85, 0
  %v134 = vperm.slane %v86, 0
  %v135 = vperm.slane %v87, 0
  %v136 = vperm.slane %v88, 0
  %v137 = vperm.slane %v89, 0
  %v138 = vperm.slane %v90, 0
  %v139 = vmul.f32 %v28, %v115
  %v140 = vmul.f32 %v29, %v116
  %v141 = vmul.f32 %v30, %v117
  %v142 = vmul.f32 %v31, %v118
  %v143 = vmul.f32 %v32, %v119
  %v144 = vmul.f32 %v33, %v120
  %v145 = vmul.f32 %v34, %v121
  %v146 = vmul.f32 %v35, %v122
  %v147 = vmul.f32 %v36, %v123
  %v148 = vmul.f32 %v37, %v124
  %v149 = vmul.f32 %v38, %v125
  %v150 = vmul.f32 %v39, %v126
  %v151 = vmul.f32 %v40, %v127
  %v152 = vmul.f32 %v41, %v128
  %v153 = vmul.f32 %v42, %v129
  %v154 = vmul.f32 %v43, %v130
  %v155 = vmul.f32 %v44, %v131
  %v156 = vmul.f32 %v45, %v132
  %v157 = vmul.f32 %v46, %v133
  %v158 = vmul.f32 %v47, %v134
  %v159 = vmul.f32 %v48, %v135
  %v160 = vmul.f32 %v49, %v136
  %v161 = vmul.f32 %v50, %v137
  %v162 = vmul.f32 %v51, %v138
  %v163 = vadd.f32 %v139, %v140
  %v164 = vadd.f32 %v163, %v141
  %v165 = vadd.f32 %v164, %v142
  %v166 = vadd.f32 %v165, %v143
  %v167 = vadd.f32 %v166, %v144
  %v168 = vadd.f32 %v167, %v145
  %v169 = vadd.f32 %v168, %v146
  %v170 = vadd.f32 %v169, %v147
  %v171 = vadd.f32 %v170, %v148
  %v172 = vadd.f32 %v171, %v149
  %v173 = vadd.f32 %v172, %v150
  %v174 = vadd.f32 %v173, %v151
  %v175 = vadd.f32 %v174, %v152
  %v176 = vadd.f32 %v175, %v153
  %v177 = vadd.f32 %v176, %v154
  %v178 = vadd.f32 %v177, %v155
  %v179 = vadd.f32 %v178, %v156
  %v180 = vadd.f32 %v179, %v157
  %v181 = vadd.f32 %v180, %v158
  %v182 = vadd.f32 %v181, %v159
  %v183 = vadd.f32 %v182, %v160
  %v184 = vadd.f32 %v183, %v161
  %v185 = vadd.f32 %v184, %v162
  %186 = vadd.xlane.f32.xlu0 %v185
  %v187 = vpop.xlane.xlu0 %186
  %v188 = vld [vmem:[#allocation2] sm:$0x1]
  %v190 = vperm.slane %v188, 0
  %v192 = vadd.f32 %v187, %v190
  %vm193 = vcmask 7168
  %194 = vst.msk [vmem:[%s3] sm:$0xff] %vm193, %v192
  // Predicated region
  $region14: #{discriminator_s_forward.13} parent=0 // pred_check
    _
  $region15: #{discriminator_s_forward.13} parent=0 // pred_check_branch
    %196 = sbr.rel (0) target = $region17
  $region16: #{discriminator_s_forward.13} parent=0 // pred_region
    _
  $region17: #{discriminator_s_forward.13} parent=0 // pred_fallthru
    _
  // Predicated region
  $region18: #{discriminator_s_forward.13} parent=0 // pred_check
    _
  $region19: #{discriminator_s_forward.13} parent=0 // pred_check_branch
    %198 = sbr.rel (0) target = $region21
  $region20: #{discriminator_s_forward.13} parent=0 // pred_region
    _
  $region21: #{discriminator_s_forward.13} parent=0 // pred_fallthru
    _

</llo_original>
